<compile_context>
chip_gen: v7x
topology: tpu7x:2x2x1
jax: 0.10.0
libtpu: 0.0.40
codegen_flags: <defaults>
</compile_context>

<pallas_src>
import jax
import jax.numpy as jnp
from jax.experimental import pallas as pl
from jax.experimental.pallas import tpu as pltpu

NUM_CLASSES = 230
PADDED_CLASSES = 256          # next multiple of 128 -> lane-dense output stores


# ----------------------------------------------------------------------------
# Fused kernel: backbone 1x1 conv + ReLU + global avg pool,
#               gender encoder, MLP (-> logits), classifier (-> out).
#   x       : [B, Cin, HW]      (NCHW with H*W flattened; HW on the lane dim)
#   w_bb    : [Cin, Cout, 1]    (broadcast-friendly layout for VPU FMAs)
#   b_bb    : [1, Cout, 1]
#   wg/bg   : [1, G]            gender Linear(1, G)
#   g_sc/sh : [1, G]            folded BatchNorm1d(G)
#   w1x     : [Cout, 1024] bf16 (rows of concat-weight for the image features)
#   w1g     : [G,    1024] bf16 (rows of concat-weight for the gender encoding)
#   s1/sh1  : [1, 1024]         folded BN
#   w2      : [1024, 1024] bf16 (HBM, manually DMA'd) ; s2/sh2 : [1, 1024]
#   wc1     : [1024, 512]  bf16 (HBM, manually DMA'd) ; sc/shc : [1, 512]
#   wc2     : [512, 256]   bf16 (HBM, manually DMA'd; zero-padded from 230)
#   logits  : [B, 1024]   out : [B, 256]
# ----------------------------------------------------------------------------
def res50_align_kernel(x_ref, gender_ref,
                       w_bb_ref, b_bb_ref,
                       wg_ref, bg_ref, gsc_ref, gsh_ref,
                       w1x_ref, w1g_ref, s1_ref, sh1_ref,
                       w2_hbm, s2_ref, sh2_ref,
                       wc1_hbm, sc_ref, shc_ref, wc2_hbm,
                       logits_ref, out_ref,
                       w2_buf, wc1_buf, wc2_buf, dma_sems):
    # ---- kick off the big head-weight DMAs first; overlap with early compute --
    cp_w2 = pltpu.make_async_copy(w2_hbm, w2_buf, dma_sems.at[0])
    cp_wc1 = pltpu.make_async_copy(wc1_hbm, wc1_buf, dma_sems.at[1])
    cp_wc2 = pltpu.make_async_copy(wc2_hbm, wc2_buf, dma_sems.at[2])
    cp_w2.start()
    cp_wc1.start()
    cp_wc2.start()

    # ---- backbone stand-in: 1x1 conv as Cin unrolled VPU FMAs (HW on lanes) ----
    x = x_ref[...]                                  # (B, Cin, HW) f32
    wb = w_bb_ref[...]                              # (Cin, Cout, 1)
    cin_total = x.shape[1]

    conv = x[:, 0:1, :] * wb[0][None]               # (B,1,HW)*(1,Cout,1) -> (B,Cout,HW)
    for cin in range(1, cin_total):                 # static, unrolled
        conv = conv + x[:, cin:cin + 1, :] * wb[cin][None]
    conv = jnp.maximum(conv + b_bb_ref[...], 0.0)   # bias + ReLU (before pooling)

    # adaptive_avg_pool2d(., 1) + squeeze + view(-1, Cout)
    feat = jnp.mean(conv, axis=-1)                  # (B, Cout) f32

    # ---- gender encoder: Linear(1, G) as a broadcast multiply + BN + ReLU ----
    g = gender_ref[...]                             # (B, 1)
    genc = g * wg_ref[...] + bg_ref[...]            # (B, G)
    genc = jnp.maximum(genc * gsc_ref[...] + gsh_ref[...], 0.0)

    # ---- MLP layer 1: concat(feat, genc) @ W1 as split matmuls (exact).
    #      This all runs under the w2 DMA shadow, so it is wall-clock free. ----
    bf16 = jnp.bfloat16
    h = (jnp.dot(feat.astype(bf16), w1x_ref[...], preferred_element_type=jnp.float32)
         + jnp.dot(genc.astype(bf16), w1g_ref[...], preferred_element_type=jnp.float32))
    h = jnp.maximum(h * s1_ref[...] + sh1_ref[...], 0.0)            # (B, 1024)

    # ---- MLP layer 2 (needs w2 in VMEM) ----
    cp_w2.wait()
    h = jnp.dot(h.astype(bf16), w2_buf[...], preferred_element_type=jnp.float32)
    h = jnp.maximum(h * s2_ref[...] + sh2_ref[...], 0.0)            # (B, 1024)
    logits_ref[...] = h

    # ---- classifier (Linear(1024,512,nobias)+BN+ReLU, Linear(512,230,nobias)) --
    cp_wc1.wait()
    c = jnp.dot(h.astype(bf16), wc1_buf[...], preferred_element_type=jnp.float32)
    c = jnp.maximum(c * sc_ref[...] + shc_ref[...], 0.0)            # (B, 512)
    cp_wc2.wait()
    out_ref[...] = jnp.dot(c.astype(bf16), wc2_buf[...],
                           preferred_element_type=jnp.float32)      # (B, 256)


def fused_forward(x_flat, gender, params):
    B, Cin, HW = x_flat.shape
    Cout = params["w_bb"].shape[1]
    G = params["wg"].shape[1]
    H1 = params["w2"].shape[0]
    C1 = params["wc1"].shape[1]
    n_pad = params["wc2"].shape[1]

    args = (x_flat, gender,
            params["w_bb"], params["b_bb"],
            params["wg"], params["bg"], params["g_scale"], params["g_shift"],
            params["w1x"], params["w1g"], params["s1"], params["sh1"],
            params["w2"], params["s2"], params["sh2"],
            params["wc1"], params["sc"], params["shc"], params["wc2"])

    # Large head weights stay in HBM and are DMA'd manually inside the kernel.
    hbm_idx = {12, 15, 18}                          # w2, wc1, wc2
    vspec = pl.BlockSpec(memory_space=pltpu.MemorySpace.VMEM)
    anyspec = pl.BlockSpec(memory_space=pl.ANY)
    in_specs = [anyspec if i in hbm_idx else vspec for i in range(len(args))]

    scratch_shapes = [
        pltpu.VMEM(params["w2"].shape, params["w2"].dtype),
        pltpu.VMEM(params["wc1"].shape, params["wc1"].dtype),
        pltpu.VMEM(params["wc2"].shape, params["wc2"].dtype),
        pltpu.SemaphoreType.DMA((3,)),
    ]

    flops = 2 * B * (Cin * Cout * HW                 # 1x1 conv
                     + Cout * H1 + G * H1            # MLP layer 1 (split concat)
                     + H1 * H1                       # MLP layer 2
                     + H1 * C1 + C1 * n_pad)         # classifier
    bytes_accessed = (sum(int(a.size) * a.dtype.itemsize for a in args)
                      + (B * H1 + B * n_pad) * 4)

    # Honest VMEM budget: VMEM-resident inputs + DMA'd weight scratch + outputs,
    # doubled for layout padding / compiler scratch headroom (min 8 MiB).
    resident = sum(int(a.size) * a.dtype.itemsize
                   for i, a in enumerate(args) if i not in hbm_idx)
    resident += sum(int(params[k].size) * params[k].dtype.itemsize
                    for k in ("w2", "wc1", "wc2"))
    resident += (B * H1 + B * n_pad) * 4
    vmem_limit = int(max(8 * 1024 * 1024, 2 * resident))

    return pl.pallas_call(
        res50_align_kernel,
        out_shape=(jax.ShapeDtypeStruct((B, H1), jnp.float32),
                   jax.ShapeDtypeStruct((B, n_pad), jnp.float32)),
        in_specs=in_specs,
        out_specs=(vspec, vspec),
        scratch_shapes=scratch_shapes,
        compiler_params=pltpu.CompilerParams(vmem_limit_bytes=vmem_limit),
        cost_estimate=pl.CostEstimate(
            flops=flops, transcendentals=0, bytes_accessed=bytes_accessed),
    )(*args)


# ----------------------------------------------------------------------------
# Parameter construction (deterministic) + full forward wrapper.
# ----------------------------------------------------------------------------
def bn_fold(gamma, beta, mean, var, eps=1e-5):
    scale = gamma / jnp.sqrt(var + eps)
    shift = beta - mean * scale
    return scale[None, :], shift[None, :]


def make_params(in_ch, out_channels, gender_length, seed=0):
    keys = jax.random.split(jax.random.PRNGKey(seed), 16)
    k = iter(keys)
    f32, bf16 = jnp.float32, jnp.bfloat16

    def rnd(key, shape, fan_in):
        return jax.random.normal(key, shape, f32) / jnp.sqrt(f32(fan_in))

    def identity_bn(n):
        return bn_fold(jnp.ones(n, f32), jnp.zeros(n, f32),
                       jnp.zeros(n, f32), jnp.ones(n, f32))

    p = {}
    # backbone stand-in: 1x1 conv (broadcast-friendly [Cin, Cout, 1] layout)
    p["w_bb"] = rnd(next(k), (in_ch, out_channels), in_ch)[:, :, None]
    p["b_bb"] = jnp.zeros((1, out_channels, 1), f32)

    # gender encoder: Linear(1, G) (bias=True, PyTorch default) + BN(G)
    p["wg"] = rnd(next(k), (1, gender_length), 1)
    p["bg"] = jnp.zeros((1, gender_length), f32)
    p["g_scale"], p["g_shift"] = identity_bn(gender_length)

    # MLP layer 1: Linear(out_channels + G, 1024, no bias) + BN(1024)
    k_in = out_channels + gender_length
    w1 = rnd(next(k), (k_in, 1024), k_in)
    p["w1x"] = w1[:out_channels].astype(bf16)
    p["w1g"] = w1[out_channels:].astype(bf16)
    p["s1"], p["sh1"] = identity_bn(1024)

    # MLP layer 2: Linear(1024, 1024, no bias) + BN(1024)
    p["w2"] = rnd(next(k), (1024, 1024), 1024).astype(bf16)
    p["s2"], p["sh2"] = identity_bn(1024)

    # classifier: Linear(1024, 512, no bias) + BN(512) + ReLU + Linear(512, 230, no bias)
    p["wc1"] = rnd(next(k), (1024, 512), 1024).astype(bf16)
    p["sc"], p["shc"] = identity_bn(512)
    wc2 = rnd(next(k), (512, NUM_CLASSES), 512)
    p["wc2"] = jnp.pad(wc2, ((0, 0), (0, PADDED_CLASSES - NUM_CLASSES))).astype(bf16)
    return p


@jax.jit
def res50_align_forward(x_nchw, gender, params):
    # NCHW kept as-is: pure reshape (no transpose / extra HBM pass), HW -> lanes.
    B, C, H, W = x_nchw.shape
    x_flat = x_nchw.reshape(B, C, H * W)
    logits, out_padded = fused_forward(x_flat, gender, params)
    return logits, out_padded[:, :NUM_CLASSES]


if __name__ == "__main__":
    B, C_in, H, W = 2, 4, 16, 16
    out_channels = 32
    gender_length = 16

    key = jax.random.PRNGKey(0)
    kx, kg = jax.random.split(key)
    x = jax.random.normal(kx, (B, C_in, H, W), jnp.float32)
    gender = jax.random.bernoulli(kg, 0.5, (B, 1)).astype(jnp.float32)

    params = make_params(C_in, out_channels, gender_length, seed=0)

    logits, cls_out = res50_align_forward(x, gender, params)
    jax.block_until_ready((logits, cls_out))

    assert logits.shape == (B, 1024) and cls_out.shape == (B, NUM_CLASSES)
    print("KERNEL_OK")
</pallas_src>

<mosaic_0001>
module attributes {stable_mosaic.version = 11 : i64} {
  func.func @res50_align_kernel(%arg0: memref<2x4x256xf32, #tpu.memory_space<vmem>>, %arg1: memref<2x1xf32, #tpu.memory_space<vmem>>, %arg2: memref<4x32x1xf32, #tpu.memory_space<vmem>>, %arg3: memref<1x32x1xf32, #tpu.memory_space<vmem>>, %arg4: memref<1x16xf32, #tpu.memory_space<vmem>>, %arg5: memref<1x16xf32, #tpu.memory_space<vmem>>, %arg6: memref<1x16xf32, #tpu.memory_space<vmem>>, %arg7: memref<1x16xf32, #tpu.memory_space<vmem>>, %arg8: memref<32x1024xbf16, #tpu.memory_space<vmem>>, %arg9: memref<16x1024xbf16, #tpu.memory_space<vmem>>, %arg10: memref<1x1024xf32, #tpu.memory_space<vmem>>, %arg11: memref<1x1024xf32, #tpu.memory_space<vmem>>, %arg12: memref<1024x1024xbf16, #tpu.memory_space<any>>, %arg13: memref<1x1024xf32, #tpu.memory_space<vmem>>, %arg14: memref<1x1024xf32, #tpu.memory_space<vmem>>, %arg15: memref<1024x512xbf16, #tpu.memory_space<any>>, %arg16: memref<1x512xf32, #tpu.memory_space<vmem>>, %arg17: memref<1x512xf32, #tpu.memory_space<vmem>>, %arg18: memref<512x256xbf16, #tpu.memory_space<any>>, %arg19: memref<2x1024xf32, #tpu.memory_space<vmem>>, %arg20: memref<2x256xf32, #tpu.memory_space<vmem>>, %arg21: memref<1024x1024xbf16, #tpu.memory_space<vmem>>, %arg22: memref<1024x512xbf16, #tpu.memory_space<vmem>>, %arg23: memref<512x256xbf16, #tpu.memory_space<vmem>>, %arg24: memref<3x!tpu.dma_semaphore, #tpu.memory_space<semaphore_mem>>) attributes {dimension_semantics = [], scalar_prefetch = 0 : i64, scratch_operands = 4 : i64, tpu.core_type = #tpu.core_type<tc>} {
    %c0_i32 = arith.constant 0 : i32
    %0 = tpu.memref_slice %arg24[%c0_i32] : memref<3x!tpu.dma_semaphore, #tpu.memory_space<semaphore_mem>> -> memref<1x!tpu.dma_semaphore, #tpu.memory_space<semaphore_mem>>
    %1 = tpu.memref_squeeze %0 : memref<1x!tpu.dma_semaphore, #tpu.memory_space<semaphore_mem>> -> memref<!tpu.dma_semaphore, #tpu.memory_space<semaphore_mem>>
    tpu.enqueue_dma source(%arg12 : memref<1024x1024xbf16, #tpu.memory_space<any>>) target(%arg21 : memref<1024x1024xbf16, #tpu.memory_space<vmem>>) target_semaphore(%1 : memref<!tpu.dma_semaphore, #tpu.memory_space<semaphore_mem>>)
    %c1_i32 = arith.constant 1 : i32
    %2 = tpu.memref_slice %arg24[%c1_i32] : memref<3x!tpu.dma_semaphore, #tpu.memory_space<semaphore_mem>> -> memref<1x!tpu.dma_semaphore, #tpu.memory_space<semaphore_mem>>
    %3 = tpu.memref_squeeze %2 : memref<1x!tpu.dma_semaphore, #tpu.memory_space<semaphore_mem>> -> memref<!tpu.dma_semaphore, #tpu.memory_space<semaphore_mem>>
    tpu.enqueue_dma source(%arg15 : memref<1024x512xbf16, #tpu.memory_space<any>>) target(%arg22 : memref<1024x512xbf16, #tpu.memory_space<vmem>>) target_semaphore(%3 : memref<!tpu.dma_semaphore, #tpu.memory_space<semaphore_mem>>)
    %c2_i32 = arith.constant 2 : i32
    %4 = tpu.memref_slice %arg24[%c2_i32] : memref<3x!tpu.dma_semaphore, #tpu.memory_space<semaphore_mem>> -> memref<1x!tpu.dma_semaphore, #tpu.memory_space<semaphore_mem>>
    %5 = tpu.memref_squeeze %4 : memref<1x!tpu.dma_semaphore, #tpu.memory_space<semaphore_mem>> -> memref<!tpu.dma_semaphore, #tpu.memory_space<semaphore_mem>>
    tpu.enqueue_dma source(%arg18 : memref<512x256xbf16, #tpu.memory_space<any>>) target(%arg23 : memref<512x256xbf16, #tpu.memory_space<vmem>>) target_semaphore(%5 : memref<!tpu.dma_semaphore, #tpu.memory_space<semaphore_mem>>)
    %c0 = arith.constant 0 : index
    %c0_0 = arith.constant 0 : index
    %c0_1 = arith.constant 0 : index
    %6 = vector.load %arg0[%c0, %c0_0, %c0_1] : memref<2x4x256xf32, #tpu.memory_space<vmem>>, vector<2x4x256xf32>
    %c0_2 = arith.constant 0 : index
    %c0_3 = arith.constant 0 : index
    %c0_4 = arith.constant 0 : index
    %7 = vector.load %arg2[%c0_2, %c0_3, %c0_4] : memref<4x32x1xf32, #tpu.memory_space<vmem>>, vector<4x32x1xf32>
    %8 = vector.extract_strided_slice %6 {offsets = [0, 0, 0], sizes = [2, 1, 256], strides = [1, 1, 1]} : vector<2x4x256xf32> to vector<2x1x256xf32>
    %9 = vector.extract_strided_slice %7 {offsets = [0, 0, 0], sizes = [1, 32, 1], strides = [1, 1, 1]} : vector<4x32x1xf32> to vector<1x32x1xf32>
    %10 = vector.shape_cast %9 : vector<1x32x1xf32> to vector<32x1xf32>
    %11 = vector.shape_cast %10 : vector<32x1xf32> to vector<1x32x1xf32>
    %12 = vector.broadcast %8 : vector<2x1x256xf32> to vector<2x32x256xf32>
    %13 = vector.broadcast %11 : vector<1x32x1xf32> to vector<2x32x256xf32>
    %14 = arith.mulf %12, %13 : vector<2x32x256xf32>
    %15 = vector.extract_strided_slice %6 {offsets = [0, 1, 0], sizes = [2, 1, 256], strides = [1, 1, 1]} : vector<2x4x256xf32> to vector<2x1x256xf32>
    %16 = vector.extract_strided_slice %7 {offsets = [1, 0, 0], sizes = [1, 32, 1], strides = [1, 1, 1]} : vector<4x32x1xf32> to vector<1x32x1xf32>
    %17 = vector.shape_cast %16 : vector<1x32x1xf32> to vector<32x1xf32>
    %18 = vector.shape_cast %17 : vector<32x1xf32> to vector<1x32x1xf32>
    %19 = vector.broadcast %15 : vector<2x1x256xf32> to vector<2x32x256xf32>
    %20 = vector.broadcast %18 : vector<1x32x1xf32> to vector<2x32x256xf32>
    %21 = arith.mulf %19, %20 : vector<2x32x256xf32>
    %22 = arith.addf %14, %21 : vector<2x32x256xf32>
    %23 = vector.extract_strided_slice %6 {offsets = [0, 2, 0], sizes = [2, 1, 256], strides = [1, 1, 1]} : vector<2x4x256xf32> to vector<2x1x256xf32>
    %24 = vector.extract_strided_slice %7 {offsets = [2, 0, 0], sizes = [1, 32, 1], strides = [1, 1, 1]} : vector<4x32x1xf32> to vector<1x32x1xf32>
    %25 = vector.shape_cast %24 : vector<1x32x1xf32> to vector<32x1xf32>
    %26 = vector.shape_cast %25 : vector<32x1xf32> to vector<1x32x1xf32>
    %27 = vector.broadcast %23 : vector<2x1x256xf32> to vector<2x32x256xf32>
    %28 = vector.broadcast %26 : vector<1x32x1xf32> to vector<2x32x256xf32>
    %29 = arith.mulf %27, %28 : vector<2x32x256xf32>
    %30 = arith.addf %22, %29 : vector<2x32x256xf32>
    %31 = vector.extract_strided_slice %6 {offsets = [0, 3, 0], sizes = [2, 1, 256], strides = [1, 1, 1]} : vector<2x4x256xf32> to vector<2x1x256xf32>
    %32 = vector.extract_strided_slice %7 {offsets = [3, 0, 0], sizes = [1, 32, 1], strides = [1, 1, 1]} : vector<4x32x1xf32> to vector<1x32x1xf32>
    %33 = vector.shape_cast %32 : vector<1x32x1xf32> to vector<32x1xf32>
    %34 = vector.shape_cast %33 : vector<32x1xf32> to vector<1x32x1xf32>
    %35 = vector.broadcast %31 : vector<2x1x256xf32> to vector<2x32x256xf32>
    %36 = vector.broadcast %34 : vector<1x32x1xf32> to vector<2x32x256xf32>
    %37 = arith.mulf %35, %36 : vector<2x32x256xf32>
    %38 = arith.addf %30, %37 : vector<2x32x256xf32>
    %c0_5 = arith.constant 0 : index
    %c0_6 = arith.constant 0 : index
    %c0_7 = arith.constant 0 : index
    %39 = vector.load %arg3[%c0_5, %c0_6, %c0_7] : memref<1x32x1xf32, #tpu.memory_space<vmem>>, vector<1x32x1xf32>
    %40 = vector.broadcast %39 : vector<1x32x1xf32> to vector<2x32x256xf32>
    %41 = arith.addf %38, %40 : vector<2x32x256xf32>
    %cst = arith.constant 0.000000e+00 : f32
    %42 = vector.broadcast %cst : f32 to vector<2x32x256xf32>
    %43 = arith.maximumf %41, %42 : vector<2x32x256xf32>
    %cst_8 = arith.constant dense<0.000000e+00> : vector<2x32xf32>
    %44 = vector.multi_reduction <add>, %43, %cst_8 [2] : vector<2x32x256xf32> to vector<2x32xf32>
    %cst_9 = arith.constant 2.560000e+02 : f32
    %45 = vector.broadcast %cst_9 : f32 to vector<2x32xf32>
    %46 = arith.divf %44, %45 : vector<2x32xf32>
    %c0_10 = arith.constant 0 : index
    %c0_11 = arith.constant 0 : index
    %47 = vector.load %arg1[%c0_10, %c0_11] : memref<2x1xf32, #tpu.memory_space<vmem>>, vector<2x1xf32>
    %c0_12 = arith.constant 0 : index
    %c0_13 = arith.constant 0 : index
    %48 = vector.load %arg4[%c0_12, %c0_13] : memref<1x16xf32, #tpu.memory_space<vmem>>, vector<1x16xf32>
    %49 = vector.broadcast %47 : vector<2x1xf32> to vector<2x16xf32>
    %50 = vector.broadcast %48 : vector<1x16xf32> to vector<2x16xf32>
    %51 = arith.mulf %49, %50 : vector<2x16xf32>
    %c0_14 = arith.constant 0 : index
    %c0_15 = arith.constant 0 : index
    %52 = vector.load %arg5[%c0_14, %c0_15] : memref<1x16xf32, #tpu.memory_space<vmem>>, vector<1x16xf32>
    %53 = vector.broadcast %52 : vector<1x16xf32> to vector<2x16xf32>
    %54 = arith.addf %51, %53 : vector<2x16xf32>
    %c0_16 = arith.constant 0 : index
    %c0_17 = arith.constant 0 : index
    %55 = vector.load %arg6[%c0_16, %c0_17] : memref<1x16xf32, #tpu.memory_space<vmem>>, vector<1x16xf32>
    %56 = vector.broadcast %55 : vector<1x16xf32> to vector<2x16xf32>
    %57 = arith.mulf %54, %56 : vector<2x16xf32>
    %c0_18 = arith.constant 0 : index
    %c0_19 = arith.constant 0 : index
    %58 = vector.load %arg7[%c0_18, %c0_19] : memref<1x16xf32, #tpu.memory_space<vmem>>, vector<1x16xf32>
    %59 = vector.broadcast %58 : vector<1x16xf32> to vector<2x16xf32>
    %60 = arith.addf %57, %59 : vector<2x16xf32>
    %cst_20 = arith.constant 0.000000e+00 : f32
    %61 = vector.broadcast %cst_20 : f32 to vector<2x16xf32>
    %62 = arith.maximumf %60, %61 : vector<2x16xf32>
    %63 = arith.truncf %46 : vector<2x32xf32> to vector<2x32xbf16>
    %c0_21 = arith.constant 0 : index
    %c0_22 = arith.constant 0 : index
    %64 = vector.load %arg8[%c0_21, %c0_22] : memref<32x1024xbf16, #tpu.memory_space<vmem>>, vector<32x1024xbf16>
    %cst_23 = arith.constant dense<0.000000e+00> : vector<2x1024xf32>
    %65 = tpu.matmul %63, %64, %cst_23 {dimension_numbers = #tpu.dot_dimension_numbers<[1], [0], [0], [1], [0, 0, 1, 1], [], []>} : vector<2x32xbf16>, vector<32x1024xbf16>, vector<2x1024xf32> -> vector<2x1024xf32>
    %66 = arith.truncf %62 : vector<2x16xf32> to vector<2x16xbf16>
    %c0_24 = arith.constant 0 : index
    %c0_25 = arith.constant 0 : index
    %67 = vector.load %arg9[%c0_24, %c0_25] : memref<16x1024xbf16, #tpu.memory_space<vmem>>, vector<16x1024xbf16>
    %cst_26 = arith.constant dense<0.000000e+00> : vector<2x1024xf32>
    %68 = tpu.matmul %66, %67, %cst_26 {dimension_numbers = #tpu.dot_dimension_numbers<[1], [0], [0], [1], [0, 0, 1, 1], [], []>} : vector<2x16xbf16>, vector<16x1024xbf16>, vector<2x1024xf32> -> vector<2x1024xf32>
    %69 = arith.addf %65, %68 : vector<2x1024xf32>
    %c0_27 = arith.constant 0 : index
    %c0_28 = arith.constant 0 : index
    %70 = vector.load %arg10[%c0_27, %c0_28] : memref<1x1024xf32, #tpu.memory_space<vmem>>, vector<1x1024xf32>
    %71 = vector.broadcast %70 : vector<1x1024xf32> to vector<2x1024xf32>
    %72 = arith.mulf %69, %71 : vector<2x1024xf32>
    %c0_29 = arith.constant 0 : index
    %c0_30 = arith.constant 0 : index
    %73 = vector.load %arg11[%c0_29, %c0_30] : memref<1x1024xf32, #tpu.memory_space<vmem>>, vector<1x1024xf32>
    %74 = vector.broadcast %73 : vector<1x1024xf32> to vector<2x1024xf32>
    %75 = arith.addf %72, %74 : vector<2x1024xf32>
    %cst_31 = arith.constant 0.000000e+00 : f32
    %76 = vector.broadcast %cst_31 : f32 to vector<2x1024xf32>
    %77 = arith.maximumf %75, %76 : vector<2x1024xf32>
    %c0_i32_32 = arith.constant 0 : i32
    %78 = tpu.memref_slice %arg24[%c0_i32_32] : memref<3x!tpu.dma_semaphore, #tpu.memory_space<semaphore_mem>> -> memref<1x!tpu.dma_semaphore, #tpu.memory_space<semaphore_mem>>
    %79 = tpu.memref_squeeze %78 : memref<1x!tpu.dma_semaphore, #tpu.memory_space<semaphore_mem>> -> memref<!tpu.dma_semaphore, #tpu.memory_space<semaphore_mem>>
    tpu.wait_dma2 semaphore(%79 : memref<!tpu.dma_semaphore, #tpu.memory_space<semaphore_mem>>) src(%arg12 : memref<1024x1024xbf16, #tpu.memory_space<any>>) dst(%arg21 : memref<1024x1024xbf16, #tpu.memory_space<vmem>>)
    %80 = arith.truncf %77 : vector<2x1024xf32> to vector<2x1024xbf16>
    %c0_33 = arith.constant 0 : index
    %c0_34 = arith.constant 0 : index
    %81 = vector.load %arg21[%c0_33, %c0_34] : memref<1024x1024xbf16, #tpu.memory_space<vmem>>, vector<1024x1024xbf16>
    %cst_35 = arith.constant dense<0.000000e+00> : vector<2x1024xf32>
    %82 = tpu.matmul %80, %81, %cst_35 {dimension_numbers = #tpu.dot_dimension_numbers<[1], [0], [0], [1], [0, 0, 1, 1], [], []>} : vector<2x1024xbf16>, vector<1024x1024xbf16>, vector<2x1024xf32> -> vector<2x1024xf32>
    %c0_36 = arith.constant 0 : index
    %c0_37 = arith.constant 0 : index
    %83 = vector.load %arg13[%c0_36, %c0_37] : memref<1x1024xf32, #tpu.memory_space<vmem>>, vector<1x1024xf32>
    %84 = vector.broadcast %83 : vector<1x1024xf32> to vector<2x1024xf32>
    %85 = arith.mulf %82, %84 : vector<2x1024xf32>
    %c0_38 = arith.constant 0 : index
    %c0_39 = arith.constant 0 : index
    %86 = vector.load %arg14[%c0_38, %c0_39] : memref<1x1024xf32, #tpu.memory_space<vmem>>, vector<1x1024xf32>
    %87 = vector.broadcast %86 : vector<1x1024xf32> to vector<2x1024xf32>
    %88 = arith.addf %85, %87 : vector<2x1024xf32>
    %cst_40 = arith.constant 0.000000e+00 : f32
    %89 = vector.broadcast %cst_40 : f32 to vector<2x1024xf32>
    %90 = arith.maximumf %88, %89 : vector<2x1024xf32>
    %c0_41 = arith.constant 0 : index
    %c0_42 = arith.constant 0 : index
    %91 = vector.load %arg19[%c0_41, %c0_42] : memref<2x1024xf32, #tpu.memory_space<vmem>>, vector<2x1024xf32>
    tpu.vector_store %arg19[%c0_41, %c0_42], %90 {strides = array<i32>} : memref<2x1024xf32, #tpu.memory_space<vmem>>, vector<2x1024xf32>,
    %c1_i32_43 = arith.constant 1 : i32
    %92 = tpu.memref_slice %arg24[%c1_i32_43] : memref<3x!tpu.dma_semaphore, #tpu.memory_space<semaphore_mem>> -> memref<1x!tpu.dma_semaphore, #tpu.memory_space<semaphore_mem>>
    %93 = tpu.memref_squeeze %92 : memref<1x!tpu.dma_semaphore, #tpu.memory_space<semaphore_mem>> -> memref<!tpu.dma_semaphore, #tpu.memory_space<semaphore_mem>>
    tpu.wait_dma2 semaphore(%93 : memref<!tpu.dma_semaphore, #tpu.memory_space<semaphore_mem>>) src(%arg15 : memref<1024x512xbf16, #tpu.memory_space<any>>) dst(%arg22 : memref<1024x512xbf16, #tpu.memory_space<vmem>>)
    %94 = arith.truncf %90 : vector<2x1024xf32> to vector<2x1024xbf16>
    %c0_44 = arith.constant 0 : index
    %c0_45 = arith.constant 0 : index
    %95 = vector.load %arg22[%c0_44, %c0_45] : memref<1024x512xbf16, #tpu.memory_space<vmem>>, vector<1024x512xbf16>
    %cst_46 = arith.constant dense<0.000000e+00> : vector<2x512xf32>
    %96 = tpu.matmul %94, %95, %cst_46 {dimension_numbers = #tpu.dot_dimension_numbers<[1], [0], [0], [1], [0, 0, 1, 1], [], []>} : vector<2x1024xbf16>, vector<1024x512xbf16>, vector<2x512xf32> -> vector<2x512xf32>
    %c0_47 = arith.constant 0 : index
    %c0_48 = arith.constant 0 : index
    %97 = vector.load %arg16[%c0_47, %c0_48] : memref<1x512xf32, #tpu.memory_space<vmem>>, vector<1x512xf32>
    %98 = vector.broadcast %97 : vector<1x512xf32> to vector<2x512xf32>
    %99 = arith.mulf %96, %98 : vector<2x512xf32>
    %c0_49 = arith.constant 0 : index
    %c0_50 = arith.constant 0 : index
    %100 = vector.load %arg17[%c0_49, %c0_50] : memref<1x512xf32, #tpu.memory_space<vmem>>, vector<1x512xf32>
    %101 = vector.broadcast %100 : vector<1x512xf32> to vector<2x512xf32>
    %102 = arith.addf %99, %101 : vector<2x512xf32>
    %cst_51 = arith.constant 0.000000e+00 : f32
    %103 = vector.broadcast %cst_51 : f32 to vector<2x512xf32>
    %104 = arith.maximumf %102, %103 : vector<2x512xf32>
    %c2_i32_52 = arith.constant 2 : i32
    %105 = tpu.memref_slice %arg24[%c2_i32_52] : memref<3x!tpu.dma_semaphore, #tpu.memory_space<semaphore_mem>> -> memref<1x!tpu.dma_semaphore, #tpu.memory_space<semaphore_mem>>
    %106 = tpu.memref_squeeze %105 : memref<1x!tpu.dma_semaphore, #tpu.memory_space<semaphore_mem>> -> memref<!tpu.dma_semaphore, #tpu.memory_space<semaphore_mem>>
    tpu.wait_dma2 semaphore(%106 : memref<!tpu.dma_semaphore, #tpu.memory_space<semaphore_mem>>) src(%arg18 : memref<512x256xbf16, #tpu.memory_space<any>>) dst(%arg23 : memref<512x256xbf16, #tpu.memory_space<vmem>>)
    %107 = arith.truncf %104 : vector<2x512xf32> to vector<2x512xbf16>
    %c0_53 = arith.constant 0 : index
    %c0_54 = arith.constant 0 : index
    %108 = vector.load %arg23[%c0_53, %c0_54] : memref<512x256xbf16, #tpu.memory_space<vmem>>, vector<512x256xbf16>
    %cst_55 = arith.constant dense<0.000000e+00> : vector<2x256xf32>
    %109 = tpu.matmul %107, %108, %cst_55 {dimension_numbers = #tpu.dot_dimension_numbers<[1], [0], [0], [1], [0, 0, 1, 1], [], []>} : vector<2x512xbf16>, vector<512x256xbf16>, vector<2x256xf32> -> vector<2x256xf32>
    %c0_56 = arith.constant 0 : index
    %c0_57 = arith.constant 0 : index
    %110 = vector.load %arg20[%c0_56, %c0_57] : memref<2x256xf32, #tpu.memory_space<vmem>>, vector<2x256xf32>
    tpu.vector_store %arg20[%c0_56, %c0_57], %109 {strides = array<i32>} : memref<2x256xf32, #tpu.memory_space<vmem>>, vector<2x256xf32>,
    return
  }
}

</mosaic_0001>

<llo_original>
// kernel: res50_align_forward.1
$region0: #{res50_align_forward.1}
  #allocation0 [shape = 'u32[]', space=smem, size = 0x4, offset = 0x4, fixed_abs, tag = 'smem constant byte address 0x4 - core index']
  #allocation1 [shape = 'u32[144,128]{1,0:T(1,128)}', space=vmem, size = 0x12000, scoped, tag = 'internal scratch']
  #allocation2 [shape = 'bf16[1024,1024]{1,0:T(16,128)(2,1)}', space=vmem, size = 0x200000, scoped, tag = 'scratch operand']
  #allocation3 [shape = 'bf16[1024,512]{1,0:T(16,128)(2,1)}', space=vmem, size = 0x100000, scoped, tag = 'scratch operand']
  #allocation4 [shape = 'bf16[512,256]{1,0:T(16,128)(2,1)}', space=vmem, size = 0x40000, scoped, tag = 'scratch operand']
  #allocation5 [shape = 's32[3]{0}', space=sflag, size = 0xc, scoped, tag = 'scratch operand']
  #allocation29 [shape = 's32[]', space=sflag, size = 0x4, offset = 0, fixed_abs, tag = 'sflag constant byte address 0x0 - dummy sync flag']
  #allocation31 [shape = 's32[]', space=sflag, size = 0x4, offset = 0, fixed_abs, tag = 'sflag constant byte address 0x0 - dummy sync flag']
  #allocation33 [shape = 's32[]', space=sflag, size = 0x4, offset = 0, fixed_abs, tag = 'sflag constant byte address 0x0 - dummy sync flag']
  %s0 = inlined_call_operand.vmem [shape: f32[2,4,256], index: 0, kind: input, shape index: {}]
  %s1 = inlined_call_operand.vmem [shape: f32[2,1], index: 1, kind: input, shape index: {}]
  %s2 = inlined_call_operand.vmem [shape: f32[4,32,1], index: 2, kind: input, shape index: {}]
  %s3 = inlined_call_operand.vmem [shape: f32[1,32,1], index: 3, kind: input, shape index: {}]
  %s4 = inlined_call_operand.hbm [shape: f32[1,16], index: 4, kind: input, shape index: {}]
  %s5 = inlined_call_operand.hbm [shape: f32[1,16], index: 5, kind: input, shape index: {}]
  %s6 = inlined_call_operand.hbm [shape: f32[1,16], index: 6, kind: input, shape index: {}]
  %s7 = inlined_call_operand.hbm [shape: f32[1,16], index: 7, kind: input, shape index: {}]
  %s8 = inlined_call_operand.hbm [shape: bf16[32,1024], index: 8, kind: input, shape index: {}]
  %s9 = inlined_call_operand.hbm [shape: bf16[16,1024], index: 9, kind: input, shape index: {}]
  %s10 = inlined_call_operand.hbm [shape: f32[1,1024], index: 10, kind: input, shape index: {}]
  %s11 = inlined_call_operand.hbm [shape: f32[1,1024], index: 11, kind: input, shape index: {}]
  %s12 = inlined_call_operand.hbm [shape: bf16[1024,1024], index: 12, kind: input, shape index: {}]
  %s13 = inlined_call_operand.hbm [shape: f32[1,1024], index: 13, kind: input, shape index: {}]
  %s14 = inlined_call_operand.hbm [shape: f32[1,1024], index: 14, kind: input, shape index: {}]
  %s15 = inlined_call_operand.hbm [shape: bf16[1024,512], index: 15, kind: input, shape index: {}]
  %s16 = inlined_call_operand.hbm [shape: f32[1,512], index: 16, kind: input, shape index: {}]
  %s17 = inlined_call_operand.hbm [shape: f32[1,512], index: 17, kind: input, shape index: {}]
  %s18 = inlined_call_operand.hbm [shape: bf16[512,256], index: 18, kind: input, shape index: {}]
  %s19 = inlined_call_operand.hbm [shape: f32[2,1024], index: 19, kind: output, shape index: {0}]
  %s20 = inlined_call_operand.hbm [shape: f32[2,256], index: 20, kind: output, shape index: {1}]
  %21 = xla_tuple %s19, %s20
  %s22 = sld [smem:[#allocation0]]
  $region130: #{res50_align_forward.1} parent=0
    _
  %s24 = ssub.s32 1, %s22
  %s25 = scalar_select 0, %s24, %s22
  $region1: #{res50_align_forward.1} parent=0
    #allocation6 [shape = 'u8[512]{0}', space=vmem, size = 0x400, scoped, tag = 'input window, operand 4, single buffered']
    #allocation7 [shape = 's32[1]{0}', space=sflag, size = 0x4, scoped, tag = 'scoped memory for res50_align_forward.1']
    #allocation8 [shape = 's32[1]{0}', space=sflag, size = 0x4, scoped, tag = 'scoped memory for res50_align_forward.1']
    #allocation9 [shape = 'u8[512]{0}', space=vmem, size = 0x400, scoped, tag = 'input window, operand 5, single buffered']
    #allocation10 [shape = 's32[1]{0}', space=sflag, size = 0x4, scoped, tag = 'scoped memory for res50_align_forward.1']
    #allocation11 [shape = 'u8[512]{0}', space=vmem, size = 0x400, scoped, tag = 'input window, operand 6, single buffered']
    #allocation12 [shape = 'u8[512]{0}', space=vmem, size = 0x400, scoped, tag = 'input window, operand 7, single buffered']
    #allocation13 [shape = 's32[1]{0}', space=sflag, size = 0x4, scoped, tag = 'scoped memory for res50_align_forward.1']
    #allocation14 [shape = 'u8[65536]{0}', space=vmem, size = 0x10000, scoped, tag = 'input window, operand 8, single buffered']
    #allocation15 [shape = 'u8[32768]{0}', space=vmem, size = 0x8000, scoped, tag = 'input window, operand 9, single buffered']
    #allocation16 [shape = 's32[1]{0}', space=sflag, size = 0x4, scoped, tag = 'scoped memory for res50_align_forward.1']
    #allocation17 [shape = 'u8[4096]{0}', space=vmem, size = 0x1000, scoped, tag = 'input window, operand 10, single buffered']
    #allocation18 [shape = 'u8[4096]{0}', space=vmem, size = 0x1000, scoped, tag = 'input window, operand 11, single buffered']
    #allocation19 [shape = 's32[1]{0}', space=sflag, size = 0x4, scoped, tag = 'scoped memory for res50_align_forward.1']
    #allocation20 [shape = 'u8[4096]{0}', space=vmem, size = 0x1000, scoped, tag = 'input window, operand 13, single buffered']
    #allocation21 [shape = 'u8[4096]{0}', space=vmem, size = 0x1000, scoped, tag = 'input window, operand 14, single buffered']
    #allocation22 [shape = 's32[1]{0}', space=sflag, size = 0x4, scoped, tag = 'scoped memory for res50_align_forward.1']
    #allocation23 [shape = 'u8[2048]{0}', space=vmem, size = 0x800, scoped, tag = 'input window, operand 16, single buffered']
    #allocation24 [shape = 'u8[2048]{0}', space=vmem, size = 0x800, scoped, tag = 'input window, operand 17, single buffered']
    #allocation25 [shape = 's32[1]{0}', space=sflag, size = 0x4, scoped, tag = 'scoped memory for res50_align_forward.1']
    #allocation26 [shape = 'u8[8192]{0}', space=vmem, size = 0x2000, scoped, tag = 'output window, operand 0, single buffered']
    #allocation27 [shape = 'u8[2048]{0}', space=vmem, size = 0x800, scoped, tag = 'output window, operand 1, single buffered']
    #allocation28 [shape = 's32[1]{0}', space=sflag, size = 0x4, scoped, tag = 'scoped memory for res50_align_forward.1']
    #allocation30 [shape = 'u32[9]{0}', space=smem, size = 0x24, scoped, tag = 'DMA stride descriptor']
    #allocation32 [shape = 'u32[9]{0}', space=smem, size = 0x24, scoped, tag = 'DMA stride descriptor']
    #allocation34 [shape = 'u32[9]{0}', space=smem, size = 0x24, scoped, tag = 'DMA stride descriptor']
    %26 = vsyncpa [#allocation7], 0
    %27 = vsyncpa [#allocation10], 0
    %28 = vsyncpa [#allocation13], 0
    %29 = vsyncpa [#allocation16], 0
    %30 = vsyncpa [#allocation19], 0
    %31 = vsyncpa [#allocation22], 0
    %32 = vsyncpa [#allocation25], 0
    %33 = vsyncpa [#allocation8], 0
    %34 = vsyncpa [#allocation28], 0
    // Predicated region
    $region2: #{res50_align_forward.1} parent=1 // pred_check
      _
    $region3: #{res50_align_forward.1} parent=1 // pred_check_branch
      %36 = sbr.rel (0) target = $region5
    $region4: #{res50_align_forward.1} parent=1 // pred_region
      _
    $region5: #{res50_align_forward.1} parent=1 // pred_fallthru
      _
    // Predicated region
    $region6: #{res50_align_forward.1} parent=1 // pred_check
      _
    $region7: #{res50_align_forward.1} parent=1 // pred_check_branch
      %38 = sbr.rel (0) target = $region9
    $region8: #{res50_align_forward.1} parent=1 // pred_region
      _
    $region9: #{res50_align_forward.1} parent=1 // pred_fallthru
      _
    // Predicated region
    $region10: #{res50_align_forward.1} parent=1 // pred_check
      _
    $region11: #{res50_align_forward.1} parent=1 // pred_check_branch
      %40 = sbr.rel (0) target = $region13
    $region12: #{res50_align_forward.1} parent=1 // pred_region
      _
    $region13: #{res50_align_forward.1} parent=1 // pred_fallthru
      _
    // Predicated region
    $region14: #{res50_align_forward.1} parent=1 // pred_check
      _
    $region15: #{res50_align_forward.1} parent=1 // pred_check_branch
      %42 = sbr.rel (0) target = $region17
    $region16: #{res50_align_forward.1} parent=1 // pred_region
      _
    $region17: #{res50_align_forward.1} parent=1 // pred_fallthru
      _
    // Predicated region
    $region18: #{res50_align_forward.1} parent=1 // pred_check
      _
    $region19: #{res50_align_forward.1} parent=1 // pred_check_branch
      %44 = sbr.rel (0) target = $region21
    $region20: #{res50_align_forward.1} parent=1 // pred_region
      %s46 = ssub.s32 16, 16
      %47 = vsyncadd [#allocation7], %s46
      %s49 = sshll.u32 [#allocation6], 4
      %s50 = int_to_ptr.vmem [resolvable:$true] %s49
      %52 = dma.hbm_to_vmem [thread:$0]  %s4, 16, %s50, [#allocation7]
    $region21: #{res50_align_forward.1} parent=1 // pred_fallthru
      _
    // Predicated region
    $region22: #{res50_align_forward.1} parent=1 // pred_check
      _
    $region23: #{res50_align_forward.1} parent=1 // pred_check_branch
      %54 = sbr.rel (0) target = $region25
    $region24: #{res50_align_forward.1} parent=1 // pred_region
      %s56 = ssub.s32 16, 16
      %57 = vsyncadd [#allocation10], %s56
      %s59 = sshll.u32 [#allocation9], 4
      %s60 = int_to_ptr.vmem [resolvable:$true] %s59
      %62 = dma.hbm_to_vmem [thread:$0]  %s5, 16, %s60, [#allocation10]
    $region25: #{res50_align_forward.1} parent=1 // pred_fallthru
      _
    // Predicated region
    $region26: #{res50_align_forward.1} parent=1 // pred_check
      _
    $region27: #{res50_align_forward.1} parent=1 // pred_check_branch
      %64 = sbr.rel (0) target = $region29
    $region28: #{res50_align_forward.1} parent=1 // pred_region
      %s66 = ssub.s32 16, 16
      %67 = vsyncadd [#allocation10], %s66
      %s69 = sshll.u32 [#allocation11], 4
      %s70 = int_to_ptr.vmem [resolvable:$true] %s69
      %72 = dma.hbm_to_vmem [thread:$0]  %s6, 16, %s70, [#allocation10]
    $region29: #{res50_align_forward.1} parent=1 // pred_fallthru
      _
    // Predicated region
    $region30: #{res50_align_forward.1} parent=1 // pred_check
      _
    $region31: #{res50_align_forward.1} parent=1 // pred_check_branch
      %74 = sbr.rel (0) target = $region33
    $region32: #{res50_align_forward.1} parent=1 // pred_region
      %s76 = ssub.s32 16, 16
      %77 = vsyncadd [#allocation13], %s76
      %s79 = sshll.u32 [#allocation12], 4
      %s80 = int_to_ptr.vmem [resolvable:$true] %s79
      %82 = dma.hbm_to_vmem [thread:$0]  %s7, 16, %s80, [#allocation13]
    $region33: #{res50_align_forward.1} parent=1 // pred_fallthru
      _
    // Predicated region
    $region34: #{res50_align_forward.1} parent=1 // pred_check
      _
    $region35: #{res50_align_forward.1} parent=1 // pred_check_branch
      %84 = sbr.rel (0) target = $region37
    $region36: #{res50_align_forward.1} parent=1 // pred_region
      %s86 = ssub.s32 2048, 2048
      %87 = vsyncadd [#allocation13], %s86
      %s88 = sshll.u32 [#allocation14], 4
      %s89 = int_to_ptr.vmem [resolvable:$true] %s88
      %94 = dma.hbm_to_vmem [thread:$0]  %s8, 2048, %s89, [#allocation13], 512, 512, 32
    $region37: #{res50_align_forward.1} parent=1 // pred_fallthru
      _
    // Predicated region
    $region38: #{res50_align_forward.1} parent=1 // pred_check
      _
    $region39: #{res50_align_forward.1} parent=1 // pred_check_branch
      %96 = sbr.rel (0) target = $region41
    $region40: #{res50_align_forward.1} parent=1 // pred_region
      %s98 = ssub.s32 1024, 1024
      %99 = vsyncadd [#allocation16], %s98
      %s100 = sshll.u32 [#allocation15], 4
      %s101 = int_to_ptr.vmem [resolvable:$true] %s100
      %106 = dma.hbm_to_vmem [thread:$0]  %s9, 1024, %s101, [#allocation16], 512, 512, 32
    $region41: #{res50_align_forward.1} parent=1 // pred_fallthru
      _
    // Predicated region
    $region42: #{res50_align_forward.1} parent=1 // pred_check
      _
    $region43: #{res50_align_forward.1} parent=1 // pred_check_branch
      %108 = sbr.rel (0) target = $region45
    $region44: #{res50_align_forward.1} parent=1 // pred_region
      %s110 = ssub.s32 128, 128
      %111 = vsyncadd [#allocation16], %s110
      %s113 = sshll.u32 [#allocation17], 4
      %s114 = int_to_ptr.vmem [resolvable:$true] %s113
      %116 = dma.hbm_to_vmem [thread:$0]  %s10, 128, %s114, [#allocation16]
    $region45: #{res50_align_forward.1} parent=1 // pred_fallthru
      _
    // Predicated region
    $region46: #{res50_align_forward.1} parent=1 // pred_check
      _
    $region47: #{res50_align_forward.1} parent=1 // pred_check_branch
      %118 = sbr.rel (0) target = $region49
    $region48: #{res50_align_forward.1} parent=1 // pred_region
      %s120 = ssub.s32 128, 128
      %121 = vsyncadd [#allocation19], %s120
      %s123 = sshll.u32 [#allocation18], 4
      %s124 = int_to_ptr.vmem [resolvable:$true] %s123
      %126 = dma.hbm_to_vmem [thread:$0]  %s11, 128, %s124, [#allocation19]
    $region49: #{res50_align_forward.1} parent=1 // pred_fallthru
      _
    // Predicated region
    $region50: #{res50_align_forward.1} parent=1 // pred_check
      _
    $region51: #{res50_align_forward.1} parent=1 // pred_check_branch
      %128 = sbr.rel (0) target = $region53
    $region52: #{res50_align_forward.1} parent=1 // pred_region
      %s130 = ssub.s32 128, 128
      %131 = vsyncadd [#allocation19], %s130
      %s133 = sshll.u32 [#allocation20], 4
      %s134 = int_to_ptr.vmem [resolvable:$true] %s133
      %136 = dma.hbm_to_vmem [thread:$0]  %s13, 128, %s134, [#allocation19]
    $region53: #{res50_align_forward.1} parent=1 // pred_fallthru
      _
    // Predicated region
    $region54: #{res50_align_forward.1} parent=1 // pred_check
      _
    $region55: #{res50_align_forward.1} parent=1 // pred_check_branch
      %138 = sbr.rel (0) target = $region57
    $region56: #{res50_align_forward.1} parent=1 // pred_region
      %s140 = ssub.s32 128, 128
      %141 = vsyncadd [#allocation22], %s140
      %s143 = sshll.u32 [#allocation21], 4
      %s144 = int_to_ptr.vmem [resolvable:$true] %s143
      %146 = dma.hbm_to_vmem [thread:$0]  %s14, 128, %s144, [#allocation22]
    $region57: #{res50_align_forward.1} parent=1 // pred_fallthru
      _
    // Predicated region
    $region58: #{res50_align_forward.1} parent=1 // pred_check
      _
    $region59: #{res50_align_forward.1} parent=1 // pred_check_branch
      %148 = sbr.rel (0) target = $region61
    $region60: #{res50_align_forward.1} parent=1 // pred_region
      %s150 = ssub.s32 64, 64
      %151 = vsyncadd [#allocation22], %s150
      %s153 = sshll.u32 [#allocation23], 4
      %s154 = int_to_ptr.vmem [resolvable:$true] %s153
      %156 = dma.hbm_to_vmem [thread:$0]  %s16, 64, %s154, [#allocation22]
    $region61: #{res50_align_forward.1} parent=1 // pred_fallthru
      _
    // Predicated region
    $region62: #{res50_align_forward.1} parent=1 // pred_check
      _
    $region63: #{res50_align_forward.1} parent=1 // pred_check_branch
      %158 = sbr.rel (0) target = $region65
    $region64: #{res50_align_forward.1} parent=1 // pred_region
      %s160 = ssub.s32 64, 64
      %161 = vsyncadd [#allocation25], %s160
      %s163 = sshll.u32 [#allocation24], 4
      %s164 = int_to_ptr.vmem [resolvable:$true] %s163
      %166 = dma.hbm_to_vmem [thread:$0]  %s17, 64, %s164, [#allocation25]
    $region65: #{res50_align_forward.1} parent=1 // pred_fallthru
      _
    // Predicated region
    $region66: #{res50_align_forward.1} parent=1 // pred_check
      _
    $region67: #{res50_align_forward.1} parent=1 // pred_check_branch
      %168 = sbr.rel (0) target = $region69
    $region68: #{res50_align_forward.1} parent=1 // pred_region
      %169 = dma.done [#allocation7], 16
    $region69: #{res50_align_forward.1} parent=1 // pred_fallthru
      _
    // Predicated region
    $region70: #{res50_align_forward.1} parent=1 // pred_check
      _
    $region71: #{res50_align_forward.1} parent=1 // pred_check_branch
      %171 = sbr.rel (0) target = $region73
    $region72: #{res50_align_forward.1} parent=1 // pred_region
      %172 = dma.done [#allocation10], 16
    $region73: #{res50_align_forward.1} parent=1 // pred_fallthru
      _
    // Predicated region
    $region74: #{res50_align_forward.1} parent=1 // pred_check
      _
    $region75: #{res50_align_forward.1} parent=1 // pred_check_branch
      %174 = sbr.rel (0) target = $region77
    $region76: #{res50_align_forward.1} parent=1 // pred_region
      %175 = dma.done [#allocation10], 16
    $region77: #{res50_align_forward.1} parent=1 // pred_fallthru
      _
    // Predicated region
    $region78: #{res50_align_forward.1} parent=1 // pred_check
      _
    $region79: #{res50_align_forward.1} parent=1 // pred_check_branch
      %177 = sbr.rel (0) target = $region81
    $region80: #{res50_align_forward.1} parent=1 // pred_region
      %178 = dma.done [#allocation13], 16
    $region81: #{res50_align_forward.1} parent=1 // pred_fallthru
      _
    // Predicated region
    $region82: #{res50_align_forward.1} parent=1 // pred_check
      _
    $region83: #{res50_align_forward.1} parent=1 // pred_check_branch
      %180 = sbr.rel (0) target = $region85
    $region84: #{res50_align_forward.1} parent=1 // pred_region
      %181 = dma.done [#allocation13], 2048
    $region85: #{res50_align_forward.1} parent=1 // pred_fallthru
      _
    // Predicated region
    $region86: #{res50_align_forward.1} parent=1 // pred_check
      _
    $region87: #{res50_align_forward.1} parent=1 // pred_check_branch
      %183 = sbr.rel (0) target = $region89
    $region88: #{res50_align_forward.1} parent=1 // pred_region
      %184 = dma.done [#allocation16], 1024
    $region89: #{res50_align_forward.1} parent=1 // pred_fallthru
      _
    // Predicated region
    $region90: #{res50_align_forward.1} parent=1 // pred_check
      _
    $region91: #{res50_align_forward.1} parent=1 // pred_check_branch
      %186 = sbr.rel (0) target = $region93
    $region92: #{res50_align_forward.1} parent=1 // pred_region
      %187 = dma.done [#allocation16], 128
    $region93: #{res50_align_forward.1} parent=1 // pred_fallthru
      _
    // Predicated region
    $region94: #{res50_align_forward.1} parent=1 // pred_check
      _
    $region95: #{res50_align_forward.1} parent=1 // pred_check_branch
      %189 = sbr.rel (0) target = $region97
    $region96: #{res50_align_forward.1} parent=1 // pred_region
      %190 = dma.done [#allocation19], 128
    $region97: #{res50_align_forward.1} parent=1 // pred_fallthru
      _
    // Predicated region
    $region98: #{res50_align_forward.1} parent=1 // pred_check
      _
    $region99: #{res50_align_forward.1} parent=1 // pred_check_branch
      %192 = sbr.rel (0) target = $region101
    $region100: #{res50_align_forward.1} parent=1 // pred_region
      %193 = dma.done [#allocation19], 128
    $region101: #{res50_align_forward.1} parent=1 // pred_fallthru
      _
    // Predicated region
    $region102: #{res50_align_forward.1} parent=1 // pred_check
      _
    $region103: #{res50_align_forward.1} parent=1 // pred_check_branch
      %195 = sbr.rel (0) target = $region105
    $region104: #{res50_align_forward.1} parent=1 // pred_region
      %196 = dma.done [#allocation22], 128
    $region105: #{res50_align_forward.1} parent=1 // pred_fallthru
      _
    // Predicated region
    $region106: #{res50_align_forward.1} parent=1 // pred_check
      _
    $region107: #{res50_align_forward.1} parent=1 // pred_check_branch
      %198 = sbr.rel (0) target = $region109
    $region108: #{res50_align_forward.1} parent=1 // pred_region
      %199 = dma.done [#allocation22], 64
    $region109: #{res50_align_forward.1} parent=1 // pred_fallthru
      _
    // Predicated region
    $region110: #{res50_align_forward.1} parent=1 // pred_check
      _
    $region111: #{res50_align_forward.1} parent=1 // pred_check_branch
      %201 = sbr.rel (0) target = $region113
    $region112: #{res50_align_forward.1} parent=1 // pred_region
      %202 = dma.done [#allocation25], 64
    $region113: #{res50_align_forward.1} parent=1 // pred_fallthru
      _
    %s205 = sshll.u32 1, 14
    %s206 = sxor.u32 4294967295, %s205
    %s208 = sld [smem:[#allocation0]]
    %s209 = sadd.s32 2, %s208
    %s211 = sshll.u32 7, 26
    %s212 = sxor.u32 4294967295, %s211
    %s213 = sand.u32 0, %s212
    %s214 = sshll.u32 %s209, 26
    %s215 = sor.u32 %s213, %s214
    %s216 = sshll.u32 [#allocation2], 4
    %s217 = int_to_ptr.vmem [resolvable:$true] %s216
    %220 = sst [smem:[#allocation30]] 1024
    %s221 = scalar_lea.smem [#allocation30], 1
    %222 = sst [smem:[%s221]] 1024
    %s223 = scalar_lea.smem [#allocation30], 2
    %224 = sst [smem:[%s223]] 8
    %s225 = scalar_lea.smem [#allocation30], 3
    %226 = sst [smem:[%s225]] 64
    %s227 = scalar_lea.smem [#allocation30], 4
    %228 = sst [smem:[%s227]] 128
    %s229 = scalar_lea.smem [#allocation30], 5
    %230 = sst [smem:[%s229]] 2
    %s231 = scalar_lea.smem [#allocation30], 6
    %232 = sst [smem:[%s231]] 512
    %s233 = scalar_lea.smem [#allocation30], 7
    %234 = sst [smem:[%s233]] 64
    %s235 = scalar_lea.smem [#allocation30], 8
    %236 = sst [smem:[%s235]] 4
    %238 = dma.general %s12, 65536, %s217, [#allocation5], [#allocation29], [#allocation30], %s215, 0
    %s239 = scalar_lea.sflag [#allocation5], 1
    %s241 = sshll.u32 1, 14
    %s242 = sxor.u32 4294967295, %s241
    %s244 = sadd.s32 2, %s208
    %s246 = sshll.u32 7, 26
    %s247 = sxor.u32 4294967295, %s246
    %s248 = sand.u32 0, %s247
    %s249 = sshll.u32 %s244, 26
    %s250 = sor.u32 %s248, %s249
    %s251 = sshll.u32 [#allocation3], 4
    %s252 = int_to_ptr.vmem [resolvable:$true] %s251
    %255 = sst [smem:[#allocation32]] 512
    %s256 = scalar_lea.smem [#allocation32], 1
    %257 = sst [smem:[%s256]] 512
    %s258 = scalar_lea.smem [#allocation32], 2
    %259 = sst [smem:[%s258]] 4
    %s260 = scalar_lea.smem [#allocation32], 3
    %261 = sst [smem:[%s260]] 64
    %s262 = scalar_lea.smem [#allocation32], 4
    %263 = sst [smem:[%s262]] 128
    %s264 = scalar_lea.smem [#allocation32], 5
    %265 = sst [smem:[%s264]] 2
    %s266 = scalar_lea.smem [#allocation32], 6
    %267 = sst [smem:[%s266]] 256
    %s268 = scalar_lea.smem [#allocation32], 7
    %269 = sst [smem:[%s268]] 64
    %s270 = scalar_lea.smem [#allocation32], 8
    %271 = sst [smem:[%s270]] 4
    %273 = dma.general %s15, 32768, %s252, %s239, [#allocation31], [#allocation32], %s250, 0
    %s274 = scalar_lea.sflag [#allocation5], 2
    %s276 = sshll.u32 1, 14
    %s277 = sxor.u32 4294967295, %s276
    %s279 = sadd.s32 2, %s208
    %s281 = sshll.u32 7, 26
    %s282 = sxor.u32 4294967295, %s281
    %s283 = sand.u32 0, %s282
    %s284 = sshll.u32 %s279, 26
    %s285 = sor.u32 %s283, %s284
    %s286 = sshll.u32 [#allocation4], 4
    %s287 = int_to_ptr.vmem [resolvable:$true] %s286
    %290 = sst [smem:[#allocation34]] 256
    %s291 = scalar_lea.smem [#allocation34], 1
    %292 = sst [smem:[%s291]] 256
    %s293 = scalar_lea.smem [#allocation34], 2
    %294 = sst [smem:[%s293]] 2
    %s295 = scalar_lea.smem [#allocation34], 3
    %296 = sst [smem:[%s295]] 64
    %s297 = scalar_lea.smem [#allocation34], 4
    %298 = sst [smem:[%s297]] 128
    %s299 = scalar_lea.smem [#allocation34], 5
    %300 = sst [smem:[%s299]] 2
    %s301 = scalar_lea.smem [#allocation34], 6
    %302 = sst [smem:[%s301]] 128
    %s303 = scalar_lea.smem [#allocation34], 7
    %304 = sst [smem:[%s303]] 64
    %s305 = scalar_lea.smem [#allocation34], 8
    %306 = sst [smem:[%s305]] 4
    %308 = dma.general %s18, 8192, %s287, %s274, [#allocation33], [#allocation34], %s285, 0
    %v309 = vld [vmem:[%s0] sm:$0xff]
    %v310 = vld [vmem:[%s0 + $0x8] sm:$0xff]
    %v311 = vld [vmem:[%s2] sm:$0xff]
    %v312 = vld [vmem:[%s2 + $0x8] sm:$0xff]
    %v313 = vld [vmem:[%s2 + $0x10] sm:$0xff]
    %v314 = vld [vmem:[%s2 + $0x18] sm:$0xff]
    %v315 = vld [vmem:[%s2 + $0x20] sm:$0xff]
    %v316 = vld [vmem:[%s2 + $0x28] sm:$0xff]
    %v317 = vld [vmem:[%s2 + $0x30] sm:$0xff]
    %v318 = vld [vmem:[%s2 + $0x38] sm:$0xff]
    %v319 = vld [vmem:[%s2 + $0x40] sm:$0xff]
    %v320 = vld [vmem:[%s2 + $0x48] sm:$0xff]
    %v321 = vld [vmem:[%s2 + $0x50] sm:$0xff]
    %v322 = vld [vmem:[%s2 + $0x58] sm:$0xff]
    %v323 = vld [vmem:[%s2 + $0x60] sm:$0xff]
    %v324 = vld [vmem:[%s2 + $0x68] sm:$0xff]
    %v325 = vld [vmem:[%s2 + $0x70] sm:$0xff]
    %v326 = vld [vmem:[%s2 + $0x78] sm:$0xff]
    %v329 = vlaneseq
    %v330 = vshrl.u32 %v329, 7
    %v331 = vsub.s32 0, %v330
    %v332 = vrot.slane %v309, %v331
    %v333 = vlaneseq
    %v334 = vshrl.u32 %v333, 7
    %v335 = vsub.s32 4, %v334
    %v336 = vrot.slane %v309, %v335
    %v337 = vlaneseq
    %v338 = vshrl.u32 %v337, 7
    %v339 = vsub.s32 0, %v338
    %v340 = vrot.slane %v310, %v339
    %v341 = vlaneseq
    %v342 = vshrl.u32 %v341, 7
    %v343 = vsub.s32 4, %v342
    %v344 = vrot.slane %v310, %v343
    %v349 = vlaneseq
    %v350 = vshrl.u32 %v349, 7
    %v351 = vsub.s32 0, %v350
    %v352 = vrot.slane %v332, %v351
    %v353 = vlaneseq
    %v354 = vshrl.u32 %v353, 7
    %v355 = vsub.s32 0, %v354
    %v356 = vrot.slane %v336, %v355
    %v357 = vlaneseq
    %v358 = vshrl.u32 %v357, 7
    %v359 = vsub.s32 0, %v358
    %v360 = vrot.slane %v340, %v359
    %v361 = vlaneseq
    %v362 = vshrl.u32 %v361, 7
    %v363 = vsub.s32 0, %v362
    %v364 = vrot.slane %v344, %v363
    %366 = vset.pattern.permute.xlu0 0
    %367 = vperm.xlu0 %366, %v311
    %v368 = vpop.permute.xlu0 %367
    %371 = vset.pattern.permute.xlu0 0
    %372 = vperm.xlu0 %371, %v312
    %v373 = vpop.permute.xlu0 %372
    %376 = vset.pattern.permute.xlu0 0
    %377 = vperm.xlu0 %376, %v313
    %v378 = vpop.permute.xlu0 %377
    %381 = vset.pattern.permute.xlu0 0
    %382 = vperm.xlu0 %381, %v314
    %v383 = vpop.permute.xlu0 %382
    %v385 = vmul.f32 %v352, %v368
    %v386 = vmul.f32 %v356, %v368
    %v387 = vmul.f32 %v352, %v373
    %v388 = vmul.f32 %v356, %v373
    %v389 = vmul.f32 %v352, %v378
    %v390 = vmul.f32 %v356, %v378
    %v391 = vmul.f32 %v352, %v383
    %v392 = vmul.f32 %v356, %v383
    %v393 = vmul.f32 %v360, %v368
    %v394 = vmul.f32 %v364, %v368
    %v395 = vmul.f32 %v360, %v373
    %v396 = vmul.f32 %v364, %v373
    %v397 = vmul.f32 %v360, %v378
    %v398 = vmul.f32 %v364, %v378
    %v399 = vmul.f32 %v360, %v383
    %v400 = vmul.f32 %v364, %v383
    %v401 = vlaneseq
    %v402 = vshrl.u32 %v401, 7
    %v403 = vsub.s32 1, %v402
    %v404 = vrot.slane %v309, %v403
    %v405 = vlaneseq
    %v406 = vshrl.u32 %v405, 7
    %v407 = vsub.s32 5, %v406
    %v408 = vrot.slane %v309, %v407
    %v409 = vlaneseq
    %v410 = vshrl.u32 %v409, 7
    %v411 = vsub.s32 1, %v410
    %v412 = vrot.slane %v310, %v411
    %v413 = vlaneseq
    %v414 = vshrl.u32 %v413, 7
    %v415 = vsub.s32 5, %v414
    %v416 = vrot.slane %v310, %v415
    %v421 = vlaneseq
    %v422 = vshrl.u32 %v421, 7
    %v423 = vsub.s32 1, %v422
    %v424 = vrot.slane %v404, %v423
    %v425 = vlaneseq
    %v426 = vshrl.u32 %v425, 7
    %v427 = vsub.s32 1, %v426
    %v428 = vrot.slane %v408, %v427
    %v429 = vlaneseq
    %v430 = vshrl.u32 %v429, 7
    %v431 = vsub.s32 1, %v430
    %v432 = vrot.slane %v412, %v431
    %v433 = vlaneseq
    %v434 = vshrl.u32 %v433, 7
    %v435 = vsub.s32 1, %v434
    %v436 = vrot.slane %v416, %v435
    %438 = vset.pattern.permute.xlu0 0
    %439 = vperm.xlu0 %438, %v315
    %v440 = vpop.permute.xlu0 %439
    %443 = vset.pattern.permute.xlu0 0
    %444 = vperm.xlu0 %443, %v316
    %v445 = vpop.permute.xlu0 %444
    %448 = vset.pattern.permute.xlu0 0
    %449 = vperm.xlu0 %448, %v317
    %v450 = vpop.permute.xlu0 %449
    %453 = vset.pattern.permute.xlu0 0
    %454 = vperm.xlu0 %453, %v318
    %v455 = vpop.permute.xlu0 %454
    %v457 = vmul.f32 %v424, %v440
    %v458 = vmul.f32 %v428, %v440
    %v459 = vmul.f32 %v424, %v445
    %v460 = vmul.f32 %v428, %v445
    %v461 = vmul.f32 %v424, %v450
    %v462 = vmul.f32 %v428, %v450
    %v463 = vmul.f32 %v424, %v455
    %v464 = vmul.f32 %v428, %v455
    %v465 = vmul.f32 %v432, %v440
    %v466 = vmul.f32 %v436, %v440
    %v467 = vmul.f32 %v432, %v445
    %v468 = vmul.f32 %v436, %v445
    %v469 = vmul.f32 %v432, %v450
    %v470 = vmul.f32 %v436, %v450
    %v471 = vmul.f32 %v432, %v455
    %v472 = vmul.f32 %v436, %v455
    %v473 = vadd.f32 %v385, %v457
    %v474 = vadd.f32 %v386, %v458
    %v475 = vadd.f32 %v387, %v459
    %v476 = vadd.f32 %v388, %v460
    %v477 = vadd.f32 %v389, %v461
    %v478 = vadd.f32 %v390, %v462
    %v479 = vadd.f32 %v391, %v463
    %v480 = vadd.f32 %v392, %v464
    %v481 = vadd.f32 %v393, %v465
    %v482 = vadd.f32 %v394, %v466
    %v483 = vadd.f32 %v395, %v467
    %v484 = vadd.f32 %v396, %v468
    %v485 = vadd.f32 %v397, %v469
    %v486 = vadd.f32 %v398, %v470
    %v487 = vadd.f32 %v399, %v471
    %v488 = vadd.f32 %v400, %v472
    %v489 = vlaneseq
    %v490 = vshrl.u32 %v489, 7
    %v491 = vsub.s32 2, %v490
    %v492 = vrot.slane %v309, %v491
    %v493 = vlaneseq
    %v494 = vshrl.u32 %v493, 7
    %v495 = vsub.s32 6, %v494
    %v496 = vrot.slane %v309, %v495
    %v497 = vlaneseq
    %v498 = vshrl.u32 %v497, 7
    %v499 = vsub.s32 2, %v498
    %v500 = vrot.slane %v310, %v499
    %v501 = vlaneseq
    %v502 = vshrl.u32 %v501, 7
    %v503 = vsub.s32 6, %v502
    %v504 = vrot.slane %v310, %v503
    %v509 = vlaneseq
    %v510 = vshrl.u32 %v509, 7
    %v511 = vsub.s32 2, %v510
    %v512 = vrot.slane %v492, %v511
    %v513 = vlaneseq
    %v514 = vshrl.u32 %v513, 7
    %v515 = vsub.s32 2, %v514
    %v516 = vrot.slane %v496, %v515
    %v517 = vlaneseq
    %v518 = vshrl.u32 %v517, 7
    %v519 = vsub.s32 2, %v518
    %v520 = vrot.slane %v500, %v519
    %v521 = vlaneseq
    %v522 = vshrl.u32 %v521, 7
    %v523 = vsub.s32 2, %v522
    %v524 = vrot.slane %v504, %v523
    %526 = vset.pattern.permute.xlu0 0
    %527 = vperm.xlu0 %526, %v319
    %v528 = vpop.permute.xlu0 %527
    %531 = vset.pattern.permute.xlu0 0
    %532 = vperm.xlu0 %531, %v320
    %v533 = vpop.permute.xlu0 %532
    %536 = vset.pattern.permute.xlu0 0
    %537 = vperm.xlu0 %536, %v321
    %v538 = vpop.permute.xlu0 %537
    %541 = vset.pattern.permute.xlu0 0
    %542 = vperm.xlu0 %541, %v322
    %v543 = vpop.permute.xlu0 %542
    %v545 = vmul.f32 %v512, %v528
    %v546 = vmul.f32 %v516, %v528
    %v547 = vmul.f32 %v512, %v533
    %v548 = vmul.f32 %v516, %v533
    %v549 = vmul.f32 %v512, %v538
    %v550 = vmul.f32 %v516, %v538
    %v551 = vmul.f32 %v512, %v543
    %v552 = vmul.f32 %v516, %v543
    %v553 = vmul.f32 %v520, %v528
    %v554 = vmul.f32 %v524, %v528
    %v555 = vmul.f32 %v520, %v533
    %v556 = vmul.f32 %v524, %v533
    %v557 = vmul.f32 %v520, %v538
    %v558 = vmul.f32 %v524, %v538
    %v559 = vmul.f32 %v520, %v543
    %v560 = vmul.f32 %v524, %v543
    %v561 = vadd.f32 %v473, %v545
    %v562 = vadd.f32 %v474, %v546
    %v563 = vadd.f32 %v475, %v547
    %v564 = vadd.f32 %v476, %v548
    %v565 = vadd.f32 %v477, %v549
    %v566 = vadd.f32 %v478, %v550
    %v567 = vadd.f32 %v479, %v551
    %v568 = vadd.f32 %v480, %v552
    %v569 = vadd.f32 %v481, %v553
    %v570 = vadd.f32 %v482, %v554
    %v571 = vadd.f32 %v483, %v555
    %v572 = vadd.f32 %v484, %v556
    %v573 = vadd.f32 %v485, %v557
    %v574 = vadd.f32 %v486, %v558
    %v575 = vadd.f32 %v487, %v559
    %v576 = vadd.f32 %v488, %v560
    %v577 = vlaneseq
    %v578 = vshrl.u32 %v577, 7
    %v579 = vsub.s32 3, %v578
    %v580 = vrot.slane %v309, %v579
    %v581 = vlaneseq
    %v582 = vshrl.u32 %v581, 7
    %v583 = vsub.s32 7, %v582
    %v584 = vrot.slane %v309, %v583
    %v585 = vlaneseq
    %v586 = vshrl.u32 %v585, 7
    %v587 = vsub.s32 3, %v586
    %v588 = vrot.slane %v310, %v587
    %v589 = vlaneseq
    %v590 = vshrl.u32 %v589, 7
    %v591 = vsub.s32 7, %v590
    %v592 = vrot.slane %v310, %v591
    %v597 = vlaneseq
    %v598 = vshrl.u32 %v597, 7
    %v599 = vsub.s32 3, %v598
    %v600 = vrot.slane %v580, %v599
    %v601 = vlaneseq
    %v602 = vshrl.u32 %v601, 7
    %v603 = vsub.s32 3, %v602
    %v604 = vrot.slane %v584, %v603
    %v605 = vlaneseq
    %v606 = vshrl.u32 %v605, 7
    %v607 = vsub.s32 3, %v606
    %v608 = vrot.slane %v588, %v607
    %v609 = vlaneseq
    %v610 = vshrl.u32 %v609, 7
    %v611 = vsub.s32 3, %v610
    %v612 = vrot.slane %v592, %v611
    %614 = vset.pattern.permute.xlu0 0
    %615 = vperm.xlu0 %614, %v323
    %v616 = vpop.permute.xlu0 %615
    %619 = vset.pattern.permute.xlu0 0
    %620 = vperm.xlu0 %619, %v324
    %v621 = vpop.permute.xlu0 %620
    %624 = vset.pattern.permute.xlu0 0
    %625 = vperm.xlu0 %624, %v325
    %v626 = vpop.permute.xlu0 %625
    %629 = vset.pattern.permute.xlu0 0
    %630 = vperm.xlu0 %629, %v326
    %v631 = vpop.permute.xlu0 %630
    %v633 = vmul.f32 %v600, %v616
    %v634 = vmul.f32 %v604, %v616
    %v635 = vmul.f32 %v600, %v621
    %v636 = vmul.f32 %v604, %v621
    %v637 = vmul.f32 %v600, %v626
    %v638 = vmul.f32 %v604, %v626
    %v639 = vmul.f32 %v600, %v631
    %v640 = vmul.f32 %v604, %v631
    %v641 = vmul.f32 %v608, %v616
    %v642 = vmul.f32 %v612, %v616
    %v643 = vmul.f32 %v608, %v621
    %v644 = vmul.f32 %v612, %v621
    %v645 = vmul.f32 %v608, %v626
    %v646 = vmul.f32 %v612, %v626
    %v647 = vmul.f32 %v608, %v631
    %v648 = vmul.f32 %v612, %v631
    %v649 = vadd.f32 %v561, %v633
    %v650 = vadd.f32 %v562, %v634
    %v651 = vadd.f32 %v563, %v635
    %v652 = vadd.f32 %v564, %v636
    %v653 = vadd.f32 %v565, %v637
    %v654 = vadd.f32 %v566, %v638
    %v655 = vadd.f32 %v567, %v639
    %v656 = vadd.f32 %v568, %v640
    %v657 = vadd.f32 %v569, %v641
    %v658 = vadd.f32 %v570, %v642
    %v659 = vadd.f32 %v571, %v643
    %v660 = vadd.f32 %v572, %v644
    %v661 = vadd.f32 %v573, %v645
    %v662 = vadd.f32 %v574, %v646
    %v663 = vadd.f32 %v575, %v647
    %v664 = vadd.f32 %v576, %v648
    %v665 = vld [vmem:[%s3] sm:$0xff]
    %v666 = vld [vmem:[%s3 + $0x8] sm:$0xff]
    %v667 = vld [vmem:[%s3 + $0x10] sm:$0xff]
    %v668 = vld [vmem:[%s3 + $0x18] sm:$0xff]
    %670 = vset.pattern.permute.xlu0 0
    %671 = vperm.xlu0 %670, %v665
    %v672 = vpop.permute.xlu0 %671
    %675 = vset.pattern.permute.xlu0 0
    %676 = vperm.xlu0 %675, %v666
    %v677 = vpop.permute.xlu0 %676
    %680 = vset.pattern.permute.xlu0 0
    %681 = vperm.xlu0 %680, %v667
    %v682 = vpop.permute.xlu0 %681
    %685 = vset.pattern.permute.xlu0 0
    %686 = vperm.xlu0 %685, %v668
    %v687 = vpop.permute.xlu0 %686
    %v689 = vadd.f32 %v649, %v672
    %v690 = vadd.f32 %v650, %v672
    %v691 = vadd.f32 %v651, %v677
    %v692 = vadd.f32 %v652, %v677
    %v693 = vadd.f32 %v653, %v682
    %v694 = vadd.f32 %v654, %v682
    %v695 = vadd.f32 %v655, %v687
    %v696 = vadd.f32 %v656, %v687
    %v697 = vadd.f32 %v657, %v672
    %v698 = vadd.f32 %v658, %v672
    %v699 = vadd.f32 %v659, %v677
    %v700 = vadd.f32 %v660, %v677
    %v701 = vadd.f32 %v661, %v682
    %v702 = vadd.f32 %v662, %v682
    %v703 = vadd.f32 %v663, %v687
    %v704 = vadd.f32 %v664, %v687
    %v705 = vmax.f32 %v689, 0.0
    %v706 = vmax.f32 %v690, 0.0
    %v707 = vmax.f32 %v691, 0.0
    %v708 = vmax.f32 %v692, 0.0
    %v709 = vmax.f32 %v693, 0.0
    %v710 = vmax.f32 %v694, 0.0
    %v711 = vmax.f32 %v695, 0.0
    %v712 = vmax.f32 %v696, 0.0
    %v713 = vmax.f32 %v697, 0.0
    %v714 = vmax.f32 %v698, 0.0
    %v715 = vmax.f32 %v699, 0.0
    %v716 = vmax.f32 %v700, 0.0
    %v717 = vmax.f32 %v701, 0.0
    %v718 = vmax.f32 %v702, 0.0
    %v719 = vmax.f32 %v703, 0.0
    %v720 = vmax.f32 %v704, 0.0
    %v721 = vadd.f32 %v705, %v706
    %722 = vadd.xlane.f32.xlu0 %v721
    %v723 = vpop.xlane.xlu0 %722
    %v724 = vadd.f32 %v707, %v708
    %725 = vadd.xlane.f32.xlu0 %v724
    %v726 = vpop.xlane.xlu0 %725
    %v727 = vadd.f32 %v709, %v710
    %728 = vadd.xlane.f32.xlu0 %v727
    %v729 = vpop.xlane.xlu0 %728
    %v730 = vadd.f32 %v711, %v712
    %731 = vadd.xlane.f32.xlu0 %v730
    %v732 = vpop.xlane.xlu0 %731
    %v733 = vadd.f32 %v713, %v714
    %734 = vadd.xlane.f32.xlu0 %v733
    %v735 = vpop.xlane.xlu0 %734
    %v736 = vadd.f32 %v715, %v716
    %737 = vadd.xlane.f32.xlu0 %v736
    %v738 = vpop.xlane.xlu0 %737
    %v739 = vadd.f32 %v717, %v718
    %740 = vadd.xlane.f32.xlu0 %v739
    %v741 = vpop.xlane.xlu0 %740
    %v742 = vadd.f32 %v719, %v720
    %743 = vadd.xlane.f32.xlu0 %v742
    %v744 = vpop.xlane.xlu0 %743
    %v745 = vrcp.pop 256.0
    %v746 = vmul.f32 %v723, %v745
    %v747 = vmul.f32 %v726, %v745
    %v748 = vmul.f32 %v729, %v745
    %v749 = vmul.f32 %v732, %v745
    %v750 = vmul.f32 %v735, %v745
    %v751 = vmul.f32 %v738, %v745
    %v752 = vmul.f32 %v741, %v745
    %v753 = vmul.f32 %v744, %v745
    %v754 = vld [vmem:[%s1] sm:$0x3]
    %v755 = vld [vmem:[#allocation6] sm:$0x1]
    %757 = vset.pattern.permute.xlu0 0
    %758 = vperm.xlu0 %757, %v754
    %v759 = vpop.permute.xlu0 %758
    %v762 = vlaneseq
    %v763 = vshrl.u32 %v762, 7
    %v764 = vsub.s32 0, %v763
    %v765 = vrot.slane %v755, %v764
    %v767 = vmul.f32 %v759, %v765
    %v768 = vld [vmem:[#allocation9] sm:$0x1]
    %v770 = vlaneseq
    %v771 = vshrl.u32 %v770, 7
    %v772 = vsub.s32 0, %v771
    %v773 = vrot.slane %v768, %v772
    %v775 = vadd.f32 %v767, %v773
    %v776 = vld [vmem:[#allocation11] sm:$0x1]
    %v778 = vlaneseq
    %v779 = vshrl.u32 %v778, 7
    %v780 = vsub.s32 0, %v779
    %v781 = vrot.slane %v776, %v780
    %v783 = vmul.f32 %v775, %v781
    %v784 = vld [vmem:[#allocation12] sm:$0x1]
    %v786 = vlaneseq
    %v787 = vshrl.u32 %v786, 7
    %v788 = vsub.s32 0, %v787
    %v789 = vrot.slane %v784, %v788
    %v791 = vadd.f32 %v783, %v789
    %v792 = vmax.f32 %v791, 0.0
    %v793 = vpack.c.bf16 %v747, %v746
    %v794 = vpack.c.bf16 %v749, %v748
    %v795 = vpack.c.bf16 %v751, %v750
    %v796 = vpack.c.bf16 %v753, %v752
    %v797 = vld [vmem:[#allocation14] sm:$0xff]
    %v798 = vld [vmem:[#allocation14 + $0x8] sm:$0xff]
    %v799 = vld [vmem:[#allocation14 + $0x10] sm:$0xff]
    %v800 = vld [vmem:[#allocation14 + $0x18] sm:$0xff]
    %v801 = vld [vmem:[#allocation14 + $0x20] sm:$0xff]
    %v802 = vld [vmem:[#allocation14 + $0x28] sm:$0xff]
    %v803 = vld [vmem:[#allocation14 + $0x30] sm:$0xff]
    %v804 = vld [vmem:[#allocation14 + $0x38] sm:$0xff]
    %v805 = vld [vmem:[#allocation14 + $0x40] sm:$0xff]
    %v806 = vld [vmem:[#allocation14 + $0x48] sm:$0xff]
    %v807 = vld [vmem:[#allocation14 + $0x50] sm:$0xff]
    %v808 = vld [vmem:[#allocation14 + $0x58] sm:$0xff]
    %v809 = vld [vmem:[#allocation14 + $0x60] sm:$0xff]
    %v810 = vld [vmem:[#allocation14 + $0x68] sm:$0xff]
    %v811 = vld [vmem:[#allocation14 + $0x70] sm:$0xff]
    %v812 = vld [vmem:[#allocation14 + $0x78] sm:$0xff]
    %v813 = vpack.c.bf16 %v792, %v792
    %v814 = vld [vmem:[#allocation15] sm:$0xff]
    %v815 = vld [vmem:[#allocation15 + $0x8] sm:$0xff]
    %v816 = vld [vmem:[#allocation15 + $0x10] sm:$0xff]
    %v817 = vld [vmem:[#allocation15 + $0x18] sm:$0xff]
    %v818 = vld [vmem:[#allocation15 + $0x20] sm:$0xff]
    %v819 = vld [vmem:[#allocation15 + $0x28] sm:$0xff]
    %v820 = vld [vmem:[#allocation15 + $0x30] sm:$0xff]
    %v821 = vld [vmem:[#allocation15 + $0x38] sm:$0xff]
    %v830 = vunpack.c.l.b16 %v814
    %v831 = vunpack.c.h.b16 %v814
    %v832 = vunpack.c.l.b16 %v815
    %v833 = vunpack.c.h.b16 %v815
    %v834 = vunpack.c.l.b16 %v816
    %v835 = vunpack.c.h.b16 %v816
    %v836 = vunpack.c.l.b16 %v817
    %v837 = vunpack.c.h.b16 %v817
    %v838 = vunpack.c.l.b16 %v818
    %v839 = vunpack.c.h.b16 %v818
    %v840 = vunpack.c.l.b16 %v819
    %v841 = vunpack.c.h.b16 %v819
    %v842 = vunpack.c.l.b16 %v820
    %v843 = vunpack.c.h.b16 %v820
    %v844 = vunpack.c.l.b16 %v821
    %v845 = vunpack.c.h.b16 %v821
    %v846 = vpack.c.b16 %v838, %v830
    %v847 = vpack.c.b16 %v839, %v831
    %v848 = vpack.c.b16 %v840, %v832
    %v849 = vpack.c.b16 %v841, %v833
    %v850 = vpack.c.b16 %v842, %v834
    %v851 = vpack.c.b16 %v843, %v835
    %v852 = vpack.c.b16 %v844, %v836
    %v853 = vpack.c.b16 %v845, %v837
    %vm862 = vcmask 130048
    %v864 = vsel %vm862, %v813, 0
    %866 = vmatprep.subr.bf16.mxu0 %v847
    %867 = vmatpush1.bf16.msra.mxu0 %v846
    %868 = vmatprep.subr.bf16.mxu0 0
    %869 = vmatpush1.bf16.msra.mxu0 0
    %870 = vmatprep.subr.bf16.mxu0 0
    %871 = vmatpush1.bf16.msra.mxu0 0
    %872 = vmatprep.subr.bf16.mxu0 0
    %873 = vmatpush1.bf16.msra.mxu0 0
    %874 = vmatprep.subr.bf16.mxu0 0
    %875 = vmatpush1.bf16.msra.mxu0 0
    %876 = vmatprep.subr.bf16.mxu0 0
    %877 = vmatpush1.bf16.msra.mxu0 0
    %878 = vmatprep.subr.bf16.mxu0 0
    %879 = vmatpush1.bf16.msra.mxu0 0
    %880 = vmatprep.subr.bf16.mxu0 0
    %881 = vmatpush1.bf16.msra.mxu0 0
    %882 = vmatprep.subr.bf16.mxu0 0
    %883 = vmatpush1.bf16.msra.mxu0 0
    %884 = vmatprep.subr.bf16.mxu0 0
    %885 = vmatpush1.bf16.msra.mxu0 0
    %886 = vmatprep.subr.bf16.mxu0 0
    %887 = vmatpush1.bf16.msra.mxu0 0
    %888 = vmatprep.subr.bf16.mxu0 0
    %889 = vmatpush1.bf16.msra.mxu0 0
    %890 = vmatprep.subr.bf16.mxu0 0
    %891 = vmatpush1.bf16.msra.mxu0 0
    %892 = vmatprep.subr.bf16.mxu0 0
    %893 = vmatpush1.bf16.msra.mxu0 0
    %894 = vmatprep.subr.bf16.mxu0 0
    %895 = vmatpush1.bf16.msra.mxu0 0
    %896 = vmatprep.subr.bf16.mxu0 0
    %897 = vmatpush1.bf16.msra.mxu0 0
    %898 = vmatprep.mubr.bf16.mxu0 0
    %899 = vmatmul.mubr.bf16.gmra.mrb[0].mxu0 %v864
    %v900 = vpop.f32.mrb[0].mxu0
    %v901 = vadd.f32 0.0, %v900
    %v902 = vpop.f32.mrb[0].mxu0
    %v903 = vadd.f32 0.0, %v902
    %v904 = vpop.f32.mrb[0].mxu0
    %v905 = vpop.f32.mrb[0].mxu0
    %906 = vdwg.mxu0
    %907 = vmatprep.subr.bf16.mxu0 %v849
    %908 = vmatpush1.bf16.msra.mxu0 %v848
    %909 = vmatprep.subr.bf16.mxu0 0
    %910 = vmatpush1.bf16.msra.mxu0 0
    %911 = vmatprep.subr.bf16.mxu0 0
    %912 = vmatpush1.bf16.msra.mxu0 0
    %913 = vmatprep.subr.bf16.mxu0 0
    %914 = vmatpush1.bf16.msra.mxu0 0
    %915 = vmatprep.subr.bf16.mxu0 0
    %916 = vmatpush1.bf16.msra.mxu0 0
    %917 = vmatprep.subr.bf16.mxu0 0
    %918 = vmatpush1.bf16.msra.mxu0 0
    %919 = vmatprep.subr.bf16.mxu0 0
    %920 = vmatpush1.bf16.msra.mxu0 0
    %921 = vmatprep.subr.bf16.mxu0 0
    %922 = vmatpush1.bf16.msra.mxu0 0
    %923 = vmatprep.subr.bf16.mxu0 0
    %924 = vmatpush1.bf16.msra.mxu0 0
    %925 = vmatprep.subr.bf16.mxu0 0
    %926 = vmatpush1.bf16.msra.mxu0 0
    %927 = vmatprep.subr.bf16.mxu0 0
    %928 = vmatpush1.bf16.msra.mxu0 0
    %929 = vmatprep.subr.bf16.mxu0 0
    %930 = vmatpush1.bf16.msra.mxu0 0
    %931 = vmatprep.subr.bf16.mxu0 0
    %932 = vmatpush1.bf16.msra.mxu0 0
    %933 = vmatprep.subr.bf16.mxu0 0
    %934 = vmatpush1.bf16.msra.mxu0 0
    %935 = vmatprep.subr.bf16.mxu0 0
    %936 = vmatpush1.bf16.msra.mxu0 0
    %937 = vmatprep.subr.bf16.mxu0 0
    %938 = vmatpush1.bf16.msra.mxu0 0
    %939 = vmatprep.mubr.bf16.mxu0 0
    %940 = vmatmul.mubr.bf16.gmra.mrb[0].mxu0 %v864
    %v941 = vpop.f32.mrb[0].mxu0
    %v942 = vadd.f32 0.0, %v941
    %v943 = vpop.f32.mrb[0].mxu0
    %v944 = vadd.f32 0.0, %v943
    %v945 = vpop.f32.mrb[0].mxu0
    %v946 = vpop.f32.mrb[0].mxu0
    %947 = vdwg.mxu0
    %948 = vmatprep.subr.bf16.mxu0 %v851
    %949 = vmatpush1.bf16.msra.mxu0 %v850
    %950 = vmatprep.subr.bf16.mxu0 0
    %951 = vmatpush1.bf16.msra.mxu0 0
    %952 = vmatprep.subr.bf16.mxu0 0
    %953 = vmatpush1.bf16.msra.mxu0 0
    %954 = vmatprep.subr.bf16.mxu0 0
    %955 = vmatpush1.bf16.msra.mxu0 0
    %956 = vmatprep.subr.bf16.mxu0 0
    %957 = vmatpush1.bf16.msra.mxu0 0
    %958 = vmatprep.subr.bf16.mxu0 0
    %959 = vmatpush1.bf16.msra.mxu0 0
    %960 = vmatprep.subr.bf16.mxu0 0
    %961 = vmatpush1.bf16.msra.mxu0 0
    %962 = vmatprep.subr.bf16.mxu0 0
    %963 = vmatpush1.bf16.msra.mxu0 0
    %964 = vmatprep.subr.bf16.mxu0 0
    %965 = vmatpush1.bf16.msra.mxu0 0
    %966 = vmatprep.subr.bf16.mxu0 0
    %967 = vmatpush1.bf16.msra.mxu0 0
    %968 = vmatprep.subr.bf16.mxu0 0
    %969 = vmatpush1.bf16.msra.mxu0 0
    %970 = vmatprep.subr.bf16.mxu0 0
    %971 = vmatpush1.bf16.msra.mxu0 0
    %972 = vmatprep.subr.bf16.mxu0 0
    %973 = vmatpush1.bf16.msra.mxu0 0
    %974 = vmatprep.subr.bf16.mxu0 0
    %975 = vmatpush1.bf16.msra.mxu0 0
    %976 = vmatprep.subr.bf16.mxu0 0
    %977 = vmatpush1.bf16.msra.mxu0 0
    %978 = vmatprep.subr.bf16.mxu0 0
    %979 = vmatpush1.bf16.msra.mxu0 0
    %980 = vmatprep.mubr.bf16.mxu0 0
    %981 = vmatmul.mubr.bf16.gmra.mrb[0].mxu0 %v864
    %v982 = vpop.f32.mrb[0].mxu0
    %v983 = vadd.f32 0.0, %v982
    %v984 = vpop.f32.mrb[0].mxu0
    %v985 = vadd.f32 0.0, %v984
    %v986 = vpop.f32.mrb[0].mxu0
    %v987 = vpop.f32.mrb[0].mxu0
    %988 = vdwg.mxu0
    %989 = vmatprep.subr.bf16.mxu0 %v853
    %990 = vmatpush1.bf16.msra.mxu0 %v852
    %991 = vmatprep.subr.bf16.mxu0 0
    %992 = vmatpush1.bf16.msra.mxu0 0
    %993 = vmatprep.subr.bf16.mxu0 0
    %994 = vmatpush1.bf16.msra.mxu0 0
    %995 = vmatprep.subr.bf16.mxu0 0
    %996 = vmatpush1.bf16.msra.mxu0 0
    %997 = vmatprep.subr.bf16.mxu0 0
    %998 = vmatpush1.bf16.msra.mxu0 0
    %999 = vmatprep.subr.bf16.mxu0 0
    %1000 = vmatpush1.bf16.msra.mxu0 0
    %1001 = vmatprep.subr.bf16.mxu0 0
    %1002 = vmatpush1.bf16.msra.mxu0 0
    %1003 = vmatprep.subr.bf16.mxu0 0
    %1004 = vmatpush1.bf16.msra.mxu0 0
    %1005 = vmatprep.subr.bf16.mxu0 0
    %1006 = vmatpush1.bf16.msra.mxu0 0
    %1007 = vmatprep.subr.bf16.mxu0 0
    %1008 = vmatpush1.bf16.msra.mxu0 0
    %1009 = vmatprep.subr.bf16.mxu0 0
    %1010 = vmatpush1.bf16.msra.mxu0 0
    %1011 = vmatprep.subr.bf16.mxu0 0
    %1012 = vmatpush1.bf16.msra.mxu0 0
    %1013 = vmatprep.subr.bf16.mxu0 0
    %1014 = vmatpush1.bf16.msra.mxu0 0
    %1015 = vmatprep.subr.bf16.mxu0 0
    %1016 = vmatpush1.bf16.msra.mxu0 0
    %1017 = vmatprep.subr.bf16.mxu0 0
    %1018 = vmatpush1.bf16.msra.mxu0 0
    %1019 = vmatprep.subr.bf16.mxu0 0
    %1020 = vmatpush1.bf16.msra.mxu0 0
    %1021 = vmatprep.mubr.bf16.mxu0 0
    %1022 = vmatmul.mubr.bf16.gmra.mrb[0].mxu0 %v864
    %v1023 = vpop.f32.mrb[0].mxu0
    %v1024 = vadd.f32 0.0, %v1023
    %v1025 = vpop.f32.mrb[0].mxu0
    %v1026 = vadd.f32 0.0, %v1025
    %v1027 = vpop.f32.mrb[0].mxu0
    %v1028 = vpop.f32.mrb[0].mxu0
    %1029 = vdwg.mxu0
    %v1034 = vunpack.c.l.b16 %v793
    %v1035 = vunpack.c.h.b16 %v793
    %v1036 = vunpack.c.l.b16 %v794
    %v1037 = vunpack.c.h.b16 %v794
    %v1038 = vunpack.c.l.b16 %v795
    %v1039 = vunpack.c.h.b16 %v795
    %v1040 = vunpack.c.l.b16 %v796
    %v1041 = vunpack.c.h.b16 %v796
    %v1042 = vlaneseq
    %v1043 = vand.u32 %v1042, 127
    %v1044 = vlaneseq
    %v1045 = vshrl.u32 %v1044, 7
    %v1046 = vsub.s32 %v1043, %v1045
    %v1047 = vrot.slane %v1034, %v1046
    %v1048 = vadd.s32 %v1043, 4294967288
    %v1049 = vlaneseq
    %v1050 = vshrl.u32 %v1049, 7
    %v1051 = vsub.s32 %v1048, %v1050
    %v1052 = vrot.slane %v1035, %v1051
    %vm1053 = vcmask 130112
    %v1054 = vsel %vm1053, %v1052, %v1047
    %v1055 = vadd.s32 %v1043, 4294967280
    %v1056 = vlaneseq
    %v1057 = vshrl.u32 %v1056, 7
    %v1058 = vsub.s32 %v1055, %v1057
    %v1059 = vrot.slane %v1036, %v1058
    %vm1060 = vcmask 195712
    %v1061 = vsel %vm1060, %v1059, %v1054
    %v1062 = vadd.s32 %v1043, 4294967272
    %v1063 = vlaneseq
    %v1064 = vshrl.u32 %v1063, 7
    %v1065 = vsub.s32 %v1062, %v1064
    %v1066 = vrot.slane %v1037, %v1065
    %vm1067 = vcmask 261312
    %v1068 = vsel %vm1067, %v1066, %v1061
    %v1069 = vlaneseq
    %v1070 = vshrl.u32 %v1069, 7
    %v1071 = vsub.s32 %v1043, %v1070
    %v1072 = vrot.slane %v1038, %v1071
    %v1073 = vlaneseq
    %v1074 = vshrl.u32 %v1073, 7
    %v1075 = vsub.s32 %v1048, %v1074
    %v1076 = vrot.slane %v1039, %v1075
    %v1077 = vsel %vm1053, %v1076, %v1072
    %v1078 = vlaneseq
    %v1079 = vshrl.u32 %v1078, 7
    %v1080 = vsub.s32 %v1055, %v1079
    %v1081 = vrot.slane %v1040, %v1080
    %v1082 = vsel %vm1060, %v1081, %v1077
    %v1083 = vlaneseq
    %v1084 = vshrl.u32 %v1083, 7
    %v1085 = vsub.s32 %v1062, %v1084
    %v1086 = vrot.slane %v1041, %v1085
    %v1087 = vsel %vm1067, %v1086, %v1082
    %vm1088 = vcmask 1041409
    %v1089 = vsel %vm1088, %v1087, %v1068
    %v1090 = vpack.c.b16 %v1089, %v1089
    %v1107 = vunpack.c.l.b16 %v797
    %v1108 = vunpack.c.h.b16 %v797
    %v1109 = vunpack.c.l.b16 %v798
    %v1110 = vunpack.c.h.b16 %v798
    %v1111 = vunpack.c.l.b16 %v799
    %v1112 = vunpack.c.h.b16 %v799
    %v1113 = vunpack.c.l.b16 %v800
    %v1114 = vunpack.c.h.b16 %v800
    %v1115 = vunpack.c.l.b16 %v801
    %v1116 = vunpack.c.h.b16 %v801
    %v1117 = vunpack.c.l.b16 %v802
    %v1118 = vunpack.c.h.b16 %v802
    %v1119 = vunpack.c.l.b16 %v803
    %v1120 = vunpack.c.h.b16 %v803
    %v1121 = vunpack.c.l.b16 %v804
    %v1122 = vunpack.c.h.b16 %v804
    %v1123 = vunpack.c.l.b16 %v805
    %v1124 = vunpack.c.h.b16 %v805
    %v1125 = vunpack.c.l.b16 %v806
    %v1126 = vunpack.c.h.b16 %v806
    %v1127 = vunpack.c.l.b16 %v807
    %v1128 = vunpack.c.h.b16 %v807
    %v1129 = vunpack.c.l.b16 %v808
    %v1130 = vunpack.c.h.b16 %v808
    %v1131 = vunpack.c.l.b16 %v809
    %v1132 = vunpack.c.h.b16 %v809
    %v1133 = vunpack.c.l.b16 %v810
    %v1134 = vunpack.c.h.b16 %v810
    %v1135 = vunpack.c.l.b16 %v811
    %v1136 = vunpack.c.h.b16 %v811
    %v1137 = vunpack.c.l.b16 %v812
    %v1138 = vunpack.c.h.b16 %v812
    %v1139 = vpack.c.b16 %v1115, %v1107
    %v1140 = vpack.c.b16 %v1116, %v1108
    %v1141 = vpack.c.b16 %v1117, %v1109
    %v1142 = vpack.c.b16 %v1118, %v1110
    %v1143 = vpack.c.b16 %v1119, %v1111
    %v1144 = vpack.c.b16 %v1120, %v1112
    %v1145 = vpack.c.b16 %v1121, %v1113
    %v1146 = vpack.c.b16 %v1122, %v1114
    %v1147 = vpack.c.b16 %v1131, %v1123
    %v1148 = vpack.c.b16 %v1132, %v1124
    %v1149 = vpack.c.b16 %v1133, %v1125
    %v1150 = vpack.c.b16 %v1134, %v1126
    %v1151 = vpack.c.b16 %v1135, %v1127
    %v1152 = vpack.c.b16 %v1136, %v1128
    %v1153 = vpack.c.b16 %v1137, %v1129
    %v1154 = vpack.c.b16 %v1138, %v1130
    %vm1171 = vcmask 261120
    %v1173 = vsel %vm1171, %v1090, 0
    %1175 = vmatprep.subr.bf16.mxu0 %v1140
    %1176 = vmatpush1.bf16.msra.mxu0 %v1139
    %1177 = vmatprep.subr.bf16.mxu0 %v1148
    %1178 = vmatpush1.bf16.msra.mxu0 %v1147
    %1179 = vmatprep.subr.bf16.mxu0 0
    %1180 = vmatpush1.bf16.msra.mxu0 0
    %1181 = vmatprep.subr.bf16.mxu0 0
    %1182 = vmatpush1.bf16.msra.mxu0 0
    %1183 = vmatprep.subr.bf16.mxu0 0
    %1184 = vmatpush1.bf16.msra.mxu0 0
    %1185 = vmatprep.subr.bf16.mxu0 0
    %1186 = vmatpush1.bf16.msra.mxu0 0
    %1187 = vmatprep.subr.bf16.mxu0 0
    %1188 = vmatpush1.bf16.msra.mxu0 0
    %1189 = vmatprep.subr.bf16.mxu0 0
    %1190 = vmatpush1.bf16.msra.mxu0 0
    %1191 = vmatprep.subr.bf16.mxu0 0
    %1192 = vmatpush1.bf16.msra.mxu0 0
    %1193 = vmatprep.subr.bf16.mxu0 0
    %1194 = vmatpush1.bf16.msra.mxu0 0
    %1195 = vmatprep.subr.bf16.mxu0 0
    %1196 = vmatpush1.bf16.msra.mxu0 0
    %1197 = vmatprep.subr.bf16.mxu0 0
    %1198 = vmatpush1.bf16.msra.mxu0 0
    %1199 = vmatprep.subr.bf16.mxu0 0
    %1200 = vmatpush1.bf16.msra.mxu0 0
    %1201 = vmatprep.subr.bf16.mxu0 0
    %1202 = vmatpush1.bf16.msra.mxu0 0
    %1203 = vmatprep.subr.bf16.mxu0 0
    %1204 = vmatpush1.bf16.msra.mxu0 0
    %1205 = vmatprep.subr.bf16.mxu0 0
    %1206 = vmatpush1.bf16.msra.mxu0 0
    %1207 = vmatprep.mubr.bf16.mxu0 0
    %1208 = vmatmul.mubr.bf16.gmra.mrb[0].mxu0 %v1173
    %v1209 = vpop.f32.mrb[0].mxu0
    %v1210 = vadd.f32 %v901, %v1209
    %v1211 = vpop.f32.mrb[0].mxu0
    %v1212 = vadd.f32 %v903, %v1211
    %v1213 = vpop.f32.mrb[0].mxu0
    %v1214 = vpop.f32.mrb[0].mxu0
    %1215 = vdwg.mxu0
    %1216 = vmatprep.subr.bf16.mxu0 %v1142
    %1217 = vmatpush1.bf16.msra.mxu0 %v1141
    %1218 = vmatprep.subr.bf16.mxu0 %v1150
    %1219 = vmatpush1.bf16.msra.mxu0 %v1149
    %1220 = vmatprep.subr.bf16.mxu0 0
    %1221 = vmatpush1.bf16.msra.mxu0 0
    %1222 = vmatprep.subr.bf16.mxu0 0
    %1223 = vmatpush1.bf16.msra.mxu0 0
    %1224 = vmatprep.subr.bf16.mxu0 0
    %1225 = vmatpush1.bf16.msra.mxu0 0
    %1226 = vmatprep.subr.bf16.mxu0 0
    %1227 = vmatpush1.bf16.msra.mxu0 0
    %1228 = vmatprep.subr.bf16.mxu0 0
    %1229 = vmatpush1.bf16.msra.mxu0 0
    %1230 = vmatprep.subr.bf16.mxu0 0
    %1231 = vmatpush1.bf16.msra.mxu0 0
    %1232 = vmatprep.subr.bf16.mxu0 0
    %1233 = vmatpush1.bf16.msra.mxu0 0
    %1234 = vmatprep.subr.bf16.mxu0 0
    %1235 = vmatpush1.bf16.msra.mxu0 0
    %1236 = vmatprep.subr.bf16.mxu0 0
    %1237 = vmatpush1.bf16.msra.mxu0 0
    %1238 = vmatprep.subr.bf16.mxu0 0
    %1239 = vmatpush1.bf16.msra.mxu0 0
    %1240 = vmatprep.subr.bf16.mxu0 0
    %1241 = vmatpush1.bf16.msra.mxu0 0
    %1242 = vmatprep.subr.bf16.mxu0 0
    %1243 = vmatpush1.bf16.msra.mxu0 0
    %1244 = vmatprep.subr.bf16.mxu0 0
    %1245 = vmatpush1.bf16.msra.mxu0 0
    %1246 = vmatprep.subr.bf16.mxu0 0
    %1247 = vmatpush1.bf16.msra.mxu0 0
    %1248 = vmatprep.mubr.bf16.mxu0 0
    %1249 = vmatmul.mubr.bf16.gmra.mrb[0].mxu0 %v1173
    %v1250 = vpop.f32.mrb[0].mxu0
    %v1251 = vadd.f32 %v942, %v1250
    %v1252 = vpop.f32.mrb[0].mxu0
    %v1253 = vadd.f32 %v944, %v1252
    %v1254 = vpop.f32.mrb[0].mxu0
    %v1255 = vpop.f32.mrb[0].mxu0
    %1256 = vdwg.mxu0
    %1257 = vmatprep.subr.bf16.mxu0 %v1144
    %1258 = vmatpush1.bf16.msra.mxu0 %v1143
    %1259 = vmatprep.subr.bf16.mxu0 %v1152
    %1260 = vmatpush1.bf16.msra.mxu0 %v1151
    %1261 = vmatprep.subr.bf16.mxu0 0
    %1262 = vmatpush1.bf16.msra.mxu0 0
    %1263 = vmatprep.subr.bf16.mxu0 0
    %1264 = vmatpush1.bf16.msra.mxu0 0
    %1265 = vmatprep.subr.bf16.mxu0 0
    %1266 = vmatpush1.bf16.msra.mxu0 0
    %1267 = vmatprep.subr.bf16.mxu0 0
    %1268 = vmatpush1.bf16.msra.mxu0 0
    %1269 = vmatprep.subr.bf16.mxu0 0
    %1270 = vmatpush1.bf16.msra.mxu0 0
    %1271 = vmatprep.subr.bf16.mxu0 0
    %1272 = vmatpush1.bf16.msra.mxu0 0
    %1273 = vmatprep.subr.bf16.mxu0 0
    %1274 = vmatpush1.bf16.msra.mxu0 0
    %1275 = vmatprep.subr.bf16.mxu0 0
    %1276 = vmatpush1.bf16.msra.mxu0 0
    %1277 = vmatprep.subr.bf16.mxu0 0
    %1278 = vmatpush1.bf16.msra.mxu0 0
    %1279 = vmatprep.subr.bf16.mxu0 0
    %1280 = vmatpush1.bf16.msra.mxu0 0
    %1281 = vmatprep.subr.bf16.mxu0 0
    %1282 = vmatpush1.bf16.msra.mxu0 0
    %1283 = vmatprep.subr.bf16.mxu0 0
    %1284 = vmatpush1.bf16.msra.mxu0 0
    %1285 = vmatprep.subr.bf16.mxu0 0
    %1286 = vmatpush1.bf16.msra.mxu0 0
    %1287 = vmatprep.subr.bf16.mxu0 0
    %1288 = vmatpush1.bf16.msra.mxu0 0
    %1289 = vmatprep.mubr.bf16.mxu0 0
    %1290 = vmatmul.mubr.bf16.gmra.mrb[0].mxu0 %v1173
    %v1291 = vpop.f32.mrb[0].mxu0
    %v1292 = vadd.f32 %v983, %v1291
    %v1293 = vpop.f32.mrb[0].mxu0
    %v1294 = vadd.f32 %v985, %v1293
    %v1295 = vpop.f32.mrb[0].mxu0
    %v1296 = vpop.f32.mrb[0].mxu0
    %1297 = vdwg.mxu0
    %1298 = vmatprep.subr.bf16.mxu0 %v1146
    %1299 = vmatpush1.bf16.msra.mxu0 %v1145
    %1300 = vmatprep.subr.bf16.mxu0 %v1154
    %1301 = vmatpush1.bf16.msra.mxu0 %v1153
    %1302 = vmatprep.subr.bf16.mxu0 0
    %1303 = vmatpush1.bf16.msra.mxu0 0
    %1304 = vmatprep.subr.bf16.mxu0 0
    %1305 = vmatpush1.bf16.msra.mxu0 0
    %1306 = vmatprep.subr.bf16.mxu0 0
    %1307 = vmatpush1.bf16.msra.mxu0 0
    %1308 = vmatprep.subr.bf16.mxu0 0
    %1309 = vmatpush1.bf16.msra.mxu0 0
    %1310 = vmatprep.subr.bf16.mxu0 0
    %1311 = vmatpush1.bf16.msra.mxu0 0
    %1312 = vmatprep.subr.bf16.mxu0 0
    %1313 = vmatpush1.bf16.msra.mxu0 0
    %1314 = vmatprep.subr.bf16.mxu0 0
    %1315 = vmatpush1.bf16.msra.mxu0 0
    %1316 = vmatprep.subr.bf16.mxu0 0
    %1317 = vmatpush1.bf16.msra.mxu0 0
    %1318 = vmatprep.subr.bf16.mxu0 0
    %1319 = vmatpush1.bf16.msra.mxu0 0
    %1320 = vmatprep.subr.bf16.mxu0 0
    %1321 = vmatpush1.bf16.msra.mxu0 0
    %1322 = vmatprep.subr.bf16.mxu0 0
    %1323 = vmatpush1.bf16.msra.mxu0 0
    %1324 = vmatprep.subr.bf16.mxu0 0
    %1325 = vmatpush1.bf16.msra.mxu0 0
    %1326 = vmatprep.subr.bf16.mxu0 0
    %1327 = vmatpush1.bf16.msra.mxu0 0
    %1328 = vmatprep.subr.bf16.mxu0 0
    %1329 = vmatpush1.bf16.msra.mxu0 0
    %1330 = vmatprep.mubr.bf16.mxu0 0
    %1331 = vmatmul.mubr.bf16.gmra.mrb[0].mxu0 %v1173
    %v1332 = vpop.f32.mrb[0].mxu0
    %v1333 = vadd.f32 %v1024, %v1332
    %v1334 = vpop.f32.mrb[0].mxu0
    %v1335 = vadd.f32 %v1026, %v1334
    %v1336 = vpop.f32.mrb[0].mxu0
    %v1337 = vpop.f32.mrb[0].mxu0
    %1338 = vdwg.mxu0
    %v1339 = vld [vmem:[#allocation17] sm:$0xff]
    %v1341 = vlaneseq
    %v1342 = vshrl.u32 %v1341, 7
    %v1343 = vsub.s32 0, %v1342
    %v1344 = vrot.slane %v1339, %v1343
    %v1345 = vlaneseq
    %v1346 = vshrl.u32 %v1345, 7
    %v1347 = vsub.s32 1, %v1346
    %v1348 = vrot.slane %v1339, %v1347
    %v1349 = vlaneseq
    %v1350 = vshrl.u32 %v1349, 7
    %v1351 = vsub.s32 2, %v1350
    %v1352 = vrot.slane %v1339, %v1351
    %v1353 = vlaneseq
    %v1354 = vshrl.u32 %v1353, 7
    %v1355 = vsub.s32 3, %v1354
    %v1356 = vrot.slane %v1339, %v1355
    %v1357 = vlaneseq
    %v1358 = vshrl.u32 %v1357, 7
    %v1359 = vsub.s32 4, %v1358
    %v1360 = vrot.slane %v1339, %v1359
    %v1361 = vlaneseq
    %v1362 = vshrl.u32 %v1361, 7
    %v1363 = vsub.s32 5, %v1362
    %v1364 = vrot.slane %v1339, %v1363
    %v1365 = vlaneseq
    %v1366 = vshrl.u32 %v1365, 7
    %v1367 = vsub.s32 6, %v1366
    %v1368 = vrot.slane %v1339, %v1367
    %v1369 = vlaneseq
    %v1370 = vshrl.u32 %v1369, 7
    %v1371 = vsub.s32 7, %v1370
    %v1372 = vrot.slane %v1339, %v1371
    %v1381 = vmul.f32 %v1210, %v1344
    %v1382 = vmul.f32 %v1212, %v1348
    %v1383 = vmul.f32 %v1251, %v1352
    %v1384 = vmul.f32 %v1253, %v1356
    %v1385 = vmul.f32 %v1292, %v1360
    %v1386 = vmul.f32 %v1294, %v1364
    %v1387 = vmul.f32 %v1333, %v1368
    %v1388 = vmul.f32 %v1335, %v1372
    %v1389 = vld [vmem:[#allocation18] sm:$0xff]
    %v1391 = vlaneseq
    %v1392 = vshrl.u32 %v1391, 7
    %v1393 = vsub.s32 0, %v1392
    %v1394 = vrot.slane %v1389, %v1393
    %v1395 = vlaneseq
    %v1396 = vshrl.u32 %v1395, 7
    %v1397 = vsub.s32 1, %v1396
    %v1398 = vrot.slane %v1389, %v1397
    %v1399 = vlaneseq
    %v1400 = vshrl.u32 %v1399, 7
    %v1401 = vsub.s32 2, %v1400
    %v1402 = vrot.slane %v1389, %v1401
    %v1403 = vlaneseq
    %v1404 = vshrl.u32 %v1403, 7
    %v1405 = vsub.s32 3, %v1404
    %v1406 = vrot.slane %v1389, %v1405
    %v1407 = vlaneseq
    %v1408 = vshrl.u32 %v1407, 7
    %v1409 = vsub.s32 4, %v1408
    %v1410 = vrot.slane %v1389, %v1409
    %v1411 = vlaneseq
    %v1412 = vshrl.u32 %v1411, 7
    %v1413 = vsub.s32 5, %v1412
    %v1414 = vrot.slane %v1389, %v1413
    %v1415 = vlaneseq
    %v1416 = vshrl.u32 %v1415, 7
    %v1417 = vsub.s32 6, %v1416
    %v1418 = vrot.slane %v1389, %v1417
    %v1419 = vlaneseq
    %v1420 = vshrl.u32 %v1419, 7
    %v1421 = vsub.s32 7, %v1420
    %v1422 = vrot.slane %v1389, %v1421
    %v1431 = vadd.f32 %v1381, %v1394
    %v1432 = vadd.f32 %v1382, %v1398
    %v1433 = vadd.f32 %v1383, %v1402
    %v1434 = vadd.f32 %v1384, %v1406
    %v1435 = vadd.f32 %v1385, %v1410
    %v1436 = vadd.f32 %v1386, %v1414
    %v1437 = vadd.f32 %v1387, %v1418
    %v1438 = vadd.f32 %v1388, %v1422
    %v1439 = vmax.f32 %v1431, 0.0
    %v1440 = vmax.f32 %v1432, 0.0
    %v1441 = vmax.f32 %v1433, 0.0
    %v1442 = vmax.f32 %v1434, 0.0
    %v1443 = vmax.f32 %v1435, 0.0
    %v1444 = vmax.f32 %v1436, 0.0
    %v1445 = vmax.f32 %v1437, 0.0
    %v1446 = vmax.f32 %v1438, 0.0
    %s1447 = smul.u32 4, 128
    %s1448 = smul.u32 %s1447, 8
    %s1449 = sshll.u32 %s1448, 4
    %1450 = dma.done [#allocation5], %s1449
    %v1451 = vpack.c.bf16 %v1439, %v1439
    %v1452 = vpack.c.bf16 %v1440, %v1440
    %v1453 = vpack.c.bf16 %v1441, %v1441
    %v1454 = vpack.c.bf16 %v1442, %v1442
    %v1455 = vpack.c.bf16 %v1443, %v1443
    %v1456 = vpack.c.bf16 %v1444, %v1444
    %v1457 = vpack.c.bf16 %v1445, %v1445
    %v1458 = vpack.c.bf16 %v1446, %v1446
    %v1459 = vld [vmem:[#allocation2] sm:$0xff]
    %v1460 = vld [vmem:[#allocation2 + $0x8] sm:$0xff]
    %v1461 = vld [vmem:[#allocation2 + $0x10] sm:$0xff]
    %v1462 = vld [vmem:[#allocation2 + $0x18] sm:$0xff]
    %v1463 = vld [vmem:[#allocation2 + $0x20] sm:$0xff]
    %v1464 = vld [vmem:[#allocation2 + $0x28] sm:$0xff]
    %v1465 = vld [vmem:[#allocation2 + $0x30] sm:$0xff]
    %v1466 = vld [vmem:[#allocation2 + $0x38] sm:$0xff]
    %v1467 = vld [vmem:[#allocation2 + $0x40] sm:$0xff]
    %v1468 = vld [vmem:[#allocation2 + $0x48] sm:$0xff]
    %v1469 = vld [vmem:[#allocation2 + $0x50] sm:$0xff]
    %v1470 = vld [vmem:[#allocation2 + $0x58] sm:$0xff]
    %v1471 = vld [vmem:[#allocation2 + $0x60] sm:$0xff]
    %v1472 = vld [vmem:[#allocation2 + $0x68] sm:$0xff]
    %v1473 = vld [vmem:[#allocation2 + $0x70] sm:$0xff]
    %v1474 = vld [vmem:[#allocation2 + $0x78] sm:$0xff]
    %v1475 = vld [vmem:[#allocation2 + $0x80] sm:$0xff]
    %v1476 = vld [vmem:[#allocation2 + $0x88] sm:$0xff]
    %v1477 = vld [vmem:[#allocation2 + $0x90] sm:$0xff]
    %v1478 = vld [vmem:[#allocation2 + $0x98] sm:$0xff]
    %v1479 = vld [vmem:[#allocation2 + $0xa0] sm:$0xff]
    %v1480 = vld [vmem:[#allocation2 + $0xa8] sm:$0xff]
    %v1481 = vld [vmem:[#allocation2 + $0xb0] sm:$0xff]
    %v1482 = vld [vmem:[#allocation2 + $0xb8] sm:$0xff]
    %v1483 = vld [vmem:[#allocation2 + $0xc0] sm:$0xff]
    %v1484 = vld [vmem:[#allocation2 + $0xc8] sm:$0xff]
    %v1485 = vld [vmem:[#allocation2 + $0xd0] sm:$0xff]
    %v1486 = vld [vmem:[#allocation2 + $0xd8] sm:$0xff]
    %v1487 = vld [vmem:[#allocation2 + $0xe0] sm:$0xff]
    %v1488 = vld [vmem:[#allocation2 + $0xe8] sm:$0xff]
    %v1489 = vld [vmem:[#allocation2 + $0xf0] sm:$0xff]
    %v1490 = vld [vmem:[#allocation2 + $0xf8] sm:$0xff]
    %v1491 = vld [vmem:[#allocation2 + $0x100] sm:$0xff]
    %v1492 = vld [vmem:[#allocation2 + $0x108] sm:$0xff]
    %v1493 = vld [vmem:[#allocation2 + $0x110] sm:$0xff]
    %v1494 = vld [vmem:[#allocation2 + $0x118] sm:$0xff]
    %v1495 = vld [vmem:[#allocation2 + $0x120] sm:$0xff]
    %v1496 = vld [vmem:[#allocation2 + $0x128] sm:$0xff]
    %v1497 = vld [vmem:[#allocation2 + $0x130] sm:$0xff]
    %v1498 = vld [vmem:[#allocation2 + $0x138] sm:$0xff]
    %v1499 = vld [vmem:[#allocation2 + $0x140] sm:$0xff]
    %v1500 = vld [vmem:[#allocation2 + $0x148] sm:$0xff]
    %v1501 = vld [vmem:[#allocation2 + $0x150] sm:$0xff]
    %v1502 = vld [vmem:[#allocation2 + $0x158] sm:$0xff]
    %v1503 = vld [vmem:[#allocation2 + $0x160] sm:$0xff]
    %v1504 = vld [vmem:[#allocation2 + $0x168] sm:$0xff]
    %v1505 = vld [vmem:[#allocation2 + $0x170] sm:$0xff]
    %v1506 = vld [vmem:[#allocation2 + $0x178] sm:$0xff]
    %v1507 = vld [vmem:[#allocation2 + $0x180] sm:$0xff]
    %v1508 = vld [vmem:[#allocation2 + $0x188] sm:$0xff]
    %v1509 = vld [vmem:[#allocation2 + $0x190] sm:$0xff]
    %v1510 = vld [vmem:[#allocation2 + $0x198] sm:$0xff]
    %v1511 = vld [vmem:[#allocation2 + $0x1a0] sm:$0xff]
    %v1512 = vld [vmem:[#allocation2 + $0x1a8] sm:$0xff]
    %v1513 = vld [vmem:[#allocation2 + $0x1b0] sm:$0xff]
    %v1514 = vld [vmem:[#allocation2 + $0x1b8] sm:$0xff]
    %v1515 = vld [vmem:[#allocation2 + $0x1c0] sm:$0xff]
    %v1516 = vld [vmem:[#allocation2 + $0x1c8] sm:$0xff]
    %v1517 = vld [vmem:[#allocation2 + $0x1d0] sm:$0xff]
    %v1518 = vld [vmem:[#allocation2 + $0x1d8] sm:$0xff]
    %v1519 = vld [vmem:[#allocation2 + $0x1e0] sm:$0xff]
    %v1520 = vld [vmem:[#allocation2 + $0x1e8] sm:$0xff]
    %v1521 = vld [vmem:[#allocation2 + $0x1f0] sm:$0xff]
    %v1522 = vld [vmem:[#allocation2 + $0x1f8] sm:$0xff]
    %v1523 = vld [vmem:[#allocation2 + $0x200] sm:$0xff]
    %v1524 = vld [vmem:[#allocation2 + $0x208] sm:$0xff]
    %v1525 = vld [vmem:[#allocation2 + $0x210] sm:$0xff]
    %v1526 = vld [vmem:[#allocation2 + $0x218] sm:$0xff]
    %v1527 = vld [vmem:[#allocation2 + $0x220] sm:$0xff]
    %v1528 = vld [vmem:[#allocation2 + $0x228] sm:$0xff]
    %v1529 = vld [vmem:[#allocation2 + $0x230] sm:$0xff]
    %v1530 = vld [vmem:[#allocation2 + $0x238] sm:$0xff]
    %v1531 = vld [vmem:[#allocation2 + $0x240] sm:$0xff]
    %v1532 = vld [vmem:[#allocation2 + $0x248] sm:$0xff]
    %v1533 = vld [vmem:[#allocation2 + $0x250] sm:$0xff]
    %v1534 = vld [vmem:[#allocation2 + $0x258] sm:$0xff]
    %v1535 = vld [vmem:[#allocation2 + $0x260] sm:$0xff]
    %v1536 = vld [vmem:[#allocation2 + $0x268] sm:$0xff]
    %v1537 = vld [vmem:[#allocation2 + $0x270] sm:$0xff]
    %v1538 = vld [vmem:[#allocation2 + $0x278] sm:$0xff]
    %v1539 = vld [vmem:[#allocation2 + $0x280] sm:$0xff]
    %v1540 = vld [vmem:[#allocation2 + $0x288] sm:$0xff]
    %v1541 = vld [vmem:[#allocation2 + $0x290] sm:$0xff]
    %v1542 = vld [vmem:[#allocation2 + $0x298] sm:$0xff]
    %v1543 = vld [vmem:[#allocation2 + $0x2a0] sm:$0xff]
    %v1544 = vld [vmem:[#allocation2 + $0x2a8] sm:$0xff]
    %v1545 = vld [vmem:[#allocation2 + $0x2b0] sm:$0xff]
    %v1546 = vld [vmem:[#allocation2 + $0x2b8] sm:$0xff]
    %v1547 = vld [vmem:[#allocation2 + $0x2c0] sm:$0xff]
    %v1548 = vld [vmem:[#allocation2 + $0x2c8] sm:$0xff]
    %v1549 = vld [vmem:[#allocation2 + $0x2d0] sm:$0xff]
    %v1550 = vld [vmem:[#allocation2 + $0x2d8] sm:$0xff]
    %v1551 = vld [vmem:[#allocation2 + $0x2e0] sm:$0xff]
    %v1552 = vld [vmem:[#allocation2 + $0x2e8] sm:$0xff]
    %v1553 = vld [vmem:[#allocation2 + $0x2f0] sm:$0xff]
    %v1554 = vld [vmem:[#allocation2 + $0x2f8] sm:$0xff]
    %v1555 = vld [vmem:[#allocation2 + $0x300] sm:$0xff]
    %v1556 = vld [vmem:[#allocation2 + $0x308] sm:$0xff]
    %v1557 = vld [vmem:[#allocation2 + $0x310] sm:$0xff]
    %v1558 = vld [vmem:[#allocation2 + $0x318] sm:$0xff]
    %v1559 = vld [vmem:[#allocation2 + $0x320] sm:$0xff]
    %v1560 = vld [vmem:[#allocation2 + $0x328] sm:$0xff]
    %v1561 = vld [vmem:[#allocation2 + $0x330] sm:$0xff]
    %v1562 = vld [vmem:[#allocation2 + $0x338] sm:$0xff]
    %v1563 = vld [vmem:[#allocation2 + $0x340] sm:$0xff]
    %v1564 = vld [vmem:[#allocation2 + $0x348] sm:$0xff]
    %v1565 = vld [vmem:[#allocation2 + $0x350] sm:$0xff]
    %v1566 = vld [vmem:[#allocation2 + $0x358] sm:$0xff]
    %v1567 = vld [vmem:[#allocation2 + $0x360] sm:$0xff]
    %v1568 = vld [vmem:[#allocation2 + $0x368] sm:$0xff]
    %v1569 = vld [vmem:[#allocation2 + $0x370] sm:$0xff]
    %v1570 = vld [vmem:[#allocation2 + $0x378] sm:$0xff]
    %v1571 = vld [vmem:[#allocation2 + $0x380] sm:$0xff]
    %v1572 = vld [vmem:[#allocation2 + $0x388] sm:$0xff]
    %v1573 = vld [vmem:[#allocation2 + $0x390] sm:$0xff]
    %v1574 = vld [vmem:[#allocation2 + $0x398] sm:$0xff]
    %v1575 = vld [vmem:[#allocation2 + $0x3a0] sm:$0xff]
    %v1576 = vld [vmem:[#allocation2 + $0x3a8] sm:$0xff]
    %v1577 = vld [vmem:[#allocation2 + $0x3b0] sm:$0xff]
    %v1578 = vld [vmem:[#allocation2 + $0x3b8] sm:$0xff]
    %v1579 = vld [vmem:[#allocation2 + $0x3c0] sm:$0xff]
    %v1580 = vld [vmem:[#allocation2 + $0x3c8] sm:$0xff]
    %v1581 = vld [vmem:[#allocation2 + $0x3d0] sm:$0xff]
    %v1582 = vld [vmem:[#allocation2 + $0x3d8] sm:$0xff]
    %v1583 = vld [vmem:[#allocation2 + $0x3e0] sm:$0xff]
    %v1584 = vld [vmem:[#allocation2 + $0x3e8] sm:$0xff]
    %v1585 = vld [vmem:[#allocation2 + $0x3f0] sm:$0xff]
    %v1586 = vld [vmem:[#allocation2 + $0x3f8] sm:$0xff]
    %v1587 = vld [vmem:[#allocation2 + $0x400] sm:$0xff]
    %v1588 = vld [vmem:[#allocation2 + $0x408] sm:$0xff]
    %v1589 = vld [vmem:[#allocation2 + $0x410] sm:$0xff]
    %v1590 = vld [vmem:[#allocation2 + $0x418] sm:$0xff]
    %v1591 = vld [vmem:[#allocation2 + $0x420] sm:$0xff]
    %v1592 = vld [vmem:[#allocation2 + $0x428] sm:$0xff]
    %v1593 = vld [vmem:[#allocation2 + $0x430] sm:$0xff]
    %v1594 = vld [vmem:[#allocation2 + $0x438] sm:$0xff]
    %v1595 = vld [vmem:[#allocation2 + $0x440] sm:$0xff]
    %v1596 = vld [vmem:[#allocation2 + $0x448] sm:$0xff]
    %v1597 = vld [vmem:[#allocation2 + $0x450] sm:$0xff]
    %v1598 = vld [vmem:[#allocation2 + $0x458] sm:$0xff]
    %v1599 = vld [vmem:[#allocation2 + $0x460] sm:$0xff]
    %v1600 = vld [vmem:[#allocation2 + $0x468] sm:$0xff]
    %v1601 = vld [vmem:[#allocation2 + $0x470] sm:$0xff]
    %v1602 = vld [vmem:[#allocation2 + $0x478] sm:$0xff]
    %v1603 = vld [vmem:[#allocation2 + $0x480] sm:$0xff]
    %v1604 = vld [vmem:[#allocation2 + $0x488] sm:$0xff]
    %v1605 = vld [vmem:[#allocation2 + $0x490] sm:$0xff]
    %v1606 = vld [vmem:[#allocation2 + $0x498] sm:$0xff]
    %v1607 = vld [vmem:[#allocation2 + $0x4a0] sm:$0xff]
    %v1608 = vld [vmem:[#allocation2 + $0x4a8] sm:$0xff]
    %v1609 = vld [vmem:[#allocation2 + $0x4b0] sm:$0xff]
    %v1610 = vld [vmem:[#allocation2 + $0x4b8] sm:$0xff]
    %v1611 = vld [vmem:[#allocation2 + $0x4c0] sm:$0xff]
    %v1612 = vld [vmem:[#allocation2 + $0x4c8] sm:$0xff]
    %v1613 = vld [vmem:[#allocation2 + $0x4d0] sm:$0xff]
    %v1614 = vld [vmem:[#allocation2 + $0x4d8] sm:$0xff]
    %v1615 = vld [vmem:[#allocation2 + $0x4e0] sm:$0xff]
    %v1616 = vld [vmem:[#allocation2 + $0x4e8] sm:$0xff]
    %v1617 = vld [vmem:[#allocation2 + $0x4f0] sm:$0xff]
    %v1618 = vld [vmem:[#allocation2 + $0x4f8] sm:$0xff]
    %v1619 = vld [vmem:[#allocation2 + $0x500] sm:$0xff]
    %v1620 = vld [vmem:[#allocation2 + $0x508] sm:$0xff]
    %v1621 = vld [vmem:[#allocation2 + $0x510] sm:$0xff]
    %v1622 = vld [vmem:[#allocation2 + $0x518] sm:$0xff]
    %v1623 = vld [vmem:[#allocation2 + $0x520] sm:$0xff]
    %v1624 = vld [vmem:[#allocation2 + $0x528] sm:$0xff]
    %v1625 = vld [vmem:[#allocation2 + $0x530] sm:$0xff]
    %v1626 = vld [vmem:[#allocation2 + $0x538] sm:$0xff]
    %v1627 = vld [vmem:[#allocation2 + $0x540] sm:$0xff]
    %v1628 = vld [vmem:[#allocation2 + $0x548] sm:$0xff]
    %v1629 = vld [vmem:[#allocation2 + $0x550] sm:$0xff]
    %v1630 = vld [vmem:[#allocation2 + $0x558] sm:$0xff]
    %v1631 = vld [vmem:[#allocation2 + $0x560] sm:$0xff]
    %v1632 = vld [vmem:[#allocation2 + $0x568] sm:$0xff]
    %v1633 = vld [vmem:[#allocation2 + $0x570] sm:$0xff]
    %v1634 = vld [vmem:[#allocation2 + $0x578] sm:$0xff]
    %v1635 = vld [vmem:[#allocation2 + $0x580] sm:$0xff]
    %v1636 = vld [vmem:[#allocation2 + $0x588] sm:$0xff]
    %v1637 = vld [vmem:[#allocation2 + $0x590] sm:$0xff]
    %v1638 = vld [vmem:[#allocation2 + $0x598] sm:$0xff]
    %v1639 = vld [vmem:[#allocation2 + $0x5a0] sm:$0xff]
    %v1640 = vld [vmem:[#allocation2 + $0x5a8] sm:$0xff]
    %v1641 = vld [vmem:[#allocation2 + $0x5b0] sm:$0xff]
    %v1642 = vld [vmem:[#allocation2 + $0x5b8] sm:$0xff]
    %v1643 = vld [vmem:[#allocation2 + $0x5c0] sm:$0xff]
    %v1644 = vld [vmem:[#allocation2 + $0x5c8] sm:$0xff]
    %v1645 = vld [vmem:[#allocation2 + $0x5d0] sm:$0xff]
    %v1646 = vld [vmem:[#allocation2 + $0x5d8] sm:$0xff]
    %v1647 = vld [vmem:[#allocation2 + $0x5e0] sm:$0xff]
    %v1648 = vld [vmem:[#allocation2 + $0x5e8] sm:$0xff]
    %v1649 = vld [vmem:[#allocation2 + $0x5f0] sm:$0xff]
    %v1650 = vld [vmem:[#allocation2 + $0x5f8] sm:$0xff]
    %v1651 = vld [vmem:[#allocation2 + $0x600] sm:$0xff]
    %v1652 = vld [vmem:[#allocation2 + $0x608] sm:$0xff]
    %v1653 = vld [vmem:[#allocation2 + $0x610] sm:$0xff]
    %v1654 = vld [vmem:[#allocation2 + $0x618] sm:$0xff]
    %v1655 = vld [vmem:[#allocation2 + $0x620] sm:$0xff]
    %v1656 = vld [vmem:[#allocation2 + $0x628] sm:$0xff]
    %v1657 = vld [vmem:[#allocation2 + $0x630] sm:$0xff]
    %v1658 = vld [vmem:[#allocation2 + $0x638] sm:$0xff]
    %v1659 = vld [vmem:[#allocation2 + $0x640] sm:$0xff]
    %v1660 = vld [vmem:[#allocation2 + $0x648] sm:$0xff]
    %v1661 = vld [vmem:[#allocation2 + $0x650] sm:$0xff]
    %v1662 = vld [vmem:[#allocation2 + $0x658] sm:$0xff]
    %v1663 = vld [vmem:[#allocation2 + $0x660] sm:$0xff]
    %v1664 = vld [vmem:[#allocation2 + $0x668] sm:$0xff]
    %v1665 = vld [vmem:[#allocation2 + $0x670] sm:$0xff]
    %v1666 = vld [vmem:[#allocation2 + $0x678] sm:$0xff]
    %v1667 = vld [vmem:[#allocation2 + $0x680] sm:$0xff]
    %v1668 = vld [vmem:[#allocation2 + $0x688] sm:$0xff]
    %v1669 = vld [vmem:[#allocation2 + $0x690] sm:$0xff]
    %v1670 = vld [vmem:[#allocation2 + $0x698] sm:$0xff]
    %v1671 = vld [vmem:[#allocation2 + $0x6a0] sm:$0xff]
    %v1672 = vld [vmem:[#allocation2 + $0x6a8] sm:$0xff]
    %v1673 = vld [vmem:[#allocation2 + $0x6b0] sm:$0xff]
    %v1674 = vld [vmem:[#allocation2 + $0x6b8] sm:$0xff]
    %v1675 = vld [vmem:[#allocation2 + $0x6c0] sm:$0xff]
    %v1676 = vld [vmem:[#allocation2 + $0x6c8] sm:$0xff]
    %v1677 = vld [vmem:[#allocation2 + $0x6d0] sm:$0xff]
    %v1678 = vld [vmem:[#allocation2 + $0x6d8] sm:$0xff]
    %v1679 = vld [vmem:[#allocation2 + $0x6e0] sm:$0xff]
    %v1680 = vld [vmem:[#allocation2 + $0x6e8] sm:$0xff]
    %v1681 = vld [vmem:[#allocation2 + $0x6f0] sm:$0xff]
    %v1682 = vld [vmem:[#allocation2 + $0x6f8] sm:$0xff]
    %v1683 = vld [vmem:[#allocation2 + $0x700] sm:$0xff]
    %v1684 = vld [vmem:[#allocation2 + $0x708] sm:$0xff]
    %v1685 = vld [vmem:[#allocation2 + $0x710] sm:$0xff]
    %v1686 = vld [vmem:[#allocation2 + $0x718] sm:$0xff]
    %v1687 = vld [vmem:[#allocation2 + $0x720] sm:$0xff]
    %v1688 = vld [vmem:[#allocation2 + $0x728] sm:$0xff]
    %v1689 = vld [vmem:[#allocation2 + $0x730] sm:$0xff]
    %v1690 = vld [vmem:[#allocation2 + $0x738] sm:$0xff]
    %v1691 = vld [vmem:[#allocation2 + $0x740] sm:$0xff]
    %v1692 = vld [vmem:[#allocation2 + $0x748] sm:$0xff]
    %v1693 = vld [vmem:[#allocation2 + $0x750] sm:$0xff]
    %v1694 = vld [vmem:[#allocation2 + $0x758] sm:$0xff]
    %v1695 = vld [vmem:[#allocation2 + $0x760] sm:$0xff]
    %v1696 = vld [vmem:[#allocation2 + $0x768] sm:$0xff]
    %v1697 = vld [vmem:[#allocation2 + $0x770] sm:$0xff]
    %v1698 = vld [vmem:[#allocation2 + $0x778] sm:$0xff]
    %v1699 = vld [vmem:[#allocation2 + $0x780] sm:$0xff]
    %v1700 = vld [vmem:[#allocation2 + $0x788] sm:$0xff]
    %v1701 = vld [vmem:[#allocation2 + $0x790] sm:$0xff]
    %v1702 = vld [vmem:[#allocation2 + $0x798] sm:$0xff]
    %v1703 = vld [vmem:[#allocation2 + $0x7a0] sm:$0xff]
    %v1704 = vld [vmem:[#allocation2 + $0x7a8] sm:$0xff]
    %v1705 = vld [vmem:[#allocation2 + $0x7b0] sm:$0xff]
    %v1706 = vld [vmem:[#allocation2 + $0x7b8] sm:$0xff]
    %v1707 = vld [vmem:[#allocation2 + $0x7c0] sm:$0xff]
    %v1708 = vld [vmem:[#allocation2 + $0x7c8] sm:$0xff]
    %v1709 = vld [vmem:[#allocation2 + $0x7d0] sm:$0xff]
    %v1710 = vld [vmem:[#allocation2 + $0x7d8] sm:$0xff]
    %v1711 = vld [vmem:[#allocation2 + $0x7e0] sm:$0xff]
    %v1712 = vld [vmem:[#allocation2 + $0x7e8] sm:$0xff]
    %v1713 = vld [vmem:[#allocation2 + $0x7f0] sm:$0xff]
    %v1714 = vld [vmem:[#allocation2 + $0x7f8] sm:$0xff]
    %v1715 = vld [vmem:[#allocation2 + $0x800] sm:$0xff]
    %v1716 = vld [vmem:[#allocation2 + $0x808] sm:$0xff]
    %v1717 = vld [vmem:[#allocation2 + $0x810] sm:$0xff]
    %v1718 = vld [vmem:[#allocation2 + $0x818] sm:$0xff]
    %v1719 = vld [vmem:[#allocation2 + $0x820] sm:$0xff]
    %v1720 = vld [vmem:[#allocation2 + $0x828] sm:$0xff]
    %v1721 = vld [vmem:[#allocation2 + $0x830] sm:$0xff]
    %v1722 = vld [vmem:[#allocation2 + $0x838] sm:$0xff]
    %v1723 = vld [vmem:[#allocation2 + $0x840] sm:$0xff]
    %v1724 = vld [vmem:[#allocation2 + $0x848] sm:$0xff]
    %v1725 = vld [vmem:[#allocation2 + $0x850] sm:$0xff]
    %v1726 = vld [vmem:[#allocation2 + $0x858] sm:$0xff]
    %v1727 = vld [vmem:[#allocation2 + $0x860] sm:$0xff]
    %v1728 = vld [vmem:[#allocation2 + $0x868] sm:$0xff]
    %v1729 = vld [vmem:[#allocation2 + $0x870] sm:$0xff]
    %v1730 = vld [vmem:[#allocation2 + $0x878] sm:$0xff]
    %v1731 = vld [vmem:[#allocation2 + $0x880] sm:$0xff]
    %v1732 = vld [vmem:[#allocation2 + $0x888] sm:$0xff]
    %v1733 = vld [vmem:[#allocation2 + $0x890] sm:$0xff]
    %v1734 = vld [vmem:[#allocation2 + $0x898] sm:$0xff]
    %v1735 = vld [vmem:[#allocation2 + $0x8a0] sm:$0xff]
    %v1736 = vld [vmem:[#allocation2 + $0x8a8] sm:$0xff]
    %v1737 = vld [vmem:[#allocation2 + $0x8b0] sm:$0xff]
    %v1738 = vld [vmem:[#allocation2 + $0x8b8] sm:$0xff]
    %v1739 = vld [vmem:[#allocation2 + $0x8c0] sm:$0xff]
    %v1740 = vld [vmem:[#allocation2 + $0x8c8] sm:$0xff]
    %v1741 = vld [vmem:[#allocation2 + $0x8d0] sm:$0xff]
    %v1742 = vld [vmem:[#allocation2 + $0x8d8] sm:$0xff]
    %v1743 = vld [vmem:[#allocation2 + $0x8e0] sm:$0xff]
    %v1744 = vld [vmem:[#allocation2 + $0x8e8] sm:$0xff]
    %v1745 = vld [vmem:[#allocation2 + $0x8f0] sm:$0xff]
    %v1746 = vld [vmem:[#allocation2 + $0x8f8] sm:$0xff]
    %v1747 = vld [vmem:[#allocation2 + $0x900] sm:$0xff]
    %v1748 = vld [vmem:[#allocation2 + $0x908] sm:$0xff]
    %v1749 = vld [vmem:[#allocation2 + $0x910] sm:$0xff]
    %v1750 = vld [vmem:[#allocation2 + $0x918] sm:$0xff]
    %v1751 = vld [vmem:[#allocation2 + $0x920] sm:$0xff]
    %v1752 = vld [vmem:[#allocation2 + $0x928] sm:$0xff]
    %v1753 = vld [vmem:[#allocation2 + $0x930] sm:$0xff]
    %v1754 = vld [vmem:[#allocation2 + $0x938] sm:$0xff]
    %v1755 = vld [vmem:[#allocation2 + $0x940] sm:$0xff]
    %v1756 = vld [vmem:[#allocation2 + $0x948] sm:$0xff]
    %v1757 = vld [vmem:[#allocation2 + $0x950] sm:$0xff]
    %v1758 = vld [vmem:[#allocation2 + $0x958] sm:$0xff]
    %v1759 = vld [vmem:[#allocation2 + $0x960] sm:$0xff]
    %v1760 = vld [vmem:[#allocation2 + $0x968] sm:$0xff]
    %v1761 = vld [vmem:[#allocation2 + $0x970] sm:$0xff]
    %v1762 = vld [vmem:[#allocation2 + $0x978] sm:$0xff]
    %v1763 = vld [vmem:[#allocation2 + $0x980] sm:$0xff]
    %v1764 = vld [vmem:[#allocation2 + $0x988] sm:$0xff]
    %v1765 = vld [vmem:[#allocation2 + $0x990] sm:$0xff]
    %v1766 = vld [vmem:[#allocation2 + $0x998] sm:$0xff]
    %v1767 = vld [vmem:[#allocation2 + $0x9a0] sm:$0xff]
    %v1768 = vld [vmem:[#allocation2 + $0x9a8] sm:$0xff]
    %v1769 = vld [vmem:[#allocation2 + $0x9b0] sm:$0xff]
    %v1770 = vld [vmem:[#allocation2 + $0x9b8] sm:$0xff]
    %v1771 = vld [vmem:[#allocation2 + $0x9c0] sm:$0xff]
    %v1772 = vld [vmem:[#allocation2 + $0x9c8] sm:$0xff]
    %v1773 = vld [vmem:[#allocation2 + $0x9d0] sm:$0xff]
    %v1774 = vld [vmem:[#allocation2 + $0x9d8] sm:$0xff]
    %v1775 = vld [vmem:[#allocation2 + $0x9e0] sm:$0xff]
    %v1776 = vld [vmem:[#allocation2 + $0x9e8] sm:$0xff]
    %v1777 = vld [vmem:[#allocation2 + $0x9f0] sm:$0xff]
    %v1778 = vld [vmem:[#allocation2 + $0x9f8] sm:$0xff]
    %v1779 = vld [vmem:[#allocation2 + $0xa00] sm:$0xff]
    %v1780 = vld [vmem:[#allocation2 + $0xa08] sm:$0xff]
    %v1781 = vld [vmem:[#allocation2 + $0xa10] sm:$0xff]
    %v1782 = vld [vmem:[#allocation2 + $0xa18] sm:$0xff]
    %v1783 = vld [vmem:[#allocation2 + $0xa20] sm:$0xff]
    %v1784 = vld [vmem:[#allocation2 + $0xa28] sm:$0xff]
    %v1785 = vld [vmem:[#allocation2 + $0xa30] sm:$0xff]
    %v1786 = vld [vmem:[#allocation2 + $0xa38] sm:$0xff]
    %v1787 = vld [vmem:[#allocation2 + $0xa40] sm:$0xff]
    %v1788 = vld [vmem:[#allocation2 + $0xa48] sm:$0xff]
    %v1789 = vld [vmem:[#allocation2 + $0xa50] sm:$0xff]
    %v1790 = vld [vmem:[#allocation2 + $0xa58] sm:$0xff]
    %v1791 = vld [vmem:[#allocation2 + $0xa60] sm:$0xff]
    %v1792 = vld [vmem:[#allocation2 + $0xa68] sm:$0xff]
    %v1793 = vld [vmem:[#allocation2 + $0xa70] sm:$0xff]
    %v1794 = vld [vmem:[#allocation2 + $0xa78] sm:$0xff]
    %v1795 = vld [vmem:[#allocation2 + $0xa80] sm:$0xff]
    %v1796 = vld [vmem:[#allocation2 + $0xa88] sm:$0xff]
    %v1797 = vld [vmem:[#allocation2 + $0xa90] sm:$0xff]
    %v1798 = vld [vmem:[#allocation2 + $0xa98] sm:$0xff]
    %v1799 = vld [vmem:[#allocation2 + $0xaa0] sm:$0xff]
    %v1800 = vld [vmem:[#allocation2 + $0xaa8] sm:$0xff]
    %v1801 = vld [vmem:[#allocation2 + $0xab0] sm:$0xff]
    %v1802 = vld [vmem:[#allocation2 + $0xab8] sm:$0xff]
    %v1803 = vld [vmem:[#allocation2 + $0xac0] sm:$0xff]
    %v1804 = vld [vmem:[#allocation2 + $0xac8] sm:$0xff]
    %v1805 = vld [vmem:[#allocation2 + $0xad0] sm:$0xff]
    %v1806 = vld [vmem:[#allocation2 + $0xad8] sm:$0xff]
    %v1807 = vld [vmem:[#allocation2 + $0xae0] sm:$0xff]
    %v1808 = vld [vmem:[#allocation2 + $0xae8] sm:$0xff]
    %v1809 = vld [vmem:[#allocation2 + $0xaf0] sm:$0xff]
    %v1810 = vld [vmem:[#allocation2 + $0xaf8] sm:$0xff]
    %v1811 = vld [vmem:[#allocation2 + $0xb00] sm:$0xff]
    %v1812 = vld [vmem:[#allocation2 + $0xb08] sm:$0xff]
    %v1813 = vld [vmem:[#allocation2 + $0xb10] sm:$0xff]
    %v1814 = vld [vmem:[#allocation2 + $0xb18] sm:$0xff]
    %v1815 = vld [vmem:[#allocation2 + $0xb20] sm:$0xff]
    %v1816 = vld [vmem:[#allocation2 + $0xb28] sm:$0xff]
    %v1817 = vld [vmem:[#allocation2 + $0xb30] sm:$0xff]
    %v1818 = vld [vmem:[#allocation2 + $0xb38] sm:$0xff]
    %v1819 = vld [vmem:[#allocation2 + $0xb40] sm:$0xff]
    %v1820 = vld [vmem:[#allocation2 + $0xb48] sm:$0xff]
    %v1821 = vld [vmem:[#allocation2 + $0xb50] sm:$0xff]
    %v1822 = vld [vmem:[#allocation2 + $0xb58] sm:$0xff]
    %v1823 = vld [vmem:[#allocation2 + $0xb60] sm:$0xff]
    %v1824 = vld [vmem:[#allocation2 + $0xb68] sm:$0xff]
    %v1825 = vld [vmem:[#allocation2 + $0xb70] sm:$0xff]
    %v1826 = vld [vmem:[#allocation2 + $0xb78] sm:$0xff]
    %v1827 = vld [vmem:[#allocation2 + $0xb80] sm:$0xff]
    %v1828 = vld [vmem:[#allocation2 + $0xb88] sm:$0xff]
    %v1829 = vld [vmem:[#allocation2 + $0xb90] sm:$0xff]
    %v1830 = vld [vmem:[#allocation2 + $0xb98] sm:$0xff]
    %v1831 = vld [vmem:[#allocation2 + $0xba0] sm:$0xff]
    %v1832 = vld [vmem:[#allocation2 + $0xba8] sm:$0xff]
    %v1833 = vld [vmem:[#allocation2 + $0xbb0] sm:$0xff]
    %v1834 = vld [vmem:[#allocation2 + $0xbb8] sm:$0xff]
    %v1835 = vld [vmem:[#allocation2 + $0xbc0] sm:$0xff]
    %v1836 = vld [vmem:[#allocation2 + $0xbc8] sm:$0xff]
    %v1837 = vld [vmem:[#allocation2 + $0xbd0] sm:$0xff]
    %v1838 = vld [vmem:[#allocation2 + $0xbd8] sm:$0xff]
    %v1839 = vld [vmem:[#allocation2 + $0xbe0] sm:$0xff]
    %v1840 = vld [vmem:[#allocation2 + $0xbe8] sm:$0xff]
    %v1841 = vld [vmem:[#allocation2 + $0xbf0] sm:$0xff]
    %v1842 = vld [vmem:[#allocation2 + $0xbf8] sm:$0xff]
    %v1843 = vld [vmem:[#allocation2 + $0xc00] sm:$0xff]
    %v1844 = vld [vmem:[#allocation2 + $0xc08] sm:$0xff]
    %v1845 = vld [vmem:[#allocation2 + $0xc10] sm:$0xff]
    %v1846 = vld [vmem:[#allocation2 + $0xc18] sm:$0xff]
    %v1847 = vld [vmem:[#allocation2 + $0xc20] sm:$0xff]
    %v1848 = vld [vmem:[#allocation2 + $0xc28] sm:$0xff]
    %v1849 = vld [vmem:[#allocation2 + $0xc30] sm:$0xff]
    %v1850 = vld [vmem:[#allocation2 + $0xc38] sm:$0xff]
    %v1851 = vld [vmem:[#allocation2 + $0xc40] sm:$0xff]
    %v1852 = vld [vmem:[#allocation2 + $0xc48] sm:$0xff]
    %v1853 = vld [vmem:[#allocation2 + $0xc50] sm:$0xff]
    %v1854 = vld [vmem:[#allocation2 + $0xc58] sm:$0xff]
    %v1855 = vld [vmem:[#allocation2 + $0xc60] sm:$0xff]
    %v1856 = vld [vmem:[#allocation2 + $0xc68] sm:$0xff]
    %v1857 = vld [vmem:[#allocation2 + $0xc70] sm:$0xff]
    %v1858 = vld [vmem:[#allocation2 + $0xc78] sm:$0xff]
    %v1859 = vld [vmem:[#allocation2 + $0xc80] sm:$0xff]
    %v1860 = vld [vmem:[#allocation2 + $0xc88] sm:$0xff]
    %v1861 = vld [vmem:[#allocation2 + $0xc90] sm:$0xff]
    %v1862 = vld [vmem:[#allocation2 + $0xc98] sm:$0xff]
    %v1863 = vld [vmem:[#allocation2 + $0xca0] sm:$0xff]
    %v1864 = vld [vmem:[#allocation2 + $0xca8] sm:$0xff]
    %v1865 = vld [vmem:[#allocation2 + $0xcb0] sm:$0xff]
    %v1866 = vld [vmem:[#allocation2 + $0xcb8] sm:$0xff]
    %v1867 = vld [vmem:[#allocation2 + $0xcc0] sm:$0xff]
    %v1868 = vld [vmem:[#allocation2 + $0xcc8] sm:$0xff]
    %v1869 = vld [vmem:[#allocation2 + $0xcd0] sm:$0xff]
    %v1870 = vld [vmem:[#allocation2 + $0xcd8] sm:$0xff]
    %v1871 = vld [vmem:[#allocation2 + $0xce0] sm:$0xff]
    %v1872 = vld [vmem:[#allocation2 + $0xce8] sm:$0xff]
    %v1873 = vld [vmem:[#allocation2 + $0xcf0] sm:$0xff]
    %v1874 = vld [vmem:[#allocation2 + $0xcf8] sm:$0xff]
    %v1875 = vld [vmem:[#allocation2 + $0xd00] sm:$0xff]
    %v1876 = vld [vmem:[#allocation2 + $0xd08] sm:$0xff]
    %v1877 = vld [vmem:[#allocation2 + $0xd10] sm:$0xff]
    %v1878 = vld [vmem:[#allocation2 + $0xd18] sm:$0xff]
    %v1879 = vld [vmem:[#allocation2 + $0xd20] sm:$0xff]
    %v1880 = vld [vmem:[#allocation2 + $0xd28] sm:$0xff]
    %v1881 = vld [vmem:[#allocation2 + $0xd30] sm:$0xff]
    %v1882 = vld [vmem:[#allocation2 + $0xd38] sm:$0xff]
    %v1883 = vld [vmem:[#allocation2 + $0xd40] sm:$0xff]
    %v1884 = vld [vmem:[#allocation2 + $0xd48] sm:$0xff]
    %v1885 = vld [vmem:[#allocation2 + $0xd50] sm:$0xff]
    %v1886 = vld [vmem:[#allocation2 + $0xd58] sm:$0xff]
    %v1887 = vld [vmem:[#allocation2 + $0xd60] sm:$0xff]
    %v1888 = vld [vmem:[#allocation2 + $0xd68] sm:$0xff]
    %v1889 = vld [vmem:[#allocation2 + $0xd70] sm:$0xff]
    %v1890 = vld [vmem:[#allocation2 + $0xd78] sm:$0xff]
    %v1891 = vld [vmem:[#allocation2 + $0xd80] sm:$0xff]
    %v1892 = vld [vmem:[#allocation2 + $0xd88] sm:$0xff]
    %v1893 = vld [vmem:[#allocation2 + $0xd90] sm:$0xff]
    %v1894 = vld [vmem:[#allocation2 + $0xd98] sm:$0xff]
    %v1895 = vld [vmem:[#allocation2 + $0xda0] sm:$0xff]
    %v1896 = vld [vmem:[#allocation2 + $0xda8] sm:$0xff]
    %v1897 = vld [vmem:[#allocation2 + $0xdb0] sm:$0xff]
    %v1898 = vld [vmem:[#allocation2 + $0xdb8] sm:$0xff]
    %v1899 = vld [vmem:[#allocation2 + $0xdc0] sm:$0xff]
    %v1900 = vld [vmem:[#allocation2 + $0xdc8] sm:$0xff]
    %v1901 = vld [vmem:[#allocation2 + $0xdd0] sm:$0xff]
    %v1902 = vld [vmem:[#allocation2 + $0xdd8] sm:$0xff]
    %v1903 = vld [vmem:[#allocation2 + $0xde0] sm:$0xff]
    %v1904 = vld [vmem:[#allocation2 + $0xde8] sm:$0xff]
    %v1905 = vld [vmem:[#allocation2 + $0xdf0] sm:$0xff]
    %v1906 = vld [vmem:[#allocation2 + $0xdf8] sm:$0xff]
    %v1907 = vld [vmem:[#allocation2 + $0xe00] sm:$0xff]
    %v1908 = vld [vmem:[#allocation2 + $0xe08] sm:$0xff]
    %v1909 = vld [vmem:[#allocation2 + $0xe10] sm:$0xff]
    %v1910 = vld [vmem:[#allocation2 + $0xe18] sm:$0xff]
    %v1911 = vld [vmem:[#allocation2 + $0xe20] sm:$0xff]
    %v1912 = vld [vmem:[#allocation2 + $0xe28] sm:$0xff]
    %v1913 = vld [vmem:[#allocation2 + $0xe30] sm:$0xff]
    %v1914 = vld [vmem:[#allocation2 + $0xe38] sm:$0xff]
    %v1915 = vld [vmem:[#allocation2 + $0xe40] sm:$0xff]
    %v1916 = vld [vmem:[#allocation2 + $0xe48] sm:$0xff]
    %v1917 = vld [vmem:[#allocation2 + $0xe50] sm:$0xff]
    %v1918 = vld [vmem:[#allocation2 + $0xe58] sm:$0xff]
    %v1919 = vld [vmem:[#allocation2 + $0xe60] sm:$0xff]
    %v1920 = vld [vmem:[#allocation2 + $0xe68] sm:$0xff]
    %v1921 = vld [vmem:[#allocation2 + $0xe70] sm:$0xff]
    %v1922 = vld [vmem:[#allocation2 + $0xe78] sm:$0xff]
    %v1923 = vld [vmem:[#allocation2 + $0xe80] sm:$0xff]
    %v1924 = vld [vmem:[#allocation2 + $0xe88] sm:$0xff]
    %v1925 = vld [vmem:[#allocation2 + $0xe90] sm:$0xff]
    %v1926 = vld [vmem:[#allocation2 + $0xe98] sm:$0xff]
    %v1927 = vld [vmem:[#allocation2 + $0xea0] sm:$0xff]
    %v1928 = vld [vmem:[#allocation2 + $0xea8] sm:$0xff]
    %v1929 = vld [vmem:[#allocation2 + $0xeb0] sm:$0xff]
    %v1930 = vld [vmem:[#allocation2 + $0xeb8] sm:$0xff]
    %v1931 = vld [vmem:[#allocation2 + $0xec0] sm:$0xff]
    %v1932 = vld [vmem:[#allocation2 + $0xec8] sm:$0xff]
    %v1933 = vld [vmem:[#allocation2 + $0xed0] sm:$0xff]
    %v1934 = vld [vmem:[#allocation2 + $0xed8] sm:$0xff]
    %v1935 = vld [vmem:[#allocation2 + $0xee0] sm:$0xff]
    %v1936 = vld [vmem:[#allocation2 + $0xee8] sm:$0xff]
    %v1937 = vld [vmem:[#allocation2 + $0xef0] sm:$0xff]
    %v1938 = vld [vmem:[#allocation2 + $0xef8] sm:$0xff]
    %v1939 = vld [vmem:[#allocation2 + $0xf00] sm:$0xff]
    %v1940 = vld [vmem:[#allocation2 + $0xf08] sm:$0xff]
    %v1941 = vld [vmem:[#allocation2 + $0xf10] sm:$0xff]
    %v1942 = vld [vmem:[#allocation2 + $0xf18] sm:$0xff]
    %v1943 = vld [vmem:[#allocation2 + $0xf20] sm:$0xff]
    %v1944 = vld [vmem:[#allocation2 + $0xf28] sm:$0xff]
    %v1945 = vld [vmem:[#allocation2 + $0xf30] sm:$0xff]
    %v1946 = vld [vmem:[#allocation2 + $0xf38] sm:$0xff]
    %v1947 = vld [vmem:[#allocation2 + $0xf40] sm:$0xff]
    %v1948 = vld [vmem:[#allocation2 + $0xf48] sm:$0xff]
    %v1949 = vld [vmem:[#allocation2 + $0xf50] sm:$0xff]
    %v1950 = vld [vmem:[#allocation2 + $0xf58] sm:$0xff]
    %v1951 = vld [vmem:[#allocation2 + $0xf60] sm:$0xff]
    %v1952 = vld [vmem:[#allocation2 + $0xf68] sm:$0xff]
    %v1953 = vld [vmem:[#allocation2 + $0xf70] sm:$0xff]
    %v1954 = vld [vmem:[#allocation2 + $0xf78] sm:$0xff]
    %v1955 = vld [vmem:[#allocation2 + $0xf80] sm:$0xff]
    %v1956 = vld [vmem:[#allocation2 + $0xf88] sm:$0xff]
    %v1957 = vld [vmem:[#allocation2 + $0xf90] sm:$0xff]
    %v1958 = vld [vmem:[#allocation2 + $0xf98] sm:$0xff]
    %v1959 = vld [vmem:[#allocation2 + $0xfa0] sm:$0xff]
    %v1960 = vld [vmem:[#allocation2 + $0xfa8] sm:$0xff]
    %v1961 = vld [vmem:[#allocation2 + $0xfb0] sm:$0xff]
    %v1962 = vld [vmem:[#allocation2 + $0xfb8] sm:$0xff]
    %v1963 = vld [vmem:[#allocation2 + $0xfc0] sm:$0xff]
    %v1964 = vld [vmem:[#allocation2 + $0xfc8] sm:$0xff]
    %v1965 = vld [vmem:[#allocation2 + $0xfd0] sm:$0xff]
    %v1966 = vld [vmem:[#allocation2 + $0xfd8] sm:$0xff]
    %v1967 = vld [vmem:[#allocation2 + $0xfe0] sm:$0xff]
    %v1968 = vld [vmem:[#allocation2 + $0xfe8] sm:$0xff]
    %v1969 = vld [vmem:[#allocation2 + $0xff0] sm:$0xff]
    %v1970 = vld [vmem:[#allocation2 + $0xff8] sm:$0xff]
    %1971 = vmatprep.subr.bf16.mxu0 %v1460
    %1972 = vmatpush1.bf16.msra.mxu0 %v1459
    %1973 = vmatprep.subr.bf16.mxu0 %v1468
    %1974 = vmatpush1.bf16.msra.mxu0 %v1467
    %1975 = vmatprep.subr.bf16.mxu0 %v1476
    %1976 = vmatpush1.bf16.msra.mxu0 %v1475
    %1977 = vmatprep.subr.bf16.mxu0 %v1484
    %1978 = vmatpush1.bf16.msra.mxu0 %v1483
    %1979 = vmatprep.subr.bf16.mxu0 %v1492
    %1980 = vmatpush1.bf16.msra.mxu0 %v1491
    %1981 = vmatprep.subr.bf16.mxu0 %v1500
    %1982 = vmatpush1.bf16.msra.mxu0 %v1499
    %1983 = vmatprep.subr.bf16.mxu0 %v1508
    %1984 = vmatpush1.bf16.msra.mxu0 %v1507
    %1985 = vmatprep.subr.bf16.mxu0 %v1516
    %1986 = vmatpush1.bf16.msra.mxu0 %v1515
    %1987 = vmatprep.subr.bf16.mxu0 %v1524
    %1988 = vmatpush1.bf16.msra.mxu0 %v1523
    %1989 = vmatprep.subr.bf16.mxu0 %v1532
    %1990 = vmatpush1.bf16.msra.mxu0 %v1531
    %1991 = vmatprep.subr.bf16.mxu0 %v1540
    %1992 = vmatpush1.bf16.msra.mxu0 %v1539
    %1993 = vmatprep.subr.bf16.mxu0 %v1548
    %1994 = vmatpush1.bf16.msra.mxu0 %v1547
    %1995 = vmatprep.subr.bf16.mxu0 %v1556
    %1996 = vmatpush1.bf16.msra.mxu0 %v1555
    %1997 = vmatprep.subr.bf16.mxu0 %v1564
    %1998 = vmatpush1.bf16.msra.mxu0 %v1563
    %1999 = vmatprep.subr.bf16.mxu0 %v1572
    %2000 = vmatpush1.bf16.msra.mxu0 %v1571
    %2001 = vmatprep.subr.bf16.mxu0 %v1580
    %2002 = vmatpush1.bf16.msra.mxu0 %v1579
    %2003 = vmatprep.mubr.bf16.mxu0 %v1452
    %2004 = vmatmul.mubr.bf16.gmra.mrb[0].mxu0 %v1451
    %v2005 = vpop.f32.mrb[0].mxu0
    %v2006 = vadd.f32 0.0, %v2005
    %v2007 = vpop.f32.mrb[0].mxu0
    %v2008 = vadd.f32 0.0, %v2007
    %v2009 = vpop.f32.mrb[0].mxu0
    %v2010 = vpop.f32.mrb[0].mxu0
    %2011 = vdwg.mxu0
    %2012 = vmatprep.subr.bf16.mxu0 %v1588
    %2013 = vmatpush1.bf16.msra.mxu0 %v1587
    %2014 = vmatprep.subr.bf16.mxu0 %v1596
    %2015 = vmatpush1.bf16.msra.mxu0 %v1595
    %2016 = vmatprep.subr.bf16.mxu0 %v1604
    %2017 = vmatpush1.bf16.msra.mxu0 %v1603
    %2018 = vmatprep.subr.bf16.mxu0 %v1612
    %2019 = vmatpush1.bf16.msra.mxu0 %v1611
    %2020 = vmatprep.subr.bf16.mxu0 %v1620
    %2021 = vmatpush1.bf16.msra.mxu0 %v1619
    %2022 = vmatprep.subr.bf16.mxu0 %v1628
    %2023 = vmatpush1.bf16.msra.mxu0 %v1627
    %2024 = vmatprep.subr.bf16.mxu0 %v1636
    %2025 = vmatpush1.bf16.msra.mxu0 %v1635
    %2026 = vmatprep.subr.bf16.mxu0 %v1644
    %2027 = vmatpush1.bf16.msra.mxu0 %v1643
    %2028 = vmatprep.subr.bf16.mxu0 %v1652
    %2029 = vmatpush1.bf16.msra.mxu0 %v1651
    %2030 = vmatprep.subr.bf16.mxu0 %v1660
    %2031 = vmatpush1.bf16.msra.mxu0 %v1659
    %2032 = vmatprep.subr.bf16.mxu0 %v1668
    %2033 = vmatpush1.bf16.msra.mxu0 %v1667
    %2034 = vmatprep.subr.bf16.mxu0 %v1676
    %2035 = vmatpush1.bf16.msra.mxu0 %v1675
    %2036 = vmatprep.subr.bf16.mxu0 %v1684
    %2037 = vmatpush1.bf16.msra.mxu0 %v1683
    %2038 = vmatprep.subr.bf16.mxu0 %v1692
    %2039 = vmatpush1.bf16.msra.mxu0 %v1691
    %2040 = vmatprep.subr.bf16.mxu0 %v1700
    %2041 = vmatpush1.bf16.msra.mxu0 %v1699
    %2042 = vmatprep.subr.bf16.mxu0 %v1708
    %2043 = vmatpush1.bf16.msra.mxu0 %v1707
    %2044 = vmatprep.mubr.bf16.mxu0 %v1454
    %2045 = vmatmul.mubr.bf16.gmra.mrb[0].mxu0 %v1453
    %v2046 = vpop.f32.mrb[0].mxu0
    %v2047 = vadd.f32 %v2006, %v2046
    %v2048 = vpop.f32.mrb[0].mxu0
    %v2049 = vadd.f32 %v2008, %v2048
    %v2050 = vpop.f32.mrb[0].mxu0
    %v2051 = vpop.f32.mrb[0].mxu0
    %2052 = vdwg.mxu0
    %2053 = vmatprep.subr.bf16.mxu0 %v1716
    %2054 = vmatpush1.bf16.msra.mxu0 %v1715
    %2055 = vmatprep.subr.bf16.mxu0 %v1724
    %2056 = vmatpush1.bf16.msra.mxu0 %v1723
    %2057 = vmatprep.subr.bf16.mxu0 %v1732
    %2058 = vmatpush1.bf16.msra.mxu0 %v1731
    %2059 = vmatprep.subr.bf16.mxu0 %v1740
    %2060 = vmatpush1.bf16.msra.mxu0 %v1739
    %2061 = vmatprep.subr.bf16.mxu0 %v1748
    %2062 = vmatpush1.bf16.msra.mxu0 %v1747
    %2063 = vmatprep.subr.bf16.mxu0 %v1756
    %2064 = vmatpush1.bf16.msra.mxu0 %v1755
    %2065 = vmatprep.subr.bf16.mxu0 %v1764
    %2066 = vmatpush1.bf16.msra.mxu0 %v1763
    %2067 = vmatprep.subr.bf16.mxu0 %v1772
    %2068 = vmatpush1.bf16.msra.mxu0 %v1771
    %2069 = vmatprep.subr.bf16.mxu0 %v1780
    %2070 = vmatpush1.bf16.msra.mxu0 %v1779
    %2071 = vmatprep.subr.bf16.mxu0 %v1788
    %2072 = vmatpush1.bf16.msra.mxu0 %v1787
    %2073 = vmatprep.subr.bf16.mxu0 %v1796
    %2074 = vmatpush1.bf16.msra.mxu0 %v1795
    %2075 = vmatprep.subr.bf16.mxu0 %v1804
    %2076 = vmatpush1.bf16.msra.mxu0 %v1803
    %2077 = vmatprep.subr.bf16.mxu0 %v1812
    %2078 = vmatpush1.bf16.msra.mxu0 %v1811
    %2079 = vmatprep.subr.bf16.mxu0 %v1820
    %2080 = vmatpush1.bf16.msra.mxu0 %v1819
    %2081 = vmatprep.subr.bf16.mxu0 %v1828
    %2082 = vmatpush1.bf16.msra.mxu0 %v1827
    %2083 = vmatprep.subr.bf16.mxu0 %v1836
    %2084 = vmatpush1.bf16.msra.mxu0 %v1835
    %2085 = vmatprep.mubr.bf16.mxu0 %v1456
    %2086 = vmatmul.mubr.bf16.gmra.mrb[0].mxu0 %v1455
    %v2087 = vpop.f32.mrb[0].mxu0
    %v2088 = vadd.f32 %v2047, %v2087
    %v2089 = vpop.f32.mrb[0].mxu0
    %v2090 = vadd.f32 %v2049, %v2089
    %v2091 = vpop.f32.mrb[0].mxu0
    %v2092 = vpop.f32.mrb[0].mxu0
    %2093 = vdwg.mxu0
    %2094 = vmatprep.subr.bf16.mxu0 %v1844
    %2095 = vmatpush1.bf16.msra.mxu0 %v1843
    %2096 = vmatprep.subr.bf16.mxu0 %v1852
    %2097 = vmatpush1.bf16.msra.mxu0 %v1851
    %2098 = vmatprep.subr.bf16.mxu0 %v1860
    %2099 = vmatpush1.bf16.msra.mxu0 %v1859
    %2100 = vmatprep.subr.bf16.mxu0 %v1868
    %2101 = vmatpush1.bf16.msra.mxu0 %v1867
    %2102 = vmatprep.subr.bf16.mxu0 %v1876
    %2103 = vmatpush1.bf16.msra.mxu0 %v1875
    %2104 = vmatprep.subr.bf16.mxu0 %v1884
    %2105 = vmatpush1.bf16.msra.mxu0 %v1883
    %2106 = vmatprep.subr.bf16.mxu0 %v1892
    %2107 = vmatpush1.bf16.msra.mxu0 %v1891
    %2108 = vmatprep.subr.bf16.mxu0 %v1900
    %2109 = vmatpush1.bf16.msra.mxu0 %v1899
    %2110 = vmatprep.subr.bf16.mxu0 %v1908
    %2111 = vmatpush1.bf16.msra.mxu0 %v1907
    %2112 = vmatprep.subr.bf16.mxu0 %v1916
    %2113 = vmatpush1.bf16.msra.mxu0 %v1915
    %2114 = vmatprep.subr.bf16.mxu0 %v1924
    %2115 = vmatpush1.bf16.msra.mxu0 %v1923
    %2116 = vmatprep.subr.bf16.mxu0 %v1932
    %2117 = vmatpush1.bf16.msra.mxu0 %v1931
    %2118 = vmatprep.subr.bf16.mxu0 %v1940
    %2119 = vmatpush1.bf16.msra.mxu0 %v1939
    %2120 = vmatprep.subr.bf16.mxu0 %v1948
    %2121 = vmatpush1.bf16.msra.mxu0 %v1947
    %2122 = vmatprep.subr.bf16.mxu0 %v1956
    %2123 = vmatpush1.bf16.msra.mxu0 %v1955
    %2124 = vmatprep.subr.bf16.mxu0 %v1964
    %2125 = vmatpush1.bf16.msra.mxu0 %v1963
    %2126 = vmatprep.mubr.bf16.mxu0 %v1458
    %2127 = vmatmul.mubr.bf16.gmra.mrb[0].mxu0 %v1457
    %v2128 = vpop.f32.mrb[0].mxu0
    %v2129 = vadd.f32 %v2088, %v2128
    %v2130 = vpop.f32.mrb[0].mxu0
    %v2131 = vadd.f32 %v2090, %v2130
    %v2132 = vpop.f32.mrb[0].mxu0
    %v2133 = vpop.f32.mrb[0].mxu0
    %2134 = vdwg.mxu0
    %2135 = vmatprep.subr.bf16.mxu0 %v1462
    %2136 = vmatpush1.bf16.msra.mxu0 %v1461
    %2137 = vmatprep.subr.bf16.mxu0 %v1470
    %2138 = vmatpush1.bf16.msra.mxu0 %v1469
    %2139 = vmatprep.subr.bf16.mxu0 %v1478
    %2140 = vmatpush1.bf16.msra.mxu0 %v1477
    %2141 = vmatprep.subr.bf16.mxu0 %v1486
    %2142 = vmatpush1.bf16.msra.mxu0 %v1485
    %2143 = vmatprep.subr.bf16.mxu0 %v1494
    %2144 = vmatpush1.bf16.msra.mxu0 %v1493
    %2145 = vmatprep.subr.bf16.mxu0 %v1502
    %2146 = vmatpush1.bf16.msra.mxu0 %v1501
    %2147 = vmatprep.subr.bf16.mxu0 %v1510
    %2148 = vmatpush1.bf16.msra.mxu0 %v1509
    %2149 = vmatprep.subr.bf16.mxu0 %v1518
    %2150 = vmatpush1.bf16.msra.mxu0 %v1517
    %2151 = vmatprep.subr.bf16.mxu0 %v1526
    %2152 = vmatpush1.bf16.msra.mxu0 %v1525
    %2153 = vmatprep.subr.bf16.mxu0 %v1534
    %2154 = vmatpush1.bf16.msra.mxu0 %v1533
    %2155 = vmatprep.subr.bf16.mxu0 %v1542
    %2156 = vmatpush1.bf16.msra.mxu0 %v1541
    %2157 = vmatprep.subr.bf16.mxu0 %v1550
    %2158 = vmatpush1.bf16.msra.mxu0 %v1549
    %2159 = vmatprep.subr.bf16.mxu0 %v1558
    %2160 = vmatpush1.bf16.msra.mxu0 %v1557
    %2161 = vmatprep.subr.bf16.mxu0 %v1566
    %2162 = vmatpush1.bf16.msra.mxu0 %v1565
    %2163 = vmatprep.subr.bf16.mxu0 %v1574
    %2164 = vmatpush1.bf16.msra.mxu0 %v1573
    %2165 = vmatprep.subr.bf16.mxu0 %v1582
    %2166 = vmatpush1.bf16.msra.mxu0 %v1581
    %2167 = vmatprep.mubr.bf16.mxu0 %v1452
    %2168 = vmatmul.mubr.bf16.gmra.mrb[0].mxu0 %v1451
    %v2169 = vpop.f32.mrb[0].mxu0
    %v2170 = vadd.f32 0.0, %v2169
    %v2171 = vpop.f32.mrb[0].mxu0
    %v2172 = vadd.f32 0.0, %v2171
    %v2173 = vpop.f32.mrb[0].mxu0
    %v2174 = vpop.f32.mrb[0].mxu0
    %2175 = vdwg.mxu0
    %2176 = vmatprep.subr.bf16.mxu0 %v1590
    %2177 = vmatpush1.bf16.msra.mxu0 %v1589
    %2178 = vmatprep.subr.bf16.mxu0 %v1598
    %2179 = vmatpush1.bf16.msra.mxu0 %v1597
    %2180 = vmatprep.subr.bf16.mxu0 %v1606
    %2181 = vmatpush1.bf16.msra.mxu0 %v1605
    %2182 = vmatprep.subr.bf16.mxu0 %v1614
    %2183 = vmatpush1.bf16.msra.mxu0 %v1613
    %2184 = vmatprep.subr.bf16.mxu0 %v1622
    %2185 = vmatpush1.bf16.msra.mxu0 %v1621
    %2186 = vmatprep.subr.bf16.mxu0 %v1630
    %2187 = vmatpush1.bf16.msra.mxu0 %v1629
    %2188 = vmatprep.subr.bf16.mxu0 %v1638
    %2189 = vmatpush1.bf16.msra.mxu0 %v1637
    %2190 = vmatprep.subr.bf16.mxu0 %v1646
    %2191 = vmatpush1.bf16.msra.mxu0 %v1645
    %2192 = vmatprep.subr.bf16.mxu0 %v1654
    %2193 = vmatpush1.bf16.msra.mxu0 %v1653
    %2194 = vmatprep.subr.bf16.mxu0 %v1662
    %2195 = vmatpush1.bf16.msra.mxu0 %v1661
    %2196 = vmatprep.subr.bf16.mxu0 %v1670
    %2197 = vmatpush1.bf16.msra.mxu0 %v1669
    %2198 = vmatprep.subr.bf16.mxu0 %v1678
    %2199 = vmatpush1.bf16.msra.mxu0 %v1677
    %2200 = vmatprep.subr.bf16.mxu0 %v1686
    %2201 = vmatpush1.bf16.msra.mxu0 %v1685
    %2202 = vmatprep.subr.bf16.mxu0 %v1694
    %2203 = vmatpush1.bf16.msra.mxu0 %v1693
    %2204 = vmatprep.subr.bf16.mxu0 %v1702
    %2205 = vmatpush1.bf16.msra.mxu0 %v1701
    %2206 = vmatprep.subr.bf16.mxu0 %v1710
    %2207 = vmatpush1.bf16.msra.mxu0 %v1709
    %2208 = vmatprep.mubr.bf16.mxu0 %v1454
    %2209 = vmatmul.mubr.bf16.gmra.mrb[0].mxu0 %v1453
    %v2210 = vpop.f32.mrb[0].mxu0
    %v2211 = vadd.f32 %v2170, %v2210
    %v2212 = vpop.f32.mrb[0].mxu0
    %v2213 = vadd.f32 %v2172, %v2212
    %v2214 = vpop.f32.mrb[0].mxu0
    %v2215 = vpop.f32.mrb[0].mxu0
    %2216 = vdwg.mxu0
    %2217 = vmatprep.subr.bf16.mxu0 %v1718
    %2218 = vmatpush1.bf16.msra.mxu0 %v1717
    %2219 = vmatprep.subr.bf16.mxu0 %v1726
    %2220 = vmatpush1.bf16.msra.mxu0 %v1725
    %2221 = vmatprep.subr.bf16.mxu0 %v1734
    %2222 = vmatpush1.bf16.msra.mxu0 %v1733
    %2223 = vmatprep.subr.bf16.mxu0 %v1742
    %2224 = vmatpush1.bf16.msra.mxu0 %v1741
    %2225 = vmatprep.subr.bf16.mxu0 %v1750
    %2226 = vmatpush1.bf16.msra.mxu0 %v1749
    %2227 = vmatprep.subr.bf16.mxu0 %v1758
    %2228 = vmatpush1.bf16.msra.mxu0 %v1757
    %2229 = vmatprep.subr.bf16.mxu0 %v1766
    %2230 = vmatpush1.bf16.msra.mxu0 %v1765
    %2231 = vmatprep.subr.bf16.mxu0 %v1774
    %2232 = vmatpush1.bf16.msra.mxu0 %v1773
    %2233 = vmatprep.subr.bf16.mxu0 %v1782
    %2234 = vmatpush1.bf16.msra.mxu0 %v1781
    %2235 = vmatprep.subr.bf16.mxu0 %v1790
    %2236 = vmatpush1.bf16.msra.mxu0 %v1789
    %2237 = vmatprep.subr.bf16.mxu0 %v1798
    %2238 = vmatpush1.bf16.msra.mxu0 %v1797
    %2239 = vmatprep.subr.bf16.mxu0 %v1806
    %2240 = vmatpush1.bf16.msra.mxu0 %v1805
    %2241 = vmatprep.subr.bf16.mxu0 %v1814
    %2242 = vmatpush1.bf16.msra.mxu0 %v1813
    %2243 = vmatprep.subr.bf16.mxu0 %v1822
    %2244 = vmatpush1.bf16.msra.mxu0 %v1821
    %2245 = vmatprep.subr.bf16.mxu0 %v1830
    %2246 = vmatpush1.bf16.msra.mxu0 %v1829
    %2247 = vmatprep.subr.bf16.mxu0 %v1838
    %2248 = vmatpush1.bf16.msra.mxu0 %v1837
    %2249 = vmatprep.mubr.bf16.mxu0 %v1456
    %2250 = vmatmul.mubr.bf16.gmra.mrb[0].mxu0 %v1455
    %v2251 = vpop.f32.mrb[0].mxu0
    %v2252 = vadd.f32 %v2211, %v2251
    %v2253 = vpop.f32.mrb[0].mxu0
    %v2254 = vadd.f32 %v2213, %v2253
    %v2255 = vpop.f32.mrb[0].mxu0
    %v2256 = vpop.f32.mrb[0].mxu0
    %2257 = vdwg.mxu0
    %2258 = vmatprep.subr.bf16.mxu0 %v1846
    %2259 = vmatpush1.bf16.msra.mxu0 %v1845
    %2260 = vmatprep.subr.bf16.mxu0 %v1854
    %2261 = vmatpush1.bf16.msra.mxu0 %v1853
    %2262 = vmatprep.subr.bf16.mxu0 %v1862
    %2263 = vmatpush1.bf16.msra.mxu0 %v1861
    %2264 = vmatprep.subr.bf16.mxu0 %v1870
    %2265 = vmatpush1.bf16.msra.mxu0 %v1869
    %2266 = vmatprep.subr.bf16.mxu0 %v1878
    %2267 = vmatpush1.bf16.msra.mxu0 %v1877
    %2268 = vmatprep.subr.bf16.mxu0 %v1886
    %2269 = vmatpush1.bf16.msra.mxu0 %v1885
    %2270 = vmatprep.subr.bf16.mxu0 %v1894
    %2271 = vmatpush1.bf16.msra.mxu0 %v1893
    %2272 = vmatprep.subr.bf16.mxu0 %v1902
    %2273 = vmatpush1.bf16.msra.mxu0 %v1901
    %2274 = vmatprep.subr.bf16.mxu0 %v1910
    %2275 = vmatpush1.bf16.msra.mxu0 %v1909
    %2276 = vmatprep.subr.bf16.mxu0 %v1918
    %2277 = vmatpush1.bf16.msra.mxu0 %v1917
    %2278 = vmatprep.subr.bf16.mxu0 %v1926
    %2279 = vmatpush1.bf16.msra.mxu0 %v1925
    %2280 = vmatprep.subr.bf16.mxu0 %v1934
    %2281 = vmatpush1.bf16.msra.mxu0 %v1933
    %2282 = vmatprep.subr.bf16.mxu0 %v1942
    %2283 = vmatpush1.bf16.msra.mxu0 %v1941
    %2284 = vmatprep.subr.bf16.mxu0 %v1950
    %2285 = vmatpush1.bf16.msra.mxu0 %v1949
    %2286 = vmatprep.subr.bf16.mxu0 %v1958
    %2287 = vmatpush1.bf16.msra.mxu0 %v1957
    %2288 = vmatprep.subr.bf16.mxu0 %v1966
    %2289 = vmatpush1.bf16.msra.mxu0 %v1965
    %2290 = vmatprep.mubr.bf16.mxu0 %v1458
    %2291 = vmatmul.mubr.bf16.gmra.mrb[0].mxu0 %v1457
    %v2292 = vpop.f32.mrb[0].mxu0
    %v2293 = vadd.f32 %v2252, %v2292
    %v2294 = vpop.f32.mrb[0].mxu0
    %v2295 = vadd.f32 %v2254, %v2294
    %v2296 = vpop.f32.mrb[0].mxu0
    %v2297 = vpop.f32.mrb[0].mxu0
    %2298 = vdwg.mxu0
    %2299 = vmatprep.subr.bf16.mxu0 %v1464
    %2300 = vmatpush1.bf16.msra.mxu0 %v1463
    %2301 = vmatprep.subr.bf16.mxu0 %v1472
    %2302 = vmatpush1.bf16.msra.mxu0 %v1471
    %2303 = vmatprep.subr.bf16.mxu0 %v1480
    %2304 = vmatpush1.bf16.msra.mxu0 %v1479
    %2305 = vmatprep.subr.bf16.mxu0 %v1488
    %2306 = vmatpush1.bf16.msra.mxu0 %v1487
    %2307 = vmatprep.subr.bf16.mxu0 %v1496
    %2308 = vmatpush1.bf16.msra.mxu0 %v1495
    %2309 = vmatprep.subr.bf16.mxu0 %v1504
    %2310 = vmatpush1.bf16.msra.mxu0 %v1503
    %2311 = vmatprep.subr.bf16.mxu0 %v1512
    %2312 = vmatpush1.bf16.msra.mxu0 %v1511
    %2313 = vmatprep.subr.bf16.mxu0 %v1520
    %2314 = vmatpush1.bf16.msra.mxu0 %v1519
    %2315 = vmatprep.subr.bf16.mxu0 %v1528
    %2316 = vmatpush1.bf16.msra.mxu0 %v1527
    %2317 = vmatprep.subr.bf16.mxu0 %v1536
    %2318 = vmatpush1.bf16.msra.mxu0 %v1535
    %2319 = vmatprep.subr.bf16.mxu0 %v1544
    %2320 = vmatpush1.bf16.msra.mxu0 %v1543
    %2321 = vmatprep.subr.bf16.mxu0 %v1552
    %2322 = vmatpush1.bf16.msra.mxu0 %v1551
    %2323 = vmatprep.subr.bf16.mxu0 %v1560
    %2324 = vmatpush1.bf16.msra.mxu0 %v1559
    %2325 = vmatprep.subr.bf16.mxu0 %v1568
    %2326 = vmatpush1.bf16.msra.mxu0 %v1567
    %2327 = vmatprep.subr.bf16.mxu0 %v1576
    %2328 = vmatpush1.bf16.msra.mxu0 %v1575
    %2329 = vmatprep.subr.bf16.mxu0 %v1584
    %2330 = vmatpush1.bf16.msra.mxu0 %v1583
    %2331 = vmatprep.mubr.bf16.mxu0 %v1452
    %2332 = vmatmul.mubr.bf16.gmra.mrb[0].mxu0 %v1451
    %v2333 = vpop.f32.mrb[0].mxu0
    %v2334 = vadd.f32 0.0, %v2333
    %v2335 = vpop.f32.mrb[0].mxu0
    %v2336 = vadd.f32 0.0, %v2335
    %v2337 = vpop.f32.mrb[0].mxu0
    %v2338 = vpop.f32.mrb[0].mxu0
    %2339 = vdwg.mxu0
    %2340 = vmatprep.subr.bf16.mxu0 %v1592
    %2341 = vmatpush1.bf16.msra.mxu0 %v1591
    %2342 = vmatprep.subr.bf16.mxu0 %v1600
    %2343 = vmatpush1.bf16.msra.mxu0 %v1599
    %2344 = vmatprep.subr.bf16.mxu0 %v1608
    %2345 = vmatpush1.bf16.msra.mxu0 %v1607
    %2346 = vmatprep.subr.bf16.mxu0 %v1616
    %2347 = vmatpush1.bf16.msra.mxu0 %v1615
    %2348 = vmatprep.subr.bf16.mxu0 %v1624
    %2349 = vmatpush1.bf16.msra.mxu0 %v1623
    %2350 = vmatprep.subr.bf16.mxu0 %v1632
    %2351 = vmatpush1.bf16.msra.mxu0 %v1631
    %2352 = vmatprep.subr.bf16.mxu0 %v1640
    %2353 = vmatpush1.bf16.msra.mxu0 %v1639
    %2354 = vmatprep.subr.bf16.mxu0 %v1648
    %2355 = vmatpush1.bf16.msra.mxu0 %v1647
    %2356 = vmatprep.subr.bf16.mxu0 %v1656
    %2357 = vmatpush1.bf16.msra.mxu0 %v1655
    %2358 = vmatprep.subr.bf16.mxu0 %v1664
    %2359 = vmatpush1.bf16.msra.mxu0 %v1663
    %2360 = vmatprep.subr.bf16.mxu0 %v1672
    %2361 = vmatpush1.bf16.msra.mxu0 %v1671
    %2362 = vmatprep.subr.bf16.mxu0 %v1680
    %2363 = vmatpush1.bf16.msra.mxu0 %v1679
    %2364 = vmatprep.subr.bf16.mxu0 %v1688
    %2365 = vmatpush1.bf16.msra.mxu0 %v1687
    %2366 = vmatprep.subr.bf16.mxu0 %v1696
    %2367 = vmatpush1.bf16.msra.mxu0 %v1695
    %2368 = vmatprep.subr.bf16.mxu0 %v1704
    %2369 = vmatpush1.bf16.msra.mxu0 %v1703
    %2370 = vmatprep.subr.bf16.mxu0 %v1712
    %2371 = vmatpush1.bf16.msra.mxu0 %v1711
    %2372 = vmatprep.mubr.bf16.mxu0 %v1454
    %2373 = vmatmul.mubr.bf16.gmra.mrb[0].mxu0 %v1453
    %v2374 = vpop.f32.mrb[0].mxu0
    %v2375 = vadd.f32 %v2334, %v2374
    %v2376 = vpop.f32.mrb[0].mxu0
    %v2377 = vadd.f32 %v2336, %v2376
    %v2378 = vpop.f32.mrb[0].mxu0
    %v2379 = vpop.f32.mrb[0].mxu0
    %2380 = vdwg.mxu0
    %2381 = vmatprep.subr.bf16.mxu0 %v1720
    %2382 = vmatpush1.bf16.msra.mxu0 %v1719
    %2383 = vmatprep.subr.bf16.mxu0 %v1728
    %2384 = vmatpush1.bf16.msra.mxu0 %v1727
    %2385 = vmatprep.subr.bf16.mxu0 %v1736
    %2386 = vmatpush1.bf16.msra.mxu0 %v1735
    %2387 = vmatprep.subr.bf16.mxu0 %v1744
    %2388 = vmatpush1.bf16.msra.mxu0 %v1743
    %2389 = vmatprep.subr.bf16.mxu0 %v1752
    %2390 = vmatpush1.bf16.msra.mxu0 %v1751
    %2391 = vmatprep.subr.bf16.mxu0 %v1760
    %2392 = vmatpush1.bf16.msra.mxu0 %v1759
    %2393 = vmatprep.subr.bf16.mxu0 %v1768
    %2394 = vmatpush1.bf16.msra.mxu0 %v1767
    %2395 = vmatprep.subr.bf16.mxu0 %v1776
    %2396 = vmatpush1.bf16.msra.mxu0 %v1775
    %2397 = vmatprep.subr.bf16.mxu0 %v1784
    %2398 = vmatpush1.bf16.msra.mxu0 %v1783
    %2399 = vmatprep.subr.bf16.mxu0 %v1792
    %2400 = vmatpush1.bf16.msra.mxu0 %v1791
    %2401 = vmatprep.subr.bf16.mxu0 %v1800
    %2402 = vmatpush1.bf16.msra.mxu0 %v1799
    %2403 = vmatprep.subr.bf16.mxu0 %v1808
    %2404 = vmatpush1.bf16.msra.mxu0 %v1807
    %2405 = vmatprep.subr.bf16.mxu0 %v1816
    %2406 = vmatpush1.bf16.msra.mxu0 %v1815
    %2407 = vmatprep.subr.bf16.mxu0 %v1824
    %2408 = vmatpush1.bf16.msra.mxu0 %v1823
    %2409 = vmatprep.subr.bf16.mxu0 %v1832
    %2410 = vmatpush1.bf16.msra.mxu0 %v1831
    %2411 = vmatprep.subr.bf16.mxu0 %v1840
    %2412 = vmatpush1.bf16.msra.mxu0 %v1839
    %2413 = vmatprep.mubr.bf16.mxu0 %v1456
    %2414 = vmatmul.mubr.bf16.gmra.mrb[0].mxu0 %v1455
    %v2415 = vpop.f32.mrb[0].mxu0
    %v2416 = vadd.f32 %v2375, %v2415
    %v2417 = vpop.f32.mrb[0].mxu0
    %v2418 = vadd.f32 %v2377, %v2417
    %v2419 = vpop.f32.mrb[0].mxu0
    %v2420 = vpop.f32.mrb[0].mxu0
    %2421 = vdwg.mxu0
    %2422 = vmatprep.subr.bf16.mxu0 %v1848
    %2423 = vmatpush1.bf16.msra.mxu0 %v1847
    %2424 = vmatprep.subr.bf16.mxu0 %v1856
    %2425 = vmatpush1.bf16.msra.mxu0 %v1855
    %2426 = vmatprep.subr.bf16.mxu0 %v1864
    %2427 = vmatpush1.bf16.msra.mxu0 %v1863
    %2428 = vmatprep.subr.bf16.mxu0 %v1872
    %2429 = vmatpush1.bf16.msra.mxu0 %v1871
    %2430 = vmatprep.subr.bf16.mxu0 %v1880
    %2431 = vmatpush1.bf16.msra.mxu0 %v1879
    %2432 = vmatprep.subr.bf16.mxu0 %v1888
    %2433 = vmatpush1.bf16.msra.mxu0 %v1887
    %2434 = vmatprep.subr.bf16.mxu0 %v1896
    %2435 = vmatpush1.bf16.msra.mxu0 %v1895
    %2436 = vmatprep.subr.bf16.mxu0 %v1904
    %2437 = vmatpush1.bf16.msra.mxu0 %v1903
    %2438 = vmatprep.subr.bf16.mxu0 %v1912
    %2439 = vmatpush1.bf16.msra.mxu0 %v1911
    %2440 = vmatprep.subr.bf16.mxu0 %v1920
    %2441 = vmatpush1.bf16.msra.mxu0 %v1919
    %2442 = vmatprep.subr.bf16.mxu0 %v1928
    %2443 = vmatpush1.bf16.msra.mxu0 %v1927
    %2444 = vmatprep.subr.bf16.mxu0 %v1936
    %2445 = vmatpush1.bf16.msra.mxu0 %v1935
    %2446 = vmatprep.subr.bf16.mxu0 %v1944
    %2447 = vmatpush1.bf16.msra.mxu0 %v1943
    %2448 = vmatprep.subr.bf16.mxu0 %v1952
    %2449 = vmatpush1.bf16.msra.mxu0 %v1951
    %2450 = vmatprep.subr.bf16.mxu0 %v1960
    %2451 = vmatpush1.bf16.msra.mxu0 %v1959
    %2452 = vmatprep.subr.bf16.mxu0 %v1968
    %2453 = vmatpush1.bf16.msra.mxu0 %v1967
    %2454 = vmatprep.mubr.bf16.mxu0 %v1458
    %2455 = vmatmul.mubr.bf16.gmra.mrb[0].mxu0 %v1457
    %v2456 = vpop.f32.mrb[0].mxu0
    %v2457 = vadd.f32 %v2416, %v2456
    %v2458 = vpop.f32.mrb[0].mxu0
    %v2459 = vadd.f32 %v2418, %v2458
    %v2460 = vpop.f32.mrb[0].mxu0
    %v2461 = vpop.f32.mrb[0].mxu0
    %2462 = vdwg.mxu0
    %2463 = vmatprep.subr.bf16.mxu0 %v1466
    %2464 = vmatpush1.bf16.msra.mxu0 %v1465
    %2465 = vmatprep.subr.bf16.mxu0 %v1474
    %2466 = vmatpush1.bf16.msra.mxu0 %v1473
    %2467 = vmatprep.subr.bf16.mxu0 %v1482
    %2468 = vmatpush1.bf16.msra.mxu0 %v1481
    %2469 = vmatprep.subr.bf16.mxu0 %v1490
    %2470 = vmatpush1.bf16.msra.mxu0 %v1489
    %2471 = vmatprep.subr.bf16.mxu0 %v1498
    %2472 = vmatpush1.bf16.msra.mxu0 %v1497
    %2473 = vmatprep.subr.bf16.mxu0 %v1506
    %2474 = vmatpush1.bf16.msra.mxu0 %v1505
    %2475 = vmatprep.subr.bf16.mxu0 %v1514
    %2476 = vmatpush1.bf16.msra.mxu0 %v1513
    %2477 = vmatprep.subr.bf16.mxu0 %v1522
    %2478 = vmatpush1.bf16.msra.mxu0 %v1521
    %2479 = vmatprep.subr.bf16.mxu0 %v1530
    %2480 = vmatpush1.bf16.msra.mxu0 %v1529
    %2481 = vmatprep.subr.bf16.mxu0 %v1538
    %2482 = vmatpush1.bf16.msra.mxu0 %v1537
    %2483 = vmatprep.subr.bf16.mxu0 %v1546
    %2484 = vmatpush1.bf16.msra.mxu0 %v1545
    %2485 = vmatprep.subr.bf16.mxu0 %v1554
    %2486 = vmatpush1.bf16.msra.mxu0 %v1553
    %2487 = vmatprep.subr.bf16.mxu0 %v1562
    %2488 = vmatpush1.bf16.msra.mxu0 %v1561
    %2489 = vmatprep.subr.bf16.mxu0 %v1570
    %2490 = vmatpush1.bf16.msra.mxu0 %v1569
    %2491 = vmatprep.subr.bf16.mxu0 %v1578
    %2492 = vmatpush1.bf16.msra.mxu0 %v1577
    %2493 = vmatprep.subr.bf16.mxu0 %v1586
    %2494 = vmatpush1.bf16.msra.mxu0 %v1585
    %2495 = vmatprep.mubr.bf16.mxu0 %v1452
    %2496 = vmatmul.mubr.bf16.gmra.mrb[0].mxu0 %v1451
    %v2497 = vpop.f32.mrb[0].mxu0
    %v2498 = vadd.f32 0.0, %v2497
    %v2499 = vpop.f32.mrb[0].mxu0
    %v2500 = vadd.f32 0.0, %v2499
    %v2501 = vpop.f32.mrb[0].mxu0
    %v2502 = vpop.f32.mrb[0].mxu0
    %2503 = vdwg.mxu0
    %2504 = vmatprep.subr.bf16.mxu0 %v1594
    %2505 = vmatpush1.bf16.msra.mxu0 %v1593
    %2506 = vmatprep.subr.bf16.mxu0 %v1602
    %2507 = vmatpush1.bf16.msra.mxu0 %v1601
    %2508 = vmatprep.subr.bf16.mxu0 %v1610
    %2509 = vmatpush1.bf16.msra.mxu0 %v1609
    %2510 = vmatprep.subr.bf16.mxu0 %v1618
    %2511 = vmatpush1.bf16.msra.mxu0 %v1617
    %2512 = vmatprep.subr.bf16.mxu0 %v1626
    %2513 = vmatpush1.bf16.msra.mxu0 %v1625
    %2514 = vmatprep.subr.bf16.mxu0 %v1634
    %2515 = vmatpush1.bf16.msra.mxu0 %v1633
    %2516 = vmatprep.subr.bf16.mxu0 %v1642
    %2517 = vmatpush1.bf16.msra.mxu0 %v1641
    %2518 = vmatprep.subr.bf16.mxu0 %v1650
    %2519 = vmatpush1.bf16.msra.mxu0 %v1649
    %2520 = vmatprep.subr.bf16.mxu0 %v1658
    %2521 = vmatpush1.bf16.msra.mxu0 %v1657
    %2522 = vmatprep.subr.bf16.mxu0 %v1666
    %2523 = vmatpush1.bf16.msra.mxu0 %v1665
    %2524 = vmatprep.subr.bf16.mxu0 %v1674
    %2525 = vmatpush1.bf16.msra.mxu0 %v1673
    %2526 = vmatprep.subr.bf16.mxu0 %v1682
    %2527 = vmatpush1.bf16.msra.mxu0 %v1681
    %2528 = vmatprep.subr.bf16.mxu0 %v1690
    %2529 = vmatpush1.bf16.msra.mxu0 %v1689
    %2530 = vmatprep.subr.bf16.mxu0 %v1698
    %2531 = vmatpush1.bf16.msra.mxu0 %v1697
    %2532 = vmatprep.subr.bf16.mxu0 %v1706
    %2533 = vmatpush1.bf16.msra.mxu0 %v1705
    %2534 = vmatprep.subr.bf16.mxu0 %v1714
    %2535 = vmatpush1.bf16.msra.mxu0 %v1713
    %2536 = vmatprep.mubr.bf16.mxu0 %v1454
    %2537 = vmatmul.mubr.bf16.gmra.mrb[0].mxu0 %v1453
    %v2538 = vpop.f32.mrb[0].mxu0
    %v2539 = vadd.f32 %v2498, %v2538
    %v2540 = vpop.f32.mrb[0].mxu0
    %v2541 = vadd.f32 %v2500, %v2540
    %v2542 = vpop.f32.mrb[0].mxu0
    %v2543 = vpop.f32.mrb[0].mxu0
    %2544 = vdwg.mxu0
    %2545 = vmatprep.subr.bf16.mxu0 %v1722
    %2546 = vmatpush1.bf16.msra.mxu0 %v1721
    %2547 = vmatprep.subr.bf16.mxu0 %v1730
    %2548 = vmatpush1.bf16.msra.mxu0 %v1729
    %2549 = vmatprep.subr.bf16.mxu0 %v1738
    %2550 = vmatpush1.bf16.msra.mxu0 %v1737
    %2551 = vmatprep.subr.bf16.mxu0 %v1746
    %2552 = vmatpush1.bf16.msra.mxu0 %v1745
    %2553 = vmatprep.subr.bf16.mxu0 %v1754
    %2554 = vmatpush1.bf16.msra.mxu0 %v1753
    %2555 = vmatprep.subr.bf16.mxu0 %v1762
    %2556 = vmatpush1.bf16.msra.mxu0 %v1761
    %2557 = vmatprep.subr.bf16.mxu0 %v1770
    %2558 = vmatpush1.bf16.msra.mxu0 %v1769
    %2559 = vmatprep.subr.bf16.mxu0 %v1778
    %2560 = vmatpush1.bf16.msra.mxu0 %v1777
    %2561 = vmatprep.subr.bf16.mxu0 %v1786
    %2562 = vmatpush1.bf16.msra.mxu0 %v1785
    %2563 = vmatprep.subr.bf16.mxu0 %v1794
    %2564 = vmatpush1.bf16.msra.mxu0 %v1793
    %2565 = vmatprep.subr.bf16.mxu0 %v1802
    %2566 = vmatpush1.bf16.msra.mxu0 %v1801
    %2567 = vmatprep.subr.bf16.mxu0 %v1810
    %2568 = vmatpush1.bf16.msra.mxu0 %v1809
    %2569 = vmatprep.subr.bf16.mxu0 %v1818
    %2570 = vmatpush1.bf16.msra.mxu0 %v1817
    %2571 = vmatprep.subr.bf16.mxu0 %v1826
    %2572 = vmatpush1.bf16.msra.mxu0 %v1825
    %2573 = vmatprep.subr.bf16.mxu0 %v1834
    %2574 = vmatpush1.bf16.msra.mxu0 %v1833
    %2575 = vmatprep.subr.bf16.mxu0 %v1842
    %2576 = vmatpush1.bf16.msra.mxu0 %v1841
    %2577 = vmatprep.mubr.bf16.mxu0 %v1456
    %2578 = vmatmul.mubr.bf16.gmra.mrb[0].mxu0 %v1455
    %v2579 = vpop.f32.mrb[0].mxu0
    %v2580 = vadd.f32 %v2539, %v2579
    %v2581 = vpop.f32.mrb[0].mxu0
    %v2582 = vadd.f32 %v2541, %v2581
    %v2583 = vpop.f32.mrb[0].mxu0
    %v2584 = vpop.f32.mrb[0].mxu0
    %2585 = vdwg.mxu0
    %2586 = vmatprep.subr.bf16.mxu0 %v1850
    %2587 = vmatpush1.bf16.msra.mxu0 %v1849
    %2588 = vmatprep.subr.bf16.mxu0 %v1858
    %2589 = vmatpush1.bf16.msra.mxu0 %v1857
    %2590 = vmatprep.subr.bf16.mxu0 %v1866
    %2591 = vmatpush1.bf16.msra.mxu0 %v1865
    %2592 = vmatprep.subr.bf16.mxu0 %v1874
    %2593 = vmatpush1.bf16.msra.mxu0 %v1873
    %2594 = vmatprep.subr.bf16.mxu0 %v1882
    %2595 = vmatpush1.bf16.msra.mxu0 %v1881
    %2596 = vmatprep.subr.bf16.mxu0 %v1890
    %2597 = vmatpush1.bf16.msra.mxu0 %v1889
    %2598 = vmatprep.subr.bf16.mxu0 %v1898
    %2599 = vmatpush1.bf16.msra.mxu0 %v1897
    %2600 = vmatprep.subr.bf16.mxu0 %v1906
    %2601 = vmatpush1.bf16.msra.mxu0 %v1905
    %2602 = vmatprep.subr.bf16.mxu0 %v1914
    %2603 = vmatpush1.bf16.msra.mxu0 %v1913
    %2604 = vmatprep.subr.bf16.mxu0 %v1922
    %2605 = vmatpush1.bf16.msra.mxu0 %v1921
    %2606 = vmatprep.subr.bf16.mxu0 %v1930
    %2607 = vmatpush1.bf16.msra.mxu0 %v1929
    %2608 = vmatprep.subr.bf16.mxu0 %v1938
    %2609 = vmatpush1.bf16.msra.mxu0 %v1937
    %2610 = vmatprep.subr.bf16.mxu0 %v1946
    %2611 = vmatpush1.bf16.msra.mxu0 %v1945
    %2612 = vmatprep.subr.bf16.mxu0 %v1954
    %2613 = vmatpush1.bf16.msra.mxu0 %v1953
    %2614 = vmatprep.subr.bf16.mxu0 %v1962
    %2615 = vmatpush1.bf16.msra.mxu0 %v1961
    %2616 = vmatprep.subr.bf16.mxu0 %v1970
    %2617 = vmatpush1.bf16.msra.mxu0 %v1969
    %2618 = vmatprep.mubr.bf16.mxu0 %v1458
    %2619 = vmatmul.mubr.bf16.gmra.mrb[0].mxu0 %v1457
    %v2620 = vpop.f32.mrb[0].mxu0
    %v2621 = vadd.f32 %v2580, %v2620
    %v2622 = vpop.f32.mrb[0].mxu0
    %v2623 = vadd.f32 %v2582, %v2622
    %v2624 = vpop.f32.mrb[0].mxu0
    %v2625 = vpop.f32.mrb[0].mxu0
    %2626 = vdwg.mxu0
    %v2627 = vld [vmem:[#allocation20] sm:$0xff]
    %v2629 = vlaneseq
    %v2630 = vshrl.u32 %v2629, 7
    %v2631 = vsub.s32 0, %v2630
    %v2632 = vrot.slane %v2627, %v2631
    %v2633 = vlaneseq
    %v2634 = vshrl.u32 %v2633, 7
    %v2635 = vsub.s32 1, %v2634
    %v2636 = vrot.slane %v2627, %v2635
    %v2637 = vlaneseq
    %v2638 = vshrl.u32 %v2637, 7
    %v2639 = vsub.s32 2, %v2638
    %v2640 = vrot.slane %v2627, %v2639
    %v2641 = vlaneseq
    %v2642 = vshrl.u32 %v2641, 7
    %v2643 = vsub.s32 3, %v2642
    %v2644 = vrot.slane %v2627, %v2643
    %v2645 = vlaneseq
    %v2646 = vshrl.u32 %v2645, 7
    %v2647 = vsub.s32 4, %v2646
    %v2648 = vrot.slane %v2627, %v2647
    %v2649 = vlaneseq
    %v2650 = vshrl.u32 %v2649, 7
    %v2651 = vsub.s32 5, %v2650
    %v2652 = vrot.slane %v2627, %v2651
    %v2653 = vlaneseq
    %v2654 = vshrl.u32 %v2653, 7
    %v2655 = vsub.s32 6, %v2654
    %v2656 = vrot.slane %v2627, %v2655
    %v2657 = vlaneseq
    %v2658 = vshrl.u32 %v2657, 7
    %v2659 = vsub.s32 7, %v2658
    %v2660 = vrot.slane %v2627, %v2659
    %v2669 = vmul.f32 %v2129, %v2632
    %v2670 = vmul.f32 %v2131, %v2636
    %v2671 = vmul.f32 %v2293, %v2640
    %v2672 = vmul.f32 %v2295, %v2644
    %v2673 = vmul.f32 %v2457, %v2648
    %v2674 = vmul.f32 %v2459, %v2652
    %v2675 = vmul.f32 %v2621, %v2656
    %v2676 = vmul.f32 %v2623, %v2660
    %v2677 = vld [vmem:[#allocation21] sm:$0xff]
    %v2679 = vlaneseq
    %v2680 = vshrl.u32 %v2679, 7
    %v2681 = vsub.s32 0, %v2680
    %v2682 = vrot.slane %v2677, %v2681
    %v2683 = vlaneseq
    %v2684 = vshrl.u32 %v2683, 7
    %v2685 = vsub.s32 1, %v2684
    %v2686 = vrot.slane %v2677, %v2685
    %v2687 = vlaneseq
    %v2688 = vshrl.u32 %v2687, 7
    %v2689 = vsub.s32 2, %v2688
    %v2690 = vrot.slane %v2677, %v2689
    %v2691 = vlaneseq
    %v2692 = vshrl.u32 %v2691, 7
    %v2693 = vsub.s32 3, %v2692
    %v2694 = vrot.slane %v2677, %v2693
    %v2695 = vlaneseq
    %v2696 = vshrl.u32 %v2695, 7
    %v2697 = vsub.s32 4, %v2696
    %v2698 = vrot.slane %v2677, %v2697
    %v2699 = vlaneseq
    %v2700 = vshrl.u32 %v2699, 7
    %v2701 = vsub.s32 5, %v2700
    %v2702 = vrot.slane %v2677, %v2701
    %v2703 = vlaneseq
    %v2704 = vshrl.u32 %v2703, 7
    %v2705 = vsub.s32 6, %v2704
    %v2706 = vrot.slane %v2677, %v2705
    %v2707 = vlaneseq
    %v2708 = vshrl.u32 %v2707, 7
    %v2709 = vsub.s32 7, %v2708
    %v2710 = vrot.slane %v2677, %v2709
    %v2719 = vadd.f32 %v2669, %v2682
    %v2720 = vadd.f32 %v2670, %v2686
    %v2721 = vadd.f32 %v2671, %v2690
    %v2722 = vadd.f32 %v2672, %v2694
    %v2723 = vadd.f32 %v2673, %v2698
    %v2724 = vadd.f32 %v2674, %v2702
    %v2725 = vadd.f32 %v2675, %v2706
    %v2726 = vadd.f32 %v2676, %v2710
    %v2727 = vmax.f32 %v2719, 0.0
    %v2728 = vmax.f32 %v2720, 0.0
    %v2729 = vmax.f32 %v2721, 0.0
    %v2730 = vmax.f32 %v2722, 0.0
    %v2731 = vmax.f32 %v2723, 0.0
    %v2732 = vmax.f32 %v2724, 0.0
    %v2733 = vmax.f32 %v2725, 0.0
    %v2734 = vmax.f32 %v2726, 0.0
    %v2743 = vcombine.low %v2727, %v2728
    %v2744 = vcombine.low %v2729, %v2730
    %v2746 = vunpack.c.l.s4 1983009808
    %v2747 = vunpack.c.0.s8 %v2746
    %v2748 = vlaneseq
    %v2749 = vshrl.u32 %v2748, 7
    %v2750 = vsub.s32 %v2747, %v2749
    %v2751 = vrot.slane %v2743, %v2750
    %v2753 = vunpack.c.l.s4 1983009808
    %v2754 = vunpack.c.0.s8 %v2753
    %v2755 = vlaneseq
    %v2756 = vshrl.u32 %v2755, 7
    %v2757 = vsub.s32 %v2754, %v2756
    %v2758 = vrot.slane %v2744, %v2757
    %v2759 = vcombine.low %v2751, %v2758
    %v2760 = vcombine.low %v2731, %v2732
    %v2761 = vcombine.low %v2733, %v2734
    %v2763 = vunpack.c.l.s4 1983009808
    %v2764 = vunpack.c.0.s8 %v2763
    %v2765 = vlaneseq
    %v2766 = vshrl.u32 %v2765, 7
    %v2767 = vsub.s32 %v2764, %v2766
    %v2768 = vrot.slane %v2760, %v2767
    %v2770 = vunpack.c.l.s4 1983009808
    %v2771 = vunpack.c.0.s8 %v2770
    %v2772 = vlaneseq
    %v2773 = vshrl.u32 %v2772, 7
    %v2774 = vsub.s32 %v2771, %v2773
    %v2775 = vrot.slane %v2761, %v2774
    %v2776 = vcombine.low %v2768, %v2775
    %2779 = vst [vmem:[#allocation26] sm:$0xff] %v2759
    %2780 = vst [vmem:[#allocation26 + $0x8] sm:$0xff] %v2776
    %s2781 = smul.u32 %s1447, 4
    %s2782 = sshll.u32 %s2781, 4
    %2783 = dma.done %s239, %s2782
    %v2784 = vpack.c.bf16 %v2727, %v2727
    %v2785 = vpack.c.bf16 %v2728, %v2728
    %v2786 = vpack.c.bf16 %v2729, %v2729
    %v2787 = vpack.c.bf16 %v2730, %v2730
    %v2788 = vpack.c.bf16 %v2731, %v2731
    %v2789 = vpack.c.bf16 %v2732, %v2732
    %v2790 = vpack.c.bf16 %v2733, %v2733
    %v2791 = vpack.c.bf16 %v2734, %v2734
    %v2792 = vld [vmem:[#allocation3] sm:$0xff]
    %v2793 = vld [vmem:[#allocation3 + $0x8] sm:$0xff]
    %v2794 = vld [vmem:[#allocation3 + $0x10] sm:$0xff]
    %v2795 = vld [vmem:[#allocation3 + $0x18] sm:$0xff]
    %v2796 = vld [vmem:[#allocation3 + $0x20] sm:$0xff]
    %v2797 = vld [vmem:[#allocation3 + $0x28] sm:$0xff]
    %v2798 = vld [vmem:[#allocation3 + $0x30] sm:$0xff]
    %v2799 = vld [vmem:[#allocation3 + $0x38] sm:$0xff]
    %v2800 = vld [vmem:[#allocation3 + $0x40] sm:$0xff]
    %v2801 = vld [vmem:[#allocation3 + $0x48] sm:$0xff]
    %v2802 = vld [vmem:[#allocation3 + $0x50] sm:$0xff]
    %v2803 = vld [vmem:[#allocation3 + $0x58] sm:$0xff]
    %v2804 = vld [vmem:[#allocation3 + $0x60] sm:$0xff]
    %v2805 = vld [vmem:[#allocation3 + $0x68] sm:$0xff]
    %v2806 = vld [vmem:[#allocation3 + $0x70] sm:$0xff]
    %v2807 = vld [vmem:[#allocation3 + $0x78] sm:$0xff]
    %v2808 = vld [vmem:[#allocation3 + $0x80] sm:$0xff]
    %v2809 = vld [vmem:[#allocation3 + $0x88] sm:$0xff]
    %v2810 = vld [vmem:[#allocation3 + $0x90] sm:$0xff]
    %v2811 = vld [vmem:[#allocation3 + $0x98] sm:$0xff]
    %v2812 = vld [vmem:[#allocation3 + $0xa0] sm:$0xff]
    %v2813 = vld [vmem:[#allocation3 + $0xa8] sm:$0xff]
    %v2814 = vld [vmem:[#allocation3 + $0xb0] sm:$0xff]
    %v2815 = vld [vmem:[#allocation3 + $0xb8] sm:$0xff]
    %v2816 = vld [vmem:[#allocation3 + $0xc0] sm:$0xff]
    %v2817 = vld [vmem:[#allocation3 + $0xc8] sm:$0xff]
    %v2818 = vld [vmem:[#allocation3 + $0xd0] sm:$0xff]
    %v2819 = vld [vmem:[#allocation3 + $0xd8] sm:$0xff]
    %v2820 = vld [vmem:[#allocation3 + $0xe0] sm:$0xff]
    %v2821 = vld [vmem:[#allocation3 + $0xe8] sm:$0xff]
    %v2822 = vld [vmem:[#allocation3 + $0xf0] sm:$0xff]
    %v2823 = vld [vmem:[#allocation3 + $0xf8] sm:$0xff]
    %v2824 = vld [vmem:[#allocation3 + $0x100] sm:$0xff]
    %v2825 = vld [vmem:[#allocation3 + $0x108] sm:$0xff]
    %v2826 = vld [vmem:[#allocation3 + $0x110] sm:$0xff]
    %v2827 = vld [vmem:[#allocation3 + $0x118] sm:$0xff]
    %v2828 = vld [vmem:[#allocation3 + $0x120] sm:$0xff]
    %v2829 = vld [vmem:[#allocation3 + $0x128] sm:$0xff]
    %v2830 = vld [vmem:[#allocation3 + $0x130] sm:$0xff]
    %v2831 = vld [vmem:[#allocation3 + $0x138] sm:$0xff]
    %v2832 = vld [vmem:[#allocation3 + $0x140] sm:$0xff]
    %v2833 = vld [vmem:[#allocation3 + $0x148] sm:$0xff]
    %v2834 = vld [vmem:[#allocation3 + $0x150] sm:$0xff]
    %v2835 = vld [vmem:[#allocation3 + $0x158] sm:$0xff]
    %v2836 = vld [vmem:[#allocation3 + $0x160] sm:$0xff]
    %v2837 = vld [vmem:[#allocation3 + $0x168] sm:$0xff]
    %v2838 = vld [vmem:[#allocation3 + $0x170] sm:$0xff]
    %v2839 = vld [vmem:[#allocation3 + $0x178] sm:$0xff]
    %v2840 = vld [vmem:[#allocation3 + $0x180] sm:$0xff]
    %v2841 = vld [vmem:[#allocation3 + $0x188] sm:$0xff]
    %v2842 = vld [vmem:[#allocation3 + $0x190] sm:$0xff]
    %v2843 = vld [vmem:[#allocation3 + $0x198] sm:$0xff]
    %v2844 = vld [vmem:[#allocation3 + $0x1a0] sm:$0xff]
    %v2845 = vld [vmem:[#allocation3 + $0x1a8] sm:$0xff]
    %v2846 = vld [vmem:[#allocation3 + $0x1b0] sm:$0xff]
    %v2847 = vld [vmem:[#allocation3 + $0x1b8] sm:$0xff]
    %v2848 = vld [vmem:[#allocation3 + $0x1c0] sm:$0xff]
    %v2849 = vld [vmem:[#allocation3 + $0x1c8] sm:$0xff]
    %v2850 = vld [vmem:[#allocation3 + $0x1d0] sm:$0xff]
    %v2851 = vld [vmem:[#allocation3 + $0x1d8] sm:$0xff]
    %v2852 = vld [vmem:[#allocation3 + $0x1e0] sm:$0xff]
    %v2853 = vld [vmem:[#allocation3 + $0x1e8] sm:$0xff]
    %v2854 = vld [vmem:[#allocation3 + $0x1f0] sm:$0xff]
    %v2855 = vld [vmem:[#allocation3 + $0x1f8] sm:$0xff]
    %v2856 = vld [vmem:[#allocation3 + $0x200] sm:$0xff]
    %v2857 = vld [vmem:[#allocation3 + $0x208] sm:$0xff]
    %v2858 = vld [vmem:[#allocation3 + $0x210] sm:$0xff]
    %v2859 = vld [vmem:[#allocation3 + $0x218] sm:$0xff]
    %v2860 = vld [vmem:[#allocation3 + $0x220] sm:$0xff]
    %v2861 = vld [vmem:[#allocation3 + $0x228] sm:$0xff]
    %v2862 = vld [vmem:[#allocation3 + $0x230] sm:$0xff]
    %v2863 = vld [vmem:[#allocation3 + $0x238] sm:$0xff]
    %v2864 = vld [vmem:[#allocation3 + $0x240] sm:$0xff]
    %v2865 = vld [vmem:[#allocation3 + $0x248] sm:$0xff]
    %v2866 = vld [vmem:[#allocation3 + $0x250] sm:$0xff]
    %v2867 = vld [vmem:[#allocation3 + $0x258] sm:$0xff]
    %v2868 = vld [vmem:[#allocation3 + $0x260] sm:$0xff]
    %v2869 = vld [vmem:[#allocation3 + $0x268] sm:$0xff]
    %v2870 = vld [vmem:[#allocation3 + $0x270] sm:$0xff]
    %v2871 = vld [vmem:[#allocation3 + $0x278] sm:$0xff]
    %v2872 = vld [vmem:[#allocation3 + $0x280] sm:$0xff]
    %v2873 = vld [vmem:[#allocation3 + $0x288] sm:$0xff]
    %v2874 = vld [vmem:[#allocation3 + $0x290] sm:$0xff]
    %v2875 = vld [vmem:[#allocation3 + $0x298] sm:$0xff]
    %v2876 = vld [vmem:[#allocation3 + $0x2a0] sm:$0xff]
    %v2877 = vld [vmem:[#allocation3 + $0x2a8] sm:$0xff]
    %v2878 = vld [vmem:[#allocation3 + $0x2b0] sm:$0xff]
    %v2879 = vld [vmem:[#allocation3 + $0x2b8] sm:$0xff]
    %v2880 = vld [vmem:[#allocation3 + $0x2c0] sm:$0xff]
    %v2881 = vld [vmem:[#allocation3 + $0x2c8] sm:$0xff]
    %v2882 = vld [vmem:[#allocation3 + $0x2d0] sm:$0xff]
    %v2883 = vld [vmem:[#allocation3 + $0x2d8] sm:$0xff]
    %v2884 = vld [vmem:[#allocation3 + $0x2e0] sm:$0xff]
    %v2885 = vld [vmem:[#allocation3 + $0x2e8] sm:$0xff]
    %v2886 = vld [vmem:[#allocation3 + $0x2f0] sm:$0xff]
    %v2887 = vld [vmem:[#allocation3 + $0x2f8] sm:$0xff]
    %v2888 = vld [vmem:[#allocation3 + $0x300] sm:$0xff]
    %v2889 = vld [vmem:[#allocation3 + $0x308] sm:$0xff]
    %v2890 = vld [vmem:[#allocation3 + $0x310] sm:$0xff]
    %v2891 = vld [vmem:[#allocation3 + $0x318] sm:$0xff]
    %v2892 = vld [vmem:[#allocation3 + $0x320] sm:$0xff]
    %v2893 = vld [vmem:[#allocation3 + $0x328] sm:$0xff]
    %v2894 = vld [vmem:[#allocation3 + $0x330] sm:$0xff]
    %v2895 = vld [vmem:[#allocation3 + $0x338] sm:$0xff]
    %v2896 = vld [vmem:[#allocation3 + $0x340] sm:$0xff]
    %v2897 = vld [vmem:[#allocation3 + $0x348] sm:$0xff]
    %v2898 = vld [vmem:[#allocation3 + $0x350] sm:$0xff]
    %v2899 = vld [vmem:[#allocation3 + $0x358] sm:$0xff]
    %v2900 = vld [vmem:[#allocation3 + $0x360] sm:$0xff]
    %v2901 = vld [vmem:[#allocation3 + $0x368] sm:$0xff]
    %v2902 = vld [vmem:[#allocation3 + $0x370] sm:$0xff]
    %v2903 = vld [vmem:[#allocation3 + $0x378] sm:$0xff]
    %v2904 = vld [vmem:[#allocation3 + $0x380] sm:$0xff]
    %v2905 = vld [vmem:[#allocation3 + $0x388] sm:$0xff]
    %v2906 = vld [vmem:[#allocation3 + $0x390] sm:$0xff]
    %v2907 = vld [vmem:[#allocation3 + $0x398] sm:$0xff]
    %v2908 = vld [vmem:[#allocation3 + $0x3a0] sm:$0xff]
    %v2909 = vld [vmem:[#allocation3 + $0x3a8] sm:$0xff]
    %v2910 = vld [vmem:[#allocation3 + $0x3b0] sm:$0xff]
    %v2911 = vld [vmem:[#allocation3 + $0x3b8] sm:$0xff]
    %v2912 = vld [vmem:[#allocation3 + $0x3c0] sm:$0xff]
    %v2913 = vld [vmem:[#allocation3 + $0x3c8] sm:$0xff]
    %v2914 = vld [vmem:[#allocation3 + $0x3d0] sm:$0xff]
    %v2915 = vld [vmem:[#allocation3 + $0x3d8] sm:$0xff]
    %v2916 = vld [vmem:[#allocation3 + $0x3e0] sm:$0xff]
    %v2917 = vld [vmem:[#allocation3 + $0x3e8] sm:$0xff]
    %v2918 = vld [vmem:[#allocation3 + $0x3f0] sm:$0xff]
    %v2919 = vld [vmem:[#allocation3 + $0x3f8] sm:$0xff]
    %v2920 = vld [vmem:[#allocation3 + $0x400] sm:$0xff]
    %v2921 = vld [vmem:[#allocation3 + $0x408] sm:$0xff]
    %v2922 = vld [vmem:[#allocation3 + $0x410] sm:$0xff]
    %v2923 = vld [vmem:[#allocation3 + $0x418] sm:$0xff]
    %v2924 = vld [vmem:[#allocation3 + $0x420] sm:$0xff]
    %v2925 = vld [vmem:[#allocation3 + $0x428] sm:$0xff]
    %v2926 = vld [vmem:[#allocation3 + $0x430] sm:$0xff]
    %v2927 = vld [vmem:[#allocation3 + $0x438] sm:$0xff]
    %v2928 = vld [vmem:[#allocation3 + $0x440] sm:$0xff]
    %v2929 = vld [vmem:[#allocation3 + $0x448] sm:$0xff]
    %v2930 = vld [vmem:[#allocation3 + $0x450] sm:$0xff]
    %v2931 = vld [vmem:[#allocation3 + $0x458] sm:$0xff]
    %v2932 = vld [vmem:[#allocation3 + $0x460] sm:$0xff]
    %v2933 = vld [vmem:[#allocation3 + $0x468] sm:$0xff]
    %v2934 = vld [vmem:[#allocation3 + $0x470] sm:$0xff]
    %v2935 = vld [vmem:[#allocation3 + $0x478] sm:$0xff]
    %v2936 = vld [vmem:[#allocation3 + $0x480] sm:$0xff]
    %v2937 = vld [vmem:[#allocation3 + $0x488] sm:$0xff]
    %v2938 = vld [vmem:[#allocation3 + $0x490] sm:$0xff]
    %v2939 = vld [vmem:[#allocation3 + $0x498] sm:$0xff]
    %v2940 = vld [vmem:[#allocation3 + $0x4a0] sm:$0xff]
    %v2941 = vld [vmem:[#allocation3 + $0x4a8] sm:$0xff]
    %v2942 = vld [vmem:[#allocation3 + $0x4b0] sm:$0xff]
    %v2943 = vld [vmem:[#allocation3 + $0x4b8] sm:$0xff]
    %v2944 = vld [vmem:[#allocation3 + $0x4c0] sm:$0xff]
    %v2945 = vld [vmem:[#allocation3 + $0x4c8] sm:$0xff]
    %v2946 = vld [vmem:[#allocation3 + $0x4d0] sm:$0xff]
    %v2947 = vld [vmem:[#allocation3 + $0x4d8] sm:$0xff]
    %v2948 = vld [vmem:[#allocation3 + $0x4e0] sm:$0xff]
    %v2949 = vld [vmem:[#allocation3 + $0x4e8] sm:$0xff]
    %v2950 = vld [vmem:[#allocation3 + $0x4f0] sm:$0xff]
    %v2951 = vld [vmem:[#allocation3 + $0x4f8] sm:$0xff]
    %v2952 = vld [vmem:[#allocation3 + $0x500] sm:$0xff]
    %v2953 = vld [vmem:[#allocation3 + $0x508] sm:$0xff]
    %v2954 = vld [vmem:[#allocation3 + $0x510] sm:$0xff]
    %v2955 = vld [vmem:[#allocation3 + $0x518] sm:$0xff]
    %v2956 = vld [vmem:[#allocation3 + $0x520] sm:$0xff]
    %v2957 = vld [vmem:[#allocation3 + $0x528] sm:$0xff]
    %v2958 = vld [vmem:[#allocation3 + $0x530] sm:$0xff]
    %v2959 = vld [vmem:[#allocation3 + $0x538] sm:$0xff]
    %v2960 = vld [vmem:[#allocation3 + $0x540] sm:$0xff]
    %v2961 = vld [vmem:[#allocation3 + $0x548] sm:$0xff]
    %v2962 = vld [vmem:[#allocation3 + $0x550] sm:$0xff]
    %v2963 = vld [vmem:[#allocation3 + $0x558] sm:$0xff]
    %v2964 = vld [vmem:[#allocation3 + $0x560] sm:$0xff]
    %v2965 = vld [vmem:[#allocation3 + $0x568] sm:$0xff]
    %v2966 = vld [vmem:[#allocation3 + $0x570] sm:$0xff]
    %v2967 = vld [vmem:[#allocation3 + $0x578] sm:$0xff]
    %v2968 = vld [vmem:[#allocation3 + $0x580] sm:$0xff]
    %v2969 = vld [vmem:[#allocation3 + $0x588] sm:$0xff]
    %v2970 = vld [vmem:[#allocation3 + $0x590] sm:$0xff]
    %v2971 = vld [vmem:[#allocation3 + $0x598] sm:$0xff]
    %v2972 = vld [vmem:[#allocation3 + $0x5a0] sm:$0xff]
    %v2973 = vld [vmem:[#allocation3 + $0x5a8] sm:$0xff]
    %v2974 = vld [vmem:[#allocation3 + $0x5b0] sm:$0xff]
    %v2975 = vld [vmem:[#allocation3 + $0x5b8] sm:$0xff]
    %v2976 = vld [vmem:[#allocation3 + $0x5c0] sm:$0xff]
    %v2977 = vld [vmem:[#allocation3 + $0x5c8] sm:$0xff]
    %v2978 = vld [vmem:[#allocation3 + $0x5d0] sm:$0xff]
    %v2979 = vld [vmem:[#allocation3 + $0x5d8] sm:$0xff]
    %v2980 = vld [vmem:[#allocation3 + $0x5e0] sm:$0xff]
    %v2981 = vld [vmem:[#allocation3 + $0x5e8] sm:$0xff]
    %v2982 = vld [vmem:[#allocation3 + $0x5f0] sm:$0xff]
    %v2983 = vld [vmem:[#allocation3 + $0x5f8] sm:$0xff]
    %v2984 = vld [vmem:[#allocation3 + $0x600] sm:$0xff]
    %v2985 = vld [vmem:[#allocation3 + $0x608] sm:$0xff]
    %v2986 = vld [vmem:[#allocation3 + $0x610] sm:$0xff]
    %v2987 = vld [vmem:[#allocation3 + $0x618] sm:$0xff]
    %v2988 = vld [vmem:[#allocation3 + $0x620] sm:$0xff]
    %v2989 = vld [vmem:[#allocation3 + $0x628] sm:$0xff]
    %v2990 = vld [vmem:[#allocation3 + $0x630] sm:$0xff]
    %v2991 = vld [vmem:[#allocation3 + $0x638] sm:$0xff]
    %v2992 = vld [vmem:[#allocation3 + $0x640] sm:$0xff]
    %v2993 = vld [vmem:[#allocation3 + $0x648] sm:$0xff]
    %v2994 = vld [vmem:[#allocation3 + $0x650] sm:$0xff]
    %v2995 = vld [vmem:[#allocation3 + $0x658] sm:$0xff]
    %v2996 = vld [vmem:[#allocation3 + $0x660] sm:$0xff]
    %v2997 = vld [vmem:[#allocation3 + $0x668] sm:$0xff]
    %v2998 = vld [vmem:[#allocation3 + $0x670] sm:$0xff]
    %v2999 = vld [vmem:[#allocation3 + $0x678] sm:$0xff]
    %v3000 = vld [vmem:[#allocation3 + $0x680] sm:$0xff]
    %v3001 = vld [vmem:[#allocation3 + $0x688] sm:$0xff]
    %v3002 = vld [vmem:[#allocation3 + $0x690] sm:$0xff]
    %v3003 = vld [vmem:[#allocation3 + $0x698] sm:$0xff]
    %v3004 = vld [vmem:[#allocation3 + $0x6a0] sm:$0xff]
    %v3005 = vld [vmem:[#allocation3 + $0x6a8] sm:$0xff]
    %v3006 = vld [vmem:[#allocation3 + $0x6b0] sm:$0xff]
    %v3007 = vld [vmem:[#allocation3 + $0x6b8] sm:$0xff]
    %v3008 = vld [vmem:[#allocation3 + $0x6c0] sm:$0xff]
    %v3009 = vld [vmem:[#allocation3 + $0x6c8] sm:$0xff]
    %v3010 = vld [vmem:[#allocation3 + $0x6d0] sm:$0xff]
    %v3011 = vld [vmem:[#allocation3 + $0x6d8] sm:$0xff]
    %v3012 = vld [vmem:[#allocation3 + $0x6e0] sm:$0xff]
    %v3013 = vld [vmem:[#allocation3 + $0x6e8] sm:$0xff]
    %v3014 = vld [vmem:[#allocation3 + $0x6f0] sm:$0xff]
    %v3015 = vld [vmem:[#allocation3 + $0x6f8] sm:$0xff]
    %v3016 = vld [vmem:[#allocation3 + $0x700] sm:$0xff]
    %v3017 = vld [vmem:[#allocation3 + $0x708] sm:$0xff]
    %v3018 = vld [vmem:[#allocation3 + $0x710] sm:$0xff]
    %v3019 = vld [vmem:[#allocation3 + $0x718] sm:$0xff]
    %v3020 = vld [vmem:[#allocation3 + $0x720] sm:$0xff]
    %v3021 = vld [vmem:[#allocation3 + $0x728] sm:$0xff]
    %v3022 = vld [vmem:[#allocation3 + $0x730] sm:$0xff]
    %v3023 = vld [vmem:[#allocation3 + $0x738] sm:$0xff]
    %v3024 = vld [vmem:[#allocation3 + $0x740] sm:$0xff]
    %v3025 = vld [vmem:[#allocation3 + $0x748] sm:$0xff]
    %v3026 = vld [vmem:[#allocation3 + $0x750] sm:$0xff]
    %v3027 = vld [vmem:[#allocation3 + $0x758] sm:$0xff]
    %v3028 = vld [vmem:[#allocation3 + $0x760] sm:$0xff]
    %v3029 = vld [vmem:[#allocation3 + $0x768] sm:$0xff]
    %v3030 = vld [vmem:[#allocation3 + $0x770] sm:$0xff]
    %v3031 = vld [vmem:[#allocation3 + $0x778] sm:$0xff]
    %v3032 = vld [vmem:[#allocation3 + $0x780] sm:$0xff]
    %v3033 = vld [vmem:[#allocation3 + $0x788] sm:$0xff]
    %v3034 = vld [vmem:[#allocation3 + $0x790] sm:$0xff]
    %v3035 = vld [vmem:[#allocation3 + $0x798] sm:$0xff]
    %v3036 = vld [vmem:[#allocation3 + $0x7a0] sm:$0xff]
    %v3037 = vld [vmem:[#allocation3 + $0x7a8] sm:$0xff]
    %v3038 = vld [vmem:[#allocation3 + $0x7b0] sm:$0xff]
    %v3039 = vld [vmem:[#allocation3 + $0x7b8] sm:$0xff]
    %v3040 = vld [vmem:[#allocation3 + $0x7c0] sm:$0xff]
    %v3041 = vld [vmem:[#allocation3 + $0x7c8] sm:$0xff]
    %v3042 = vld [vmem:[#allocation3 + $0x7d0] sm:$0xff]
    %v3043 = vld [vmem:[#allocation3 + $0x7d8] sm:$0xff]
    %v3044 = vld [vmem:[#allocation3 + $0x7e0] sm:$0xff]
    %v3045 = vld [vmem:[#allocation3 + $0x7e8] sm:$0xff]
    %v3046 = vld [vmem:[#allocation3 + $0x7f0] sm:$0xff]
    %v3047 = vld [vmem:[#allocation3 + $0x7f8] sm:$0xff]
    %3048 = vmatprep.subr.bf16.mxu0 %v2793
    %3049 = vmatpush1.bf16.msra.mxu0 %v2792
    %3050 = vmatprep.subr.bf16.mxu0 %v2797
    %3051 = vmatpush1.bf16.msra.mxu0 %v2796
    %3052 = vmatprep.subr.bf16.mxu0 %v2801
    %3053 = vmatpush1.bf16.msra.mxu0 %v2800
    %3054 = vmatprep.subr.bf16.mxu0 %v2805
    %3055 = vmatpush1.bf16.msra.mxu0 %v2804
    %3056 = vmatprep.subr.bf16.mxu0 %v2809
    %3057 = vmatpush1.bf16.msra.mxu0 %v2808
    %3058 = vmatprep.subr.bf16.mxu0 %v2813
    %3059 = vmatpush1.bf16.msra.mxu0 %v2812
    %3060 = vmatprep.subr.bf16.mxu0 %v2817
    %3061 = vmatpush1.bf16.msra.mxu0 %v2816
    %3062 = vmatprep.subr.bf16.mxu0 %v2821
    %3063 = vmatpush1.bf16.msra.mxu0 %v2820
    %3064 = vmatprep.subr.bf16.mxu0 %v2825
    %3065 = vmatpush1.bf16.msra.mxu0 %v2824
    %3066 = vmatprep.subr.bf16.mxu0 %v2829
    %3067 = vmatpush1.bf16.msra.mxu0 %v2828
    %3068 = vmatprep.subr.bf16.mxu0 %v2833
    %3069 = vmatpush1.bf16.msra.mxu0 %v2832
    %3070 = vmatprep.subr.bf16.mxu0 %v2837
    %3071 = vmatpush1.bf16.msra.mxu0 %v2836
    %3072 = vmatprep.subr.bf16.mxu0 %v2841
    %3073 = vmatpush1.bf16.msra.mxu0 %v2840
    %3074 = vmatprep.subr.bf16.mxu0 %v2845
    %3075 = vmatpush1.bf16.msra.mxu0 %v2844
    %3076 = vmatprep.subr.bf16.mxu0 %v2849
    %3077 = vmatpush1.bf16.msra.mxu0 %v2848
    %3078 = vmatprep.subr.bf16.mxu0 %v2853
    %3079 = vmatpush1.bf16.msra.mxu0 %v2852
    %3080 = vmatprep.mubr.bf16.mxu0 %v2785
    %3081 = vmatmul.mubr.bf16.gmra.mrb[0].mxu0 %v2784
    %v3082 = vpop.f32.mrb[0].mxu0
    %v3083 = vadd.f32 0.0, %v3082
    %v3084 = vpop.f32.mrb[0].mxu0
    %v3085 = vadd.f32 0.0, %v3084
    %v3086 = vpop.f32.mrb[0].mxu0
    %v3087 = vpop.f32.mrb[0].mxu0
    %3088 = vdwg.mxu0
    %3089 = vmatprep.subr.bf16.mxu0 %v2857
    %3090 = vmatpush1.bf16.msra.mxu0 %v2856
    %3091 = vmatprep.subr.bf16.mxu0 %v2861
    %3092 = vmatpush1.bf16.msra.mxu0 %v2860
    %3093 = vmatprep.subr.bf16.mxu0 %v2865
    %3094 = vmatpush1.bf16.msra.mxu0 %v2864
    %3095 = vmatprep.subr.bf16.mxu0 %v2869
    %3096 = vmatpush1.bf16.msra.mxu0 %v2868
    %3097 = vmatprep.subr.bf16.mxu0 %v2873
    %3098 = vmatpush1.bf16.msra.mxu0 %v2872
    %3099 = vmatprep.subr.bf16.mxu0 %v2877
    %3100 = vmatpush1.bf16.msra.mxu0 %v2876
    %3101 = vmatprep.subr.bf16.mxu0 %v2881
    %3102 = vmatpush1.bf16.msra.mxu0 %v2880
    %3103 = vmatprep.subr.bf16.mxu0 %v2885
    %3104 = vmatpush1.bf16.msra.mxu0 %v2884
    %3105 = vmatprep.subr.bf16.mxu0 %v2889
    %3106 = vmatpush1.bf16.msra.mxu0 %v2888
    %3107 = vmatprep.subr.bf16.mxu0 %v2893
    %3108 = vmatpush1.bf16.msra.mxu0 %v2892
    %3109 = vmatprep.subr.bf16.mxu0 %v2897
    %3110 = vmatpush1.bf16.msra.mxu0 %v2896
    %3111 = vmatprep.subr.bf16.mxu0 %v2901
    %3112 = vmatpush1.bf16.msra.mxu0 %v2900
    %3113 = vmatprep.subr.bf16.mxu0 %v2905
    %3114 = vmatpush1.bf16.msra.mxu0 %v2904
    %3115 = vmatprep.subr.bf16.mxu0 %v2909
    %3116 = vmatpush1.bf16.msra.mxu0 %v2908
    %3117 = vmatprep.subr.bf16.mxu0 %v2913
    %3118 = vmatpush1.bf16.msra.mxu0 %v2912
    %3119 = vmatprep.subr.bf16.mxu0 %v2917
    %3120 = vmatpush1.bf16.msra.mxu0 %v2916
    %3121 = vmatprep.mubr.bf16.mxu0 %v2787
    %3122 = vmatmul.mubr.bf16.gmra.mrb[0].mxu0 %v2786
    %v3123 = vpop.f32.mrb[0].mxu0
    %v3124 = vadd.f32 %v3083, %v3123
    %v3125 = vpop.f32.mrb[0].mxu0
    %v3126 = vadd.f32 %v3085, %v3125
    %v3127 = vpop.f32.mrb[0].mxu0
    %v3128 = vpop.f32.mrb[0].mxu0
    %3129 = vdwg.mxu0
    %3130 = vmatprep.subr.bf16.mxu0 %v2921
    %3131 = vmatpush1.bf16.msra.mxu0 %v2920
    %3132 = vmatprep.subr.bf16.mxu0 %v2925
    %3133 = vmatpush1.bf16.msra.mxu0 %v2924
    %3134 = vmatprep.subr.bf16.mxu0 %v2929
    %3135 = vmatpush1.bf16.msra.mxu0 %v2928
    %3136 = vmatprep.subr.bf16.mxu0 %v2933
    %3137 = vmatpush1.bf16.msra.mxu0 %v2932
    %3138 = vmatprep.subr.bf16.mxu0 %v2937
    %3139 = vmatpush1.bf16.msra.mxu0 %v2936
    %3140 = vmatprep.subr.bf16.mxu0 %v2941
    %3141 = vmatpush1.bf16.msra.mxu0 %v2940
    %3142 = vmatprep.subr.bf16.mxu0 %v2945
    %3143 = vmatpush1.bf16.msra.mxu0 %v2944
    %3144 = vmatprep.subr.bf16.mxu0 %v2949
    %3145 = vmatpush1.bf16.msra.mxu0 %v2948
    %3146 = vmatprep.subr.bf16.mxu0 %v2953
    %3147 = vmatpush1.bf16.msra.mxu0 %v2952
    %3148 = vmatprep.subr.bf16.mxu0 %v2957
    %3149 = vmatpush1.bf16.msra.mxu0 %v2956
    %3150 = vmatprep.subr.bf16.mxu0 %v2961
    %3151 = vmatpush1.bf16.msra.mxu0 %v2960
    %3152 = vmatprep.subr.bf16.mxu0 %v2965
    %3153 = vmatpush1.bf16.msra.mxu0 %v2964
    %3154 = vmatprep.subr.bf16.mxu0 %v2969
    %3155 = vmatpush1.bf16.msra.mxu0 %v2968
    %3156 = vmatprep.subr.bf16.mxu0 %v2973
    %3157 = vmatpush1.bf16.msra.mxu0 %v2972
    %3158 = vmatprep.subr.bf16.mxu0 %v2977
    %3159 = vmatpush1.bf16.msra.mxu0 %v2976
    %3160 = vmatprep.subr.bf16.mxu0 %v2981
    %3161 = vmatpush1.bf16.msra.mxu0 %v2980
    %3162 = vmatprep.mubr.bf16.mxu0 %v2789
    %3163 = vmatmul.mubr.bf16.gmra.mrb[0].mxu0 %v2788
    %v3164 = vpop.f32.mrb[0].mxu0
    %v3165 = vadd.f32 %v3124, %v3164
    %v3166 = vpop.f32.mrb[0].mxu0
    %v3167 = vadd.f32 %v3126, %v3166
    %v3168 = vpop.f32.mrb[0].mxu0
    %v3169 = vpop.f32.mrb[0].mxu0
    %3170 = vdwg.mxu0
    %3171 = vmatprep.subr.bf16.mxu0 %v2985
    %3172 = vmatpush1.bf16.msra.mxu0 %v2984
    %3173 = vmatprep.subr.bf16.mxu0 %v2989
    %3174 = vmatpush1.bf16.msra.mxu0 %v2988
    %3175 = vmatprep.subr.bf16.mxu0 %v2993
    %3176 = vmatpush1.bf16.msra.mxu0 %v2992
    %3177 = vmatprep.subr.bf16.mxu0 %v2997
    %3178 = vmatpush1.bf16.msra.mxu0 %v2996
    %3179 = vmatprep.subr.bf16.mxu0 %v3001
    %3180 = vmatpush1.bf16.msra.mxu0 %v3000
    %3181 = vmatprep.subr.bf16.mxu0 %v3005
    %3182 = vmatpush1.bf16.msra.mxu0 %v3004
    %3183 = vmatprep.subr.bf16.mxu0 %v3009
    %3184 = vmatpush1.bf16.msra.mxu0 %v3008
    %3185 = vmatprep.subr.bf16.mxu0 %v3013
    %3186 = vmatpush1.bf16.msra.mxu0 %v3012
    %3187 = vmatprep.subr.bf16.mxu0 %v3017
    %3188 = vmatpush1.bf16.msra.mxu0 %v3016
    %3189 = vmatprep.subr.bf16.mxu0 %v3021
    %3190 = vmatpush1.bf16.msra.mxu0 %v3020
    %3191 = vmatprep.subr.bf16.mxu0 %v3025
    %3192 = vmatpush1.bf16.msra.mxu0 %v3024
    %3193 = vmatprep.subr.bf16.mxu0 %v3029
    %3194 = vmatpush1.bf16.msra.mxu0 %v3028
    %3195 = vmatprep.subr.bf16.mxu0 %v3033
    %3196 = vmatpush1.bf16.msra.mxu0 %v3032
    %3197 = vmatprep.subr.bf16.mxu0 %v3037
    %3198 = vmatpush1.bf16.msra.mxu0 %v3036
    %3199 = vmatprep.subr.bf16.mxu0 %v3041
    %3200 = vmatpush1.bf16.msra.mxu0 %v3040
    %3201 = vmatprep.subr.bf16.mxu0 %v3045
    %3202 = vmatpush1.bf16.msra.mxu0 %v3044
    %3203 = vmatprep.mubr.bf16.mxu0 %v2791
    %3204 = vmatmul.mubr.bf16.gmra.mrb[0].mxu0 %v2790
    %v3205 = vpop.f32.mrb[0].mxu0
    %v3206 = vadd.f32 %v3165, %v3205
    %v3207 = vpop.f32.mrb[0].mxu0
    %v3208 = vadd.f32 %v3167, %v3207
    %v3209 = vpop.f32.mrb[0].mxu0
    %v3210 = vpop.f32.mrb[0].mxu0
    %3211 = vdwg.mxu0
    %3212 = vmatprep.subr.bf16.mxu0 %v2795
    %3213 = vmatpush1.bf16.msra.mxu0 %v2794
    %3214 = vmatprep.subr.bf16.mxu0 %v2799
    %3215 = vmatpush1.bf16.msra.mxu0 %v2798
    %3216 = vmatprep.subr.bf16.mxu0 %v2803
    %3217 = vmatpush1.bf16.msra.mxu0 %v2802
    %3218 = vmatprep.subr.bf16.mxu0 %v2807
    %3219 = vmatpush1.bf16.msra.mxu0 %v2806
    %3220 = vmatprep.subr.bf16.mxu0 %v2811
    %3221 = vmatpush1.bf16.msra.mxu0 %v2810
    %3222 = vmatprep.subr.bf16.mxu0 %v2815
    %3223 = vmatpush1.bf16.msra.mxu0 %v2814
    %3224 = vmatprep.subr.bf16.mxu0 %v2819
    %3225 = vmatpush1.bf16.msra.mxu0 %v2818
    %3226 = vmatprep.subr.bf16.mxu0 %v2823
    %3227 = vmatpush1.bf16.msra.mxu0 %v2822
    %3228 = vmatprep.subr.bf16.mxu0 %v2827
    %3229 = vmatpush1.bf16.msra.mxu0 %v2826
    %3230 = vmatprep.subr.bf16.mxu0 %v2831
    %3231 = vmatpush1.bf16.msra.mxu0 %v2830
    %3232 = vmatprep.subr.bf16.mxu0 %v2835
    %3233 = vmatpush1.bf16.msra.mxu0 %v2834
    %3234 = vmatprep.subr.bf16.mxu0 %v2839
    %3235 = vmatpush1.bf16.msra.mxu0 %v2838
    %3236 = vmatprep.subr.bf16.mxu0 %v2843
    %3237 = vmatpush1.bf16.msra.mxu0 %v2842
    %3238 = vmatprep.subr.bf16.mxu0 %v2847
    %3239 = vmatpush1.bf16.msra.mxu0 %v2846
    %3240 = vmatprep.subr.bf16.mxu0 %v2851
    %3241 = vmatpush1.bf16.msra.mxu0 %v2850
    %3242 = vmatprep.subr.bf16.mxu0 %v2855
    %3243 = vmatpush1.bf16.msra.mxu0 %v2854
    %3244 = vmatprep.mubr.bf16.mxu0 %v2785
    %3245 = vmatmul.mubr.bf16.gmra.mrb[0].mxu0 %v2784
    %v3246 = vpop.f32.mrb[0].mxu0
    %v3247 = vadd.f32 0.0, %v3246
    %v3248 = vpop.f32.mrb[0].mxu0
    %v3249 = vadd.f32 0.0, %v3248
    %v3250 = vpop.f32.mrb[0].mxu0
    %v3251 = vpop.f32.mrb[0].mxu0
    %3252 = vdwg.mxu0
    %3253 = vmatprep.subr.bf16.mxu0 %v2859
    %3254 = vmatpush1.bf16.msra.mxu0 %v2858
    %3255 = vmatprep.subr.bf16.mxu0 %v2863
    %3256 = vmatpush1.bf16.msra.mxu0 %v2862
    %3257 = vmatprep.subr.bf16.mxu0 %v2867
    %3258 = vmatpush1.bf16.msra.mxu0 %v2866
    %3259 = vmatprep.subr.bf16.mxu0 %v2871
    %3260 = vmatpush1.bf16.msra.mxu0 %v2870
    %3261 = vmatprep.subr.bf16.mxu0 %v2875
    %3262 = vmatpush1.bf16.msra.mxu0 %v2874
    %3263 = vmatprep.subr.bf16.mxu0 %v2879
    %3264 = vmatpush1.bf16.msra.mxu0 %v2878
    %3265 = vmatprep.subr.bf16.mxu0 %v2883
    %3266 = vmatpush1.bf16.msra.mxu0 %v2882
    %3267 = vmatprep.subr.bf16.mxu0 %v2887
    %3268 = vmatpush1.bf16.msra.mxu0 %v2886
    %3269 = vmatprep.subr.bf16.mxu0 %v2891
    %3270 = vmatpush1.bf16.msra.mxu0 %v2890
    %3271 = vmatprep.subr.bf16.mxu0 %v2895
    %3272 = vmatpush1.bf16.msra.mxu0 %v2894
    %3273 = vmatprep.subr.bf16.mxu0 %v2899
    %3274 = vmatpush1.bf16.msra.mxu0 %v2898
    %3275 = vmatprep.subr.bf16.mxu0 %v2903
    %3276 = vmatpush1.bf16.msra.mxu0 %v2902
    %3277 = vmatprep.subr.bf16.mxu0 %v2907
    %3278 = vmatpush1.bf16.msra.mxu0 %v2906
    %3279 = vmatprep.subr.bf16.mxu0 %v2911
    %3280 = vmatpush1.bf16.msra.mxu0 %v2910
    %3281 = vmatprep.subr.bf16.mxu0 %v2915
    %3282 = vmatpush1.bf16.msra.mxu0 %v2914
    %3283 = vmatprep.subr.bf16.mxu0 %v2919
    %3284 = vmatpush1.bf16.msra.mxu0 %v2918
    %3285 = vmatprep.mubr.bf16.mxu0 %v2787
    %3286 = vmatmul.mubr.bf16.gmra.mrb[0].mxu0 %v2786
    %v3287 = vpop.f32.mrb[0].mxu0
    %v3288 = vadd.f32 %v3247, %v3287
    %v3289 = vpop.f32.mrb[0].mxu0
    %v3290 = vadd.f32 %v3249, %v3289
    %v3291 = vpop.f32.mrb[0].mxu0
    %v3292 = vpop.f32.mrb[0].mxu0
    %3293 = vdwg.mxu0
    %3294 = vmatprep.subr.bf16.mxu0 %v2923
    %3295 = vmatpush1.bf16.msra.mxu0 %v2922
    %3296 = vmatprep.subr.bf16.mxu0 %v2927
    %3297 = vmatpush1.bf16.msra.mxu0 %v2926
    %3298 = vmatprep.subr.bf16.mxu0 %v2931
    %3299 = vmatpush1.bf16.msra.mxu0 %v2930
    %3300 = vmatprep.subr.bf16.mxu0 %v2935
    %3301 = vmatpush1.bf16.msra.mxu0 %v2934
    %3302 = vmatprep.subr.bf16.mxu0 %v2939
    %3303 = vmatpush1.bf16.msra.mxu0 %v2938
    %3304 = vmatprep.subr.bf16.mxu0 %v2943
    %3305 = vmatpush1.bf16.msra.mxu0 %v2942
    %3306 = vmatprep.subr.bf16.mxu0 %v2947
    %3307 = vmatpush1.bf16.msra.mxu0 %v2946
    %3308 = vmatprep.subr.bf16.mxu0 %v2951
    %3309 = vmatpush1.bf16.msra.mxu0 %v2950
    %3310 = vmatprep.subr.bf16.mxu0 %v2955
    %3311 = vmatpush1.bf16.msra.mxu0 %v2954
    %3312 = vmatprep.subr.bf16.mxu0 %v2959
    %3313 = vmatpush1.bf16.msra.mxu0 %v2958
    %3314 = vmatprep.subr.bf16.mxu0 %v2963
    %3315 = vmatpush1.bf16.msra.mxu0 %v2962
    %3316 = vmatprep.subr.bf16.mxu0 %v2967
    %3317 = vmatpush1.bf16.msra.mxu0 %v2966
    %3318 = vmatprep.subr.bf16.mxu0 %v2971
    %3319 = vmatpush1.bf16.msra.mxu0 %v2970
    %3320 = vmatprep.subr.bf16.mxu0 %v2975
    %3321 = vmatpush1.bf16.msra.mxu0 %v2974
    %3322 = vmatprep.subr.bf16.mxu0 %v2979
    %3323 = vmatpush1.bf16.msra.mxu0 %v2978
    %3324 = vmatprep.subr.bf16.mxu0 %v2983
    %3325 = vmatpush1.bf16.msra.mxu0 %v2982
    %3326 = vmatprep.mubr.bf16.mxu0 %v2789
    %3327 = vmatmul.mubr.bf16.gmra.mrb[0].mxu0 %v2788
    %v3328 = vpop.f32.mrb[0].mxu0
    %v3329 = vadd.f32 %v3288, %v3328
    %v3330 = vpop.f32.mrb[0].mxu0
    %v3331 = vadd.f32 %v3290, %v3330
    %v3332 = vpop.f32.mrb[0].mxu0
    %v3333 = vpop.f32.mrb[0].mxu0
    %3334 = vdwg.mxu0
    %3335 = vmatprep.subr.bf16.mxu0 %v2987
    %3336 = vmatpush1.bf16.msra.mxu0 %v2986
    %3337 = vmatprep.subr.bf16.mxu0 %v2991
    %3338 = vmatpush1.bf16.msra.mxu0 %v2990
    %3339 = vmatprep.subr.bf16.mxu0 %v2995
    %3340 = vmatpush1.bf16.msra.mxu0 %v2994
    %3341 = vmatprep.subr.bf16.mxu0 %v2999
    %3342 = vmatpush1.bf16.msra.mxu0 %v2998
    %3343 = vmatprep.subr.bf16.mxu0 %v3003
    %3344 = vmatpush1.bf16.msra.mxu0 %v3002
    %3345 = vmatprep.subr.bf16.mxu0 %v3007
    %3346 = vmatpush1.bf16.msra.mxu0 %v3006
    %3347 = vmatprep.subr.bf16.mxu0 %v3011
    %3348 = vmatpush1.bf16.msra.mxu0 %v3010
    %3349 = vmatprep.subr.bf16.mxu0 %v3015
    %3350 = vmatpush1.bf16.msra.mxu0 %v3014
    %3351 = vmatprep.subr.bf16.mxu0 %v3019
    %3352 = vmatpush1.bf16.msra.mxu0 %v3018
    %3353 = vmatprep.subr.bf16.mxu0 %v3023
    %3354 = vmatpush1.bf16.msra.mxu0 %v3022
    %3355 = vmatprep.subr.bf16.mxu0 %v3027
    %3356 = vmatpush1.bf16.msra.mxu0 %v3026
    %3357 = vmatprep.subr.bf16.mxu0 %v3031
    %3358 = vmatpush1.bf16.msra.mxu0 %v3030
    %3359 = vmatprep.subr.bf16.mxu0 %v3035
    %3360 = vmatpush1.bf16.msra.mxu0 %v3034
    %3361 = vmatprep.subr.bf16.mxu0 %v3039
    %3362 = vmatpush1.bf16.msra.mxu0 %v3038
    %3363 = vmatprep.subr.bf16.mxu0 %v3043
    %3364 = vmatpush1.bf16.msra.mxu0 %v3042
    %3365 = vmatprep.subr.bf16.mxu0 %v3047
    %3366 = vmatpush1.bf16.msra.mxu0 %v3046
    %3367 = vmatprep.mubr.bf16.mxu0 %v2791
    %3368 = vmatmul.mubr.bf16.gmra.mrb[0].mxu0 %v2790
    %v3369 = vpop.f32.mrb[0].mxu0
    %v3370 = vadd.f32 %v3329, %v3369
    %v3371 = vpop.f32.mrb[0].mxu0
    %v3372 = vadd.f32 %v3331, %v3371
    %v3373 = vpop.f32.mrb[0].mxu0
    %v3374 = vpop.f32.mrb[0].mxu0
    %3375 = vdwg.mxu0
    %v3376 = vld [vmem:[#allocation23] sm:$0xf]
    %v3378 = vlaneseq
    %v3379 = vshrl.u32 %v3378, 7
    %v3380 = vsub.s32 0, %v3379
    %v3381 = vrot.slane %v3376, %v3380
    %v3382 = vlaneseq
    %v3383 = vshrl.u32 %v3382, 7
    %v3384 = vsub.s32 1, %v3383
    %v3385 = vrot.slane %v3376, %v3384
    %v3386 = vlaneseq
    %v3387 = vshrl.u32 %v3386, 7
    %v3388 = vsub.s32 2, %v3387
    %v3389 = vrot.slane %v3376, %v3388
    %v3390 = vlaneseq
    %v3391 = vshrl.u32 %v3390, 7
    %v3392 = vsub.s32 3, %v3391
    %v3393 = vrot.slane %v3376, %v3392
    %v3398 = vmul.f32 %v3206, %v3381
    %v3399 = vmul.f32 %v3208, %v3385
    %v3400 = vmul.f32 %v3370, %v3389
    %v3401 = vmul.f32 %v3372, %v3393
    %v3402 = vld [vmem:[#allocation24] sm:$0xf]
    %v3404 = vlaneseq
    %v3405 = vshrl.u32 %v3404, 7
    %v3406 = vsub.s32 0, %v3405
    %v3407 = vrot.slane %v3402, %v3406
    %v3408 = vlaneseq
    %v3409 = vshrl.u32 %v3408, 7
    %v3410 = vsub.s32 1, %v3409
    %v3411 = vrot.slane %v3402, %v3410
    %v3412 = vlaneseq
    %v3413 = vshrl.u32 %v3412, 7
    %v3414 = vsub.s32 2, %v3413
    %v3415 = vrot.slane %v3402, %v3414
    %v3416 = vlaneseq
    %v3417 = vshrl.u32 %v3416, 7
    %v3418 = vsub.s32 3, %v3417
    %v3419 = vrot.slane %v3402, %v3418
    %v3424 = vadd.f32 %v3398, %v3407
    %v3425 = vadd.f32 %v3399, %v3411
    %v3426 = vadd.f32 %v3400, %v3415
    %v3427 = vadd.f32 %v3401, %v3419
    %v3428 = vmax.f32 %v3424, 0.0
    %v3429 = vmax.f32 %v3425, 0.0
    %v3430 = vmax.f32 %v3426, 0.0
    %v3431 = vmax.f32 %v3427, 0.0
    %s3432 = smul.u32 4, 64
    %s3433 = smul.u32 %s3432, 2
    %s3434 = sshll.u32 %s3433, 4
    %3435 = dma.done %s274, %s3434
    %v3436 = vpack.c.bf16 %v3428, %v3428
    %v3437 = vpack.c.bf16 %v3429, %v3429
    %v3438 = vpack.c.bf16 %v3430, %v3430
    %v3439 = vpack.c.bf16 %v3431, %v3431
    %v3440 = vld [vmem:[#allocation4] sm:$0xff]
    %v3441 = vld [vmem:[#allocation4 + $0x8] sm:$0xff]
    %v3442 = vld [vmem:[#allocation4 + $0x10] sm:$0xff]
    %v3443 = vld [vmem:[#allocation4 + $0x18] sm:$0xff]
    %v3444 = vld [vmem:[#allocation4 + $0x20] sm:$0xff]
    %v3445 = vld [vmem:[#allocation4 + $0x28] sm:$0xff]
    %v3446 = vld [vmem:[#allocation4 + $0x30] sm:$0xff]
    %v3447 = vld [vmem:[#allocation4 + $0x38] sm:$0xff]
    %v3448 = vld [vmem:[#allocation4 + $0x40] sm:$0xff]
    %v3449 = vld [vmem:[#allocation4 + $0x48] sm:$0xff]
    %v3450 = vld [vmem:[#allocation4 + $0x50] sm:$0xff]
    %v3451 = vld [vmem:[#allocation4 + $0x58] sm:$0xff]
    %v3452 = vld [vmem:[#allocation4 + $0x60] sm:$0xff]
    %v3453 = vld [vmem:[#allocation4 + $0x68] sm:$0xff]
    %v3454 = vld [vmem:[#allocation4 + $0x70] sm:$0xff]
    %v3455 = vld [vmem:[#allocation4 + $0x78] sm:$0xff]
    %v3456 = vld [vmem:[#allocation4 + $0x80] sm:$0xff]
    %v3457 = vld [vmem:[#allocation4 + $0x88] sm:$0xff]
    %v3458 = vld [vmem:[#allocation4 + $0x90] sm:$0xff]
    %v3459 = vld [vmem:[#allocation4 + $0x98] sm:$0xff]
    %v3460 = vld [vmem:[#allocation4 + $0xa0] sm:$0xff]
    %v3461 = vld [vmem:[#allocation4 + $0xa8] sm:$0xff]
    %v3462 = vld [vmem:[#allocation4 + $0xb0] sm:$0xff]
    %v3463 = vld [vmem:[#allocation4 + $0xb8] sm:$0xff]
    %v3464 = vld [vmem:[#allocation4 + $0xc0] sm:$0xff]
    %v3465 = vld [vmem:[#allocation4 + $0xc8] sm:$0xff]
    %v3466 = vld [vmem:[#allocation4 + $0xd0] sm:$0xff]
    %v3467 = vld [vmem:[#allocation4 + $0xd8] sm:$0xff]
    %v3468 = vld [vmem:[#allocation4 + $0xe0] sm:$0xff]
    %v3469 = vld [vmem:[#allocation4 + $0xe8] sm:$0xff]
    %v3470 = vld [vmem:[#allocation4 + $0xf0] sm:$0xff]
    %v3471 = vld [vmem:[#allocation4 + $0xf8] sm:$0xff]
    %v3472 = vld [vmem:[#allocation4 + $0x100] sm:$0xff]
    %v3473 = vld [vmem:[#allocation4 + $0x108] sm:$0xff]
    %v3474 = vld [vmem:[#allocation4 + $0x110] sm:$0xff]
    %v3475 = vld [vmem:[#allocation4 + $0x118] sm:$0xff]
    %v3476 = vld [vmem:[#allocation4 + $0x120] sm:$0xff]
    %v3477 = vld [vmem:[#allocation4 + $0x128] sm:$0xff]
    %v3478 = vld [vmem:[#allocation4 + $0x130] sm:$0xff]
    %v3479 = vld [vmem:[#allocation4 + $0x138] sm:$0xff]
    %v3480 = vld [vmem:[#allocation4 + $0x140] sm:$0xff]
    %v3481 = vld [vmem:[#allocation4 + $0x148] sm:$0xff]
    %v3482 = vld [vmem:[#allocation4 + $0x150] sm:$0xff]
    %v3483 = vld [vmem:[#allocation4 + $0x158] sm:$0xff]
    %v3484 = vld [vmem:[#allocation4 + $0x160] sm:$0xff]
    %v3485 = vld [vmem:[#allocation4 + $0x168] sm:$0xff]
    %v3486 = vld [vmem:[#allocation4 + $0x170] sm:$0xff]
    %v3487 = vld [vmem:[#allocation4 + $0x178] sm:$0xff]
    %v3488 = vld [vmem:[#allocation4 + $0x180] sm:$0xff]
    %v3489 = vld [vmem:[#allocation4 + $0x188] sm:$0xff]
    %v3490 = vld [vmem:[#allocation4 + $0x190] sm:$0xff]
    %v3491 = vld [vmem:[#allocation4 + $0x198] sm:$0xff]
    %v3492 = vld [vmem:[#allocation4 + $0x1a0] sm:$0xff]
    %v3493 = vld [vmem:[#allocation4 + $0x1a8] sm:$0xff]
    %v3494 = vld [vmem:[#allocation4 + $0x1b0] sm:$0xff]
    %v3495 = vld [vmem:[#allocation4 + $0x1b8] sm:$0xff]
    %v3496 = vld [vmem:[#allocation4 + $0x1c0] sm:$0xff]
    %v3497 = vld [vmem:[#allocation4 + $0x1c8] sm:$0xff]
    %v3498 = vld [vmem:[#allocation4 + $0x1d0] sm:$0xff]
    %v3499 = vld [vmem:[#allocation4 + $0x1d8] sm:$0xff]
    %v3500 = vld [vmem:[#allocation4 + $0x1e0] sm:$0xff]
    %v3501 = vld [vmem:[#allocation4 + $0x1e8] sm:$0xff]
    %v3502 = vld [vmem:[#allocation4 + $0x1f0] sm:$0xff]
    %v3503 = vld [vmem:[#allocation4 + $0x1f8] sm:$0xff]
    %3504 = vmatprep.subr.bf16.mxu0 %v3441
    %3505 = vmatpush1.bf16.msra.mxu0 %v3440
    %3506 = vmatprep.subr.bf16.mxu0 %v3443
    %3507 = vmatpush1.bf16.msra.mxu0 %v3442
    %3508 = vmatprep.subr.bf16.mxu0 %v3445
    %3509 = vmatpush1.bf16.msra.mxu0 %v3444
    %3510 = vmatprep.subr.bf16.mxu0 %v3447
    %3511 = vmatpush1.bf16.msra.mxu0 %v3446
    %3512 = vmatprep.subr.bf16.mxu0 %v3449
    %3513 = vmatpush1.bf16.msra.mxu0 %v3448
    %3514 = vmatprep.subr.bf16.mxu0 %v3451
    %3515 = vmatpush1.bf16.msra.mxu0 %v3450
    %3516 = vmatprep.subr.bf16.mxu0 %v3453
    %3517 = vmatpush1.bf16.msra.mxu0 %v3452
    %3518 = vmatprep.subr.bf16.mxu0 %v3455
    %3519 = vmatpush1.bf16.msra.mxu0 %v3454
    %3520 = vmatprep.subr.bf16.mxu0 %v3457
    %3521 = vmatpush1.bf16.msra.mxu0 %v3456
    %3522 = vmatprep.subr.bf16.mxu0 %v3459
    %3523 = vmatpush1.bf16.msra.mxu0 %v3458
    %3524 = vmatprep.subr.bf16.mxu0 %v3461
    %3525 = vmatpush1.bf16.msra.mxu0 %v3460
    %3526 = vmatprep.subr.bf16.mxu0 %v3463
    %3527 = vmatpush1.bf16.msra.mxu0 %v3462
    %3528 = vmatprep.subr.bf16.mxu0 %v3465
    %3529 = vmatpush1.bf16.msra.mxu0 %v3464
    %3530 = vmatprep.subr.bf16.mxu0 %v3467
    %3531 = vmatpush1.bf16.msra.mxu0 %v3466
    %3532 = vmatprep.subr.bf16.mxu0 %v3469
    %3533 = vmatpush1.bf16.msra.mxu0 %v3468
    %3534 = vmatprep.subr.bf16.mxu0 %v3471
    %3535 = vmatpush1.bf16.msra.mxu0 %v3470
    %3536 = vmatprep.mubr.bf16.mxu0 %v3437
    %3537 = vmatmul.mubr.bf16.gmra.mrb[0].mxu0 %v3436
    %v3538 = vpop.f32.mrb[0].mxu0
    %v3539 = vadd.f32 0.0, %v3538
    %v3540 = vpop.f32.mrb[0].mxu0
    %v3541 = vadd.f32 0.0, %v3540
    %v3542 = vpop.f32.mrb[0].mxu0
    %v3543 = vpop.f32.mrb[0].mxu0
    %3544 = vdwg.mxu0
    %3545 = vmatprep.subr.bf16.mxu0 %v3473
    %3546 = vmatpush1.bf16.msra.mxu0 %v3472
    %3547 = vmatprep.subr.bf16.mxu0 %v3475
    %3548 = vmatpush1.bf16.msra.mxu0 %v3474
    %3549 = vmatprep.subr.bf16.mxu0 %v3477
    %3550 = vmatpush1.bf16.msra.mxu0 %v3476
    %3551 = vmatprep.subr.bf16.mxu0 %v3479
    %3552 = vmatpush1.bf16.msra.mxu0 %v3478
    %3553 = vmatprep.subr.bf16.mxu0 %v3481
    %3554 = vmatpush1.bf16.msra.mxu0 %v3480
    %3555 = vmatprep.subr.bf16.mxu0 %v3483
    %3556 = vmatpush1.bf16.msra.mxu0 %v3482
    %3557 = vmatprep.subr.bf16.mxu0 %v3485
    %3558 = vmatpush1.bf16.msra.mxu0 %v3484
    %3559 = vmatprep.subr.bf16.mxu0 %v3487
    %3560 = vmatpush1.bf16.msra.mxu0 %v3486
    %3561 = vmatprep.subr.bf16.mxu0 %v3489
    %3562 = vmatpush1.bf16.msra.mxu0 %v3488
    %3563 = vmatprep.subr.bf16.mxu0 %v3491
    %3564 = vmatpush1.bf16.msra.mxu0 %v3490
    %3565 = vmatprep.subr.bf16.mxu0 %v3493
    %3566 = vmatpush1.bf16.msra.mxu0 %v3492
    %3567 = vmatprep.subr.bf16.mxu0 %v3495
    %3568 = vmatpush1.bf16.msra.mxu0 %v3494
    %3569 = vmatprep.subr.bf16.mxu0 %v3497
    %3570 = vmatpush1.bf16.msra.mxu0 %v3496
    %3571 = vmatprep.subr.bf16.mxu0 %v3499
    %3572 = vmatpush1.bf16.msra.mxu0 %v3498
    %3573 = vmatprep.subr.bf16.mxu0 %v3501
    %3574 = vmatpush1.bf16.msra.mxu0 %v3500
    %3575 = vmatprep.subr.bf16.mxu0 %v3503
    %3576 = vmatpush1.bf16.msra.mxu0 %v3502
    %3577 = vmatprep.mubr.bf16.mxu0 %v3439
    %3578 = vmatmul.mubr.bf16.gmra.mrb[0].mxu0 %v3438
    %v3579 = vpop.f32.mrb[0].mxu0
    %v3580 = vadd.f32 %v3539, %v3579
    %v3581 = vpop.f32.mrb[0].mxu0
    %v3582 = vadd.f32 %v3541, %v3581
    %v3583 = vpop.f32.mrb[0].mxu0
    %v3584 = vpop.f32.mrb[0].mxu0
    %3585 = vdwg.mxu0
    %v3588 = vcombine.low %v3580, %v3582
    %v3590 = vunpack.c.l.s4 1983009808
    %v3591 = vunpack.c.0.s8 %v3590
    %v3592 = vlaneseq
    %v3593 = vshrl.u32 %v3592, 7
    %v3594 = vsub.s32 %v3591, %v3593
    %v3595 = vrot.slane %v3588, %v3594
    %3597 = vst [vmem:[#allocation27] sm:$0xf] %v3595
    // Predicated region
    $region114: #{res50_align_forward.1} parent=1 // pred_check
      _
    $region115: #{res50_align_forward.1} parent=1 // pred_check_branch
      %3599 = sbr.rel (0) target = $region117
    $region116: #{res50_align_forward.1} parent=1 // pred_region
      %s3601 = ssub.s32 256, 256
      %3602 = vsyncadd [#allocation8], %s3601
      %s3604 = sshll.u32 [#allocation26], 4
      %s3605 = int_to_ptr.vmem [resolvable:$true] %s3604
      %3607 = dma.vmem_to_hbm [thread:$0]  %s3605, 256, %s19, [#allocation8]
    $region117: #{res50_align_forward.1} parent=1 // pred_fallthru
      _
    // Predicated region
    $region118: #{res50_align_forward.1} parent=1 // pred_check
      _
    $region119: #{res50_align_forward.1} parent=1 // pred_check_branch
      %3609 = sbr.rel (0) target = $region121
    $region120: #{res50_align_forward.1} parent=1 // pred_region
      %s3611 = ssub.s32 64, 64
      %3612 = vsyncadd [#allocation28], %s3611
      %s3614 = sshll.u32 [#allocation27], 4
      %s3615 = int_to_ptr.vmem [resolvable:$true] %s3614
      %3617 = dma.vmem_to_hbm [thread:$0]  %s3615, 64, %s20, [#allocation28]
    $region121: #{res50_align_forward.1} parent=1 // pred_fallthru
      _
    // Predicated region
    $region122: #{res50_align_forward.1} parent=1 // pred_check
      _
    $region123: #{res50_align_forward.1} parent=1 // pred_check_branch
      %3619 = sbr.rel (0) target = $region125
    $region124: #{res50_align_forward.1} parent=1 // pred_region
      %3620 = dma.done [#allocation8], 256
    $region125: #{res50_align_forward.1} parent=1 // pred_fallthru
      _
    // Predicated region
    $region126: #{res50_align_forward.1} parent=1 // pred_check
      _
    $region127: #{res50_align_forward.1} parent=1 // pred_check_branch
      %3622 = sbr.rel (0) target = $region129
    $region128: #{res50_align_forward.1} parent=1 // pred_region
      %3623 = dma.done [#allocation28], 64
    $region129: #{res50_align_forward.1} parent=1 // pred_fallthru
      _
    %3624 = vsyncpa [#allocation7], 1
    %3625 = vsyncpa [#allocation10], 1
    %3626 = vsyncpa [#allocation13], 1
    %3627 = vsyncpa [#allocation16], 1
    %3628 = vsyncpa [#allocation19], 1
    %3629 = vsyncpa [#allocation22], 1
    %3630 = vsyncpa [#allocation25], 1
    %3631 = vsyncpa [#allocation8], 1
    %3632 = vsyncpa [#allocation28], 1
  %3633 = vsyncmov [#allocation5]
  %s3634 = vpop.sfrf %3633
  %p3635 = scmp.eq.s32.totalorder %s3634, 0
  %p3636 = pneg %p3635
  %3638 = shalt.err (%p3636)
  %s3639 = scalar_lea.sflag [#allocation5], 1
  %3640 = vsyncmov %s3639
  %s3641 = vpop.sfrf %3640
  %p3642 = scmp.eq.s32.totalorder %s3641, 0
  %p3643 = pneg %p3642
  %3645 = shalt.err (%p3643)
  %s3646 = scalar_lea.sflag [#allocation5], 2
  %3647 = vsyncmov %s3646
  %s3648 = vpop.sfrf %3647
  %p3649 = scmp.eq.s32.totalorder %s3648, 0
  %p3650 = pneg %p3649
  %3652 = shalt.err (%p3650)

</llo_original>
